<compile_context>
chip_gen: v7x
topology: tpu7x:2x2x1
jax: 0.10.0
libtpu: 0.0.40
codegen_flags: <defaults>
</compile_context>

<pallas_src>
import functools

import jax
import jax.numpy as jnp
from jax.experimental import pallas as pl
from jax.experimental.pallas import tpu as pltpu

EPS = 1e-5


def _round_up(x, m):
    return ((x + m - 1) // m) * m


def _pad_to(x, shape):
    return jnp.pad(x, [(0, t - s) for t, s in zip(shape, x.shape)])


# ----------------------------- fused Pallas kernel -------------------------- #

def fused_gin_kernel(num_layers, inv_n, matmul_dtype,
                     h0_ref, a_ref, dedge_ref, ee_ref,
                     w1_ref, b1_ref, w2_ref, b2_ref, g_ref, bt_ref,
                     mask_ref, pw_ref, pb_ref, o_ref):
    mm = matmul_dtype

    h = h0_ref[...]                       # (NP, PE) f32, pre-gathered fragment emb
    a = a_ref[...].astype(mm)             # (NP, NP) adjacency counts (exact in bf16)
    dedge = dedge_ref[...]                # (NP, 8)  f32, per-dst summed edge one-hots
    mask = mask_ref[...]                  # (1, NP)  f32, 1 on real nodes, 0 on padding

    for li in range(num_layers):          # statically unrolled (small L)
        # Add-aggregation: A @ h plus the factored-out edge contribution (tiny K=8).
        aggr = jnp.dot(a, h.astype(mm), preferred_element_type=jnp.float32)
        aggr = aggr + jnp.dot(dedge, ee_ref[li], preferred_element_type=jnp.float32)

        # GIN MLP: Linear -> ReLU -> Linear (f32 accumulation).
        hid = jnp.maximum(
            jnp.dot(aggr.astype(mm), w1_ref[li].astype(mm),
                    preferred_element_type=jnp.float32) + b1_ref[li], 0.0)
        out = jnp.dot(hid.astype(mm), w2_ref[li].astype(mm),
                      preferred_element_type=jnp.float32) + b2_ref[li]

        # BatchNorm1d (training-mode batch stats, eps=1e-5), single pass:
        # masked row sums via (1,NP)@(NP,PE) MXU matmuls (padded rows excluded),
        # var = E[x^2] - mean^2, folded scale.  Stats kept in f32 regardless of mm.
        s1 = jnp.dot(mask, out, preferred_element_type=jnp.float32)
        s2 = jnp.dot(mask, out * out, preferred_element_type=jnp.float32)
        mean = s1 * inv_n
        var = s2 * inv_n - mean * mean
        scale = g_ref[li] * jax.lax.rsqrt(var + EPS)
        out = out * scale + (bt_ref[li] - mean * scale)

        # dropout(p=0) is identity; ReLU on all but the last GNN layer.
        if li != num_layers - 1:
            out = jnp.maximum(out, 0.0)
        h = out

    # Final projection fused into the same kernel (lane-dense 128-wide store).
    o_ref[...] = jnp.dot(h.astype(mm), pw_ref[...].astype(mm),
                         preferred_element_type=jnp.float32) + pb_ref[...]


# ------------------------------ parameters --------------------------------- #

def init_params(key, emb_dim, num_layers):
    scale = 0.1

    def nxt():
        nonlocal key
        key, sub = jax.random.split(key)
        return sub

    params = {
        "frag_emb": jax.random.normal(nxt(), (908, emb_dim), jnp.float32) * scale,
        "layers": [],
        "proj_w": None,
        "proj_b": jnp.zeros((1, emb_dim), jnp.float32),
    }
    for _ in range(num_layers):
        params["layers"].append(dict(
            edge_emb1=jax.random.normal(nxt(), (5, emb_dim), jnp.float32) * scale,
            edge_emb2=jax.random.normal(nxt(), (3, emb_dim), jnp.float32) * scale,
            w1=jax.random.normal(nxt(), (emb_dim, 2 * emb_dim), jnp.float32) * scale,
            b1=jnp.zeros((1, 2 * emb_dim), jnp.float32),
            w2=jax.random.normal(nxt(), (2 * emb_dim, emb_dim), jnp.float32) * scale,
            b2=jnp.zeros((1, emb_dim), jnp.float32),
            gamma=jnp.ones((1, emb_dim), jnp.float32),
            beta=jnp.zeros((1, emb_dim), jnp.float32),
        ))
    params["proj_w"] = jax.random.normal(nxt(), (emb_dim, emb_dim), jnp.float32) * scale
    return params


# ------------------------------ forward glue -------------------------------- #

def _add_self_loops(n, edge_index, edge_attr):
    self_loops = jnp.stack([jnp.arange(n, dtype=edge_index.dtype)] * 2, axis=0)
    ei = jnp.concatenate([edge_index, self_loops], axis=1)            # (2, E + N)
    if edge_attr is not None:
        self_attr = jnp.zeros((n, 2), edge_attr.dtype).at[:, 0].set(4)
        ea = jnp.concatenate([edge_attr, self_attr], axis=0)          # (E + N, 2)
    else:
        ea = None
    return ei, ea


def frag_embedding_forward(params, x_idx, edge_index, edge_attr=None,
                           matmul_dtype=jnp.bfloat16):
    frag_tab = params["frag_emb"]
    emb = frag_tab.shape[1]
    num_layers = len(params["layers"])
    n = x_idx.shape[0]

    NP = _round_up(n, 128)            # node axis: sublane AND lane (A's K dim) aligned
    PE = _round_up(emb, 128)          # lane-dense feature width
    PH = _round_up(2 * emb, 128)      # lane-dense hidden width

    op_dtype = jnp.dtype(matmul_dtype)

    # One-time host-side graph setup (self loops, dense operators).
    ei, ea = _add_self_loops(n, edge_index, edge_attr)
    src, dst = ei[0], ei[1]

    # Dense adjacency (dst <- src), zero-padded; integer counts -> exact in bf16.
    a_store = op_dtype if op_dtype == jnp.dtype(jnp.bfloat16) else jnp.dtype(jnp.float32)
    A = jnp.zeros((NP, NP), jnp.float32).at[dst, src].add(1.0).astype(a_store)

    # Edge path factored out of the layer loop: per-destination summed edge one-hots.
    if ea is not None:
        edge_oh = jnp.concatenate(
            [jax.nn.one_hot(ea[:, 0], 5, dtype=jnp.float32),
             jax.nn.one_hot(ea[:, 1], 3, dtype=jnp.float32)], axis=1)  # (E+N, 8)
        dedge = jnp.zeros((NP, 8), jnp.float32).at[dst].add(edge_oh)
    else:
        dedge = jnp.zeros((NP, 8), jnp.float32)

    # Fragment-embedding gather outside the kernel (once per call), zero-padded.
    h0 = _pad_to(frag_tab[x_idx], (NP, PE))

    # Valid-node mask row for BatchNorm statistics over the padded node axis.
    mask = (jnp.arange(NP) < n).astype(jnp.float32).reshape(1, NP)

    # Zero-padded, layer-stacked parameters (padded rows/cols stay identically 0).
    ee = jnp.stack([_pad_to(jnp.concatenate([lp["edge_emb1"], lp["edge_emb2"]], axis=0),
                            (8, PE)) for lp in params["layers"]])
    w1 = jnp.stack([_pad_to(lp["w1"], (PE, PH)) for lp in params["layers"]])
    b1 = jnp.stack([_pad_to(lp["b1"], (1, PH)) for lp in params["layers"]])
    w2 = jnp.stack([_pad_to(lp["w2"], (PH, PE)) for lp in params["layers"]])
    b2 = jnp.stack([_pad_to(lp["b2"], (1, PE)) for lp in params["layers"]])
    gamma = jnp.stack([_pad_to(lp["gamma"], (1, PE)) for lp in params["layers"]])
    beta = jnp.stack([_pad_to(lp["beta"], (1, PE)) for lp in params["layers"]])
    pw = _pad_to(params["proj_w"], (PE, PE))
    pb = _pad_to(params["proj_b"], (1, PE))

    inputs = (h0, A, dedge, ee, w1, b1, w2, b2, gamma, beta, mask, pw, pb)

    # Explicit VMEM budget (inputs + output, 2x headroom, clamped for v7x's 64 MiB).
    in_bytes = sum(int(x.size) * x.dtype.itemsize for x in inputs)
    out_bytes = NP * PE * 4
    vmem_limit = int(min(96 * 2 ** 20,
                         max(32 * 2 ** 20, 2 * (in_bytes + out_bytes) + 4 * 2 ** 20)))

    kernel = functools.partial(fused_gin_kernel, num_layers, 1.0 / n, op_dtype)
    vmem = pl.BlockSpec(memory_space=pltpu.MemorySpace.VMEM)
    # NOTE: gridless whole-array-resident call is optimal at these shapes; for large
    # N, tile rows of A with a ("parallel", "arbitrary") grid + cross-block BN stats.
    out = pl.pallas_call(
        kernel,
        out_shape=jax.ShapeDtypeStruct((NP, PE), jnp.float32),
        in_specs=[vmem] * len(inputs),
        out_specs=vmem,
        compiler_params=pltpu.CompilerParams(vmem_limit_bytes=vmem_limit),
    )(*inputs)
    return out[:n, :emb]


# pure-JAX reference (same math, no Pallas, unpadded) for correctness checks
def frag_embedding_ref(params, x_idx, edge_index, edge_attr=None):
    emb = params["frag_emb"].shape[1]
    n = x_idx.shape[0]
    ei, ea = _add_self_loops(n, edge_index, edge_attr)
    src, dst = ei[0], ei[1]
    e_tot = ei.shape[1]
    A = jnp.zeros((n, n), jnp.float32).at[dst, src].add(1.0)
    D = jnp.zeros((n, e_tot), jnp.float32).at[dst, jnp.arange(e_tot)].add(1.0)
    h = params["frag_emb"][x_idx]
    num_layers = len(params["layers"])
    for li, lp in enumerate(params["layers"]):
        if ea is not None:
            eemb = lp["edge_emb1"][ea[:, 0]] + lp["edge_emb2"][ea[:, 1]]
        else:
            eemb = jnp.zeros((e_tot, emb), jnp.float32)
        aggr = A @ h + D @ eemb
        hid = jnp.maximum(aggr @ lp["w1"] + lp["b1"], 0.0)
        out = hid @ lp["w2"] + lp["b2"]
        mean = jnp.mean(out, axis=0, keepdims=True)
        var = jnp.mean((out - mean) ** 2, axis=0, keepdims=True)
        out = (out - mean) / jnp.sqrt(var + EPS) * lp["gamma"] + lp["beta"]
        if li != num_layers - 1:
            out = jnp.maximum(out, 0.0)
        h = out
    return h @ params["proj_w"] + params["proj_b"]


# ---------------------------------- main ------------------------------------ #

if __name__ == "__main__":
    emb_dim = 32
    num_gnn_layers = 3      # FragEmbedding default is 5; kept small but >= 2
    N, E = 8, 12

    key = jax.random.PRNGKey(0)
    kp, kx, ke, ka1, ka2 = jax.random.split(key, 5)

    params = init_params(kp, emb_dim, num_gnn_layers)
    x_idx = jax.random.randint(kx, (N,), 0, 908, dtype=jnp.int32)
    edge_index = jax.random.randint(ke, (2, E), 0, N, dtype=jnp.int32)
    edge_attr = jnp.stack(
        [jax.random.randint(ka1, (E,), 0, 4, dtype=jnp.int32),
         jax.random.randint(ka2, (E,), 0, 3, dtype=jnp.int32)], axis=1)

    ref = frag_embedding_ref(params, x_idx, edge_index, edge_attr)

    # f32 MXU-operand path: tight check against the reference.
    out_f32 = jax.block_until_ready(
        frag_embedding_forward(params, x_idx, edge_index, edge_attr,
                               matmul_dtype=jnp.float32))
    assert out_f32.shape == (N, emb_dim) and out_f32.dtype == jnp.float32
    assert jnp.allclose(out_f32, ref, rtol=1e-4, atol=1e-4)

    # Default bf16 MXU-operand path (f32 accumulation): loose check (bf16 rounding).
    out_bf16 = jax.block_until_ready(
        frag_embedding_forward(params, x_idx, edge_index, edge_attr))
    assert out_bf16.shape == (N, emb_dim)
    assert bool(jnp.all(jnp.isfinite(out_bf16)))
    assert float(jnp.max(jnp.abs(out_bf16 - ref))) < 0.25

    # edge_attr=None path (zero edge embeddings, as in the PyTorch module).
    out_na = jax.block_until_ready(
        frag_embedding_forward(params, x_idx, edge_index, None,
                               matmul_dtype=jnp.float32))
    ref_na = frag_embedding_ref(params, x_idx, edge_index, None)
    assert jnp.allclose(out_na, ref_na, rtol=1e-4, atol=1e-4)

    print("KERNEL_OK")
</pallas_src>

<mosaic_0001>
module attributes {stable_mosaic.version = 11 : i64} {
  func.func @fused_gin_kernel(%arg0: memref<128x128xf32, #tpu.memory_space<vmem>>, %arg1: memref<128x128xf32, #tpu.memory_space<vmem>>, %arg2: memref<128x8xf32, #tpu.memory_space<vmem>>, %arg3: memref<3x8x128xf32, #tpu.memory_space<vmem>>, %arg4: memref<3x128x128xf32, #tpu.memory_space<vmem>>, %arg5: memref<3x1x128xf32, #tpu.memory_space<vmem>>, %arg6: memref<3x128x128xf32, #tpu.memory_space<vmem>>, %arg7: memref<3x1x128xf32, #tpu.memory_space<vmem>>, %arg8: memref<3x1x128xf32, #tpu.memory_space<vmem>>, %arg9: memref<3x1x128xf32, #tpu.memory_space<vmem>>, %arg10: memref<1x128xf32, #tpu.memory_space<vmem>>, %arg11: memref<128x128xf32, #tpu.memory_space<vmem>>, %arg12: memref<1x128xf32, #tpu.memory_space<vmem>>, %arg13: memref<128x128xf32, #tpu.memory_space<vmem>>) attributes {dimension_semantics = [], scalar_prefetch = 0 : i64, scratch_operands = 0 : i64, tpu.core_type = #tpu.core_type<tc>} {
    %c0 = arith.constant 0 : index
    %c0_0 = arith.constant 0 : index
    %0 = vector.load %arg0[%c0, %c0_0] : memref<128x128xf32, #tpu.memory_space<vmem>>, vector<128x128xf32>
    %c0_1 = arith.constant 0 : index
    %c0_2 = arith.constant 0 : index
    %1 = vector.load %arg1[%c0_1, %c0_2] : memref<128x128xf32, #tpu.memory_space<vmem>>, vector<128x128xf32>
    %c0_3 = arith.constant 0 : index
    %c0_4 = arith.constant 0 : index
    %2 = vector.load %arg2[%c0_3, %c0_4] : memref<128x8xf32, #tpu.memory_space<vmem>>, vector<128x8xf32>
    %c0_5 = arith.constant 0 : index
    %c0_6 = arith.constant 0 : index
    %3 = vector.load %arg10[%c0_5, %c0_6] : memref<1x128xf32, #tpu.memory_space<vmem>>, vector<1x128xf32>
    %cst = arith.constant dense<0.000000e+00> : vector<128x128xf32>
    %4 = tpu.matmul %1, %0, %cst {dimension_numbers = #tpu.dot_dimension_numbers<[1], [0], [0], [1], [0, 0, 1, 1], [], []>} : vector<128x128xf32>, vector<128x128xf32>, vector<128x128xf32> -> vector<128x128xf32>
    %c0_7 = arith.constant 0 : index
    %c0_8 = arith.constant 0 : index
    %c0_9 = arith.constant 0 : index
    %5 = vector.load %arg3[%c0_7, %c0_8, %c0_9] : memref<3x8x128xf32, #tpu.memory_space<vmem>>, vector<1x8x128xf32>
    %6 = vector.shape_cast %5 : vector<1x8x128xf32> to vector<8x128xf32>
    %cst_10 = arith.constant dense<0.000000e+00> : vector<128x128xf32>
    %7 = tpu.matmul %2, %6, %cst_10 {dimension_numbers = #tpu.dot_dimension_numbers<[1], [0], [0], [1], [0, 0, 1, 1], [], []>} : vector<128x8xf32>, vector<8x128xf32>, vector<128x128xf32> -> vector<128x128xf32>
    %8 = arith.addf %4, %7 : vector<128x128xf32>
    %c0_11 = arith.constant 0 : index
    %c0_12 = arith.constant 0 : index
    %c0_13 = arith.constant 0 : index
    %9 = vector.load %arg4[%c0_11, %c0_12, %c0_13] : memref<3x128x128xf32, #tpu.memory_space<vmem>>, vector<1x128x128xf32>
    %10 = vector.shape_cast %9 : vector<1x128x128xf32> to vector<128x128xf32>
    %cst_14 = arith.constant dense<0.000000e+00> : vector<128x128xf32>
    %11 = tpu.matmul %8, %10, %cst_14 {dimension_numbers = #tpu.dot_dimension_numbers<[1], [0], [0], [1], [0, 0, 1, 1], [], []>} : vector<128x128xf32>, vector<128x128xf32>, vector<128x128xf32> -> vector<128x128xf32>
    %c0_15 = arith.constant 0 : index
    %c0_16 = arith.constant 0 : index
    %c0_17 = arith.constant 0 : index
    %12 = vector.load %arg5[%c0_15, %c0_16, %c0_17] : memref<3x1x128xf32, #tpu.memory_space<vmem>>, vector<1x1x128xf32>
    %13 = vector.shape_cast %12 : vector<1x1x128xf32> to vector<1x128xf32>
    %14 = vector.broadcast %13 : vector<1x128xf32> to vector<128x128xf32>
    %15 = arith.addf %11, %14 : vector<128x128xf32>
    %cst_18 = arith.constant 0.000000e+00 : f32
    %16 = vector.broadcast %cst_18 : f32 to vector<128x128xf32>
    %17 = arith.maximumf %15, %16 : vector<128x128xf32>
    %c0_19 = arith.constant 0 : index
    %c0_20 = arith.constant 0 : index
    %c0_21 = arith.constant 0 : index
    %18 = vector.load %arg6[%c0_19, %c0_20, %c0_21] : memref<3x128x128xf32, #tpu.memory_space<vmem>>, vector<1x128x128xf32>
    %19 = vector.shape_cast %18 : vector<1x128x128xf32> to vector<128x128xf32>
    %cst_22 = arith.constant dense<0.000000e+00> : vector<128x128xf32>
    %20 = tpu.matmul %17, %19, %cst_22 {dimension_numbers = #tpu.dot_dimension_numbers<[1], [0], [0], [1], [0, 0, 1, 1], [], []>} : vector<128x128xf32>, vector<128x128xf32>, vector<128x128xf32> -> vector<128x128xf32>
    %c0_23 = arith.constant 0 : index
    %c0_24 = arith.constant 0 : index
    %c0_25 = arith.constant 0 : index
    %21 = vector.load %arg7[%c0_23, %c0_24, %c0_25] : memref<3x1x128xf32, #tpu.memory_space<vmem>>, vector<1x1x128xf32>
    %22 = vector.shape_cast %21 : vector<1x1x128xf32> to vector<1x128xf32>
    %23 = vector.broadcast %22 : vector<1x128xf32> to vector<128x128xf32>
    %24 = arith.addf %20, %23 : vector<128x128xf32>
    %cst_26 = arith.constant dense<0.000000e+00> : vector<1x128xf32>
    %25 = tpu.matmul %3, %24, %cst_26 {dimension_numbers = #tpu.dot_dimension_numbers<[1], [0], [0], [1], [0, 0, 1, 1], [], []>} : vector<1x128xf32>, vector<128x128xf32>, vector<1x128xf32> -> vector<1x128xf32>
    %26 = arith.mulf %24, %24 : vector<128x128xf32>
    %cst_27 = arith.constant dense<0.000000e+00> : vector<1x128xf32>
    %27 = tpu.matmul %3, %26, %cst_27 {dimension_numbers = #tpu.dot_dimension_numbers<[1], [0], [0], [1], [0, 0, 1, 1], [], []>} : vector<1x128xf32>, vector<128x128xf32>, vector<1x128xf32> -> vector<1x128xf32>
    %cst_28 = arith.constant 1.250000e-01 : f32
    %28 = vector.broadcast %cst_28 : f32 to vector<1x128xf32>
    %29 = arith.mulf %25, %28 : vector<1x128xf32>
    %cst_29 = arith.constant 1.250000e-01 : f32
    %30 = vector.broadcast %cst_29 : f32 to vector<1x128xf32>
    %31 = arith.mulf %27, %30 : vector<1x128xf32>
    %32 = arith.mulf %29, %29 : vector<1x128xf32>
    %33 = arith.subf %31, %32 : vector<1x128xf32>
    %c0_30 = arith.constant 0 : index
    %c0_31 = arith.constant 0 : index
    %c0_32 = arith.constant 0 : index
    %34 = vector.load %arg8[%c0_30, %c0_31, %c0_32] : memref<3x1x128xf32, #tpu.memory_space<vmem>>, vector<1x1x128xf32>
    %35 = vector.shape_cast %34 : vector<1x1x128xf32> to vector<1x128xf32>
    %cst_33 = arith.constant 9.99999974E-6 : f32
    %36 = vector.broadcast %cst_33 : f32 to vector<1x128xf32>
    %37 = arith.addf %33, %36 : vector<1x128xf32>
    %38 = math.rsqrt %37 : vector<1x128xf32>
    %39 = arith.mulf %35, %38 : vector<1x128xf32>
    %40 = vector.broadcast %39 : vector<1x128xf32> to vector<128x128xf32>
    %41 = arith.mulf %24, %40 : vector<128x128xf32>
    %c0_34 = arith.constant 0 : index
    %c0_35 = arith.constant 0 : index
    %c0_36 = arith.constant 0 : index
    %42 = vector.load %arg9[%c0_34, %c0_35, %c0_36] : memref<3x1x128xf32, #tpu.memory_space<vmem>>, vector<1x1x128xf32>
    %43 = vector.shape_cast %42 : vector<1x1x128xf32> to vector<1x128xf32>
    %44 = arith.mulf %29, %39 : vector<1x128xf32>
    %45 = arith.subf %43, %44 : vector<1x128xf32>
    %46 = vector.broadcast %45 : vector<1x128xf32> to vector<128x128xf32>
    %47 = arith.addf %41, %46 : vector<128x128xf32>
    %cst_37 = arith.constant 0.000000e+00 : f32
    %48 = vector.broadcast %cst_37 : f32 to vector<128x128xf32>
    %49 = arith.maximumf %47, %48 : vector<128x128xf32>
    %cst_38 = arith.constant dense<0.000000e+00> : vector<128x128xf32>
    %50 = tpu.matmul %1, %49, %cst_38 {dimension_numbers = #tpu.dot_dimension_numbers<[1], [0], [0], [1], [0, 0, 1, 1], [], []>} : vector<128x128xf32>, vector<128x128xf32>, vector<128x128xf32> -> vector<128x128xf32>
    %c1 = arith.constant 1 : index
    %c0_39 = arith.constant 0 : index
    %c0_40 = arith.constant 0 : index
    %51 = vector.load %arg3[%c1, %c0_39, %c0_40] : memref<3x8x128xf32, #tpu.memory_space<vmem>>, vector<1x8x128xf32>
    %52 = vector.shape_cast %51 : vector<1x8x128xf32> to vector<8x128xf32>
    %cst_41 = arith.constant dense<0.000000e+00> : vector<128x128xf32>
    %53 = tpu.matmul %2, %52, %cst_41 {dimension_numbers = #tpu.dot_dimension_numbers<[1], [0], [0], [1], [0, 0, 1, 1], [], []>} : vector<128x8xf32>, vector<8x128xf32>, vector<128x128xf32> -> vector<128x128xf32>
    %54 = arith.addf %50, %53 : vector<128x128xf32>
    %c1_42 = arith.constant 1 : index
    %c0_43 = arith.constant 0 : index
    %c0_44 = arith.constant 0 : index
    %55 = vector.load %arg4[%c1_42, %c0_43, %c0_44] : memref<3x128x128xf32, #tpu.memory_space<vmem>>, vector<1x128x128xf32>
    %56 = vector.shape_cast %55 : vector<1x128x128xf32> to vector<128x128xf32>
    %cst_45 = arith.constant dense<0.000000e+00> : vector<128x128xf32>
    %57 = tpu.matmul %54, %56, %cst_45 {dimension_numbers = #tpu.dot_dimension_numbers<[1], [0], [0], [1], [0, 0, 1, 1], [], []>} : vector<128x128xf32>, vector<128x128xf32>, vector<128x128xf32> -> vector<128x128xf32>
    %c1_46 = arith.constant 1 : index
    %c0_47 = arith.constant 0 : index
    %c0_48 = arith.constant 0 : index
    %58 = vector.load %arg5[%c1_46, %c0_47, %c0_48] : memref<3x1x128xf32, #tpu.memory_space<vmem>>, vector<1x1x128xf32>
    %59 = vector.shape_cast %58 : vector<1x1x128xf32> to vector<1x128xf32>
    %60 = vector.broadcast %59 : vector<1x128xf32> to vector<128x128xf32>
    %61 = arith.addf %57, %60 : vector<128x128xf32>
    %cst_49 = arith.constant 0.000000e+00 : f32
    %62 = vector.broadcast %cst_49 : f32 to vector<128x128xf32>
    %63 = arith.maximumf %61, %62 : vector<128x128xf32>
    %c1_50 = arith.constant 1 : index
    %c0_51 = arith.constant 0 : index
    %c0_52 = arith.constant 0 : index
    %64 = vector.load %arg6[%c1_50, %c0_51, %c0_52] : memref<3x128x128xf32, #tpu.memory_space<vmem>>, vector<1x128x128xf32>
    %65 = vector.shape_cast %64 : vector<1x128x128xf32> to vector<128x128xf32>
    %cst_53 = arith.constant dense<0.000000e+00> : vector<128x128xf32>
    %66 = tpu.matmul %63, %65, %cst_53 {dimension_numbers = #tpu.dot_dimension_numbers<[1], [0], [0], [1], [0, 0, 1, 1], [], []>} : vector<128x128xf32>, vector<128x128xf32>, vector<128x128xf32> -> vector<128x128xf32>
    %c1_54 = arith.constant 1 : index
    %c0_55 = arith.constant 0 : index
    %c0_56 = arith.constant 0 : index
    %67 = vector.load %arg7[%c1_54, %c0_55, %c0_56] : memref<3x1x128xf32, #tpu.memory_space<vmem>>, vector<1x1x128xf32>
    %68 = vector.shape_cast %67 : vector<1x1x128xf32> to vector<1x128xf32>
    %69 = vector.broadcast %68 : vector<1x128xf32> to vector<128x128xf32>
    %70 = arith.addf %66, %69 : vector<128x128xf32>
    %cst_57 = arith.constant dense<0.000000e+00> : vector<1x128xf32>
    %71 = tpu.matmul %3, %70, %cst_57 {dimension_numbers = #tpu.dot_dimension_numbers<[1], [0], [0], [1], [0, 0, 1, 1], [], []>} : vector<1x128xf32>, vector<128x128xf32>, vector<1x128xf32> -> vector<1x128xf32>
    %72 = arith.mulf %70, %70 : vector<128x128xf32>
    %cst_58 = arith.constant dense<0.000000e+00> : vector<1x128xf32>
    %73 = tpu.matmul %3, %72, %cst_58 {dimension_numbers = #tpu.dot_dimension_numbers<[1], [0], [0], [1], [0, 0, 1, 1], [], []>} : vector<1x128xf32>, vector<128x128xf32>, vector<1x128xf32> -> vector<1x128xf32>
    %cst_59 = arith.constant 1.250000e-01 : f32
    %74 = vector.broadcast %cst_59 : f32 to vector<1x128xf32>
    %75 = arith.mulf %71, %74 : vector<1x128xf32>
    %cst_60 = arith.constant 1.250000e-01 : f32
    %76 = vector.broadcast %cst_60 : f32 to vector<1x128xf32>
    %77 = arith.mulf %73, %76 : vector<1x128xf32>
    %78 = arith.mulf %75, %75 : vector<1x128xf32>
    %79 = arith.subf %77, %78 : vector<1x128xf32>
    %c1_61 = arith.constant 1 : index
    %c0_62 = arith.constant 0 : index
    %c0_63 = arith.constant 0 : index
    %80 = vector.load %arg8[%c1_61, %c0_62, %c0_63] : memref<3x1x128xf32, #tpu.memory_space<vmem>>, vector<1x1x128xf32>
    %81 = vector.shape_cast %80 : vector<1x1x128xf32> to vector<1x128xf32>
    %cst_64 = arith.constant 9.99999974E-6 : f32
    %82 = vector.broadcast %cst_64 : f32 to vector<1x128xf32>
    %83 = arith.addf %79, %82 : vector<1x128xf32>
    %84 = math.rsqrt %83 : vector<1x128xf32>
    %85 = arith.mulf %81, %84 : vector<1x128xf32>
    %86 = vector.broadcast %85 : vector<1x128xf32> to vector<128x128xf32>
    %87 = arith.mulf %70, %86 : vector<128x128xf32>
    %c1_65 = arith.constant 1 : index
    %c0_66 = arith.constant 0 : index
    %c0_67 = arith.constant 0 : index
    %88 = vector.load %arg9[%c1_65, %c0_66, %c0_67] : memref<3x1x128xf32, #tpu.memory_space<vmem>>, vector<1x1x128xf32>
    %89 = vector.shape_cast %88 : vector<1x1x128xf32> to vector<1x128xf32>
    %90 = arith.mulf %75, %85 : vector<1x128xf32>
    %91 = arith.subf %89, %90 : vector<1x128xf32>
    %92 = vector.broadcast %91 : vector<1x128xf32> to vector<128x128xf32>
    %93 = arith.addf %87, %92 : vector<128x128xf32>
    %cst_68 = arith.constant 0.000000e+00 : f32
    %94 = vector.broadcast %cst_68 : f32 to vector<128x128xf32>
    %95 = arith.maximumf %93, %94 : vector<128x128xf32>
    %cst_69 = arith.constant dense<0.000000e+00> : vector<128x128xf32>
    %96 = tpu.matmul %1, %95, %cst_69 {dimension_numbers = #tpu.dot_dimension_numbers<[1], [0], [0], [1], [0, 0, 1, 1], [], []>} : vector<128x128xf32>, vector<128x128xf32>, vector<128x128xf32> -> vector<128x128xf32>
    %c2 = arith.constant 2 : index
    %c0_70 = arith.constant 0 : index
    %c0_71 = arith.constant 0 : index
    %97 = vector.load %arg3[%c2, %c0_70, %c0_71] : memref<3x8x128xf32, #tpu.memory_space<vmem>>, vector<1x8x128xf32>
    %98 = vector.shape_cast %97 : vector<1x8x128xf32> to vector<8x128xf32>
    %cst_72 = arith.constant dense<0.000000e+00> : vector<128x128xf32>
    %99 = tpu.matmul %2, %98, %cst_72 {dimension_numbers = #tpu.dot_dimension_numbers<[1], [0], [0], [1], [0, 0, 1, 1], [], []>} : vector<128x8xf32>, vector<8x128xf32>, vector<128x128xf32> -> vector<128x128xf32>
    %100 = arith.addf %96, %99 : vector<128x128xf32>
    %c2_73 = arith.constant 2 : index
    %c0_74 = arith.constant 0 : index
    %c0_75 = arith.constant 0 : index
    %101 = vector.load %arg4[%c2_73, %c0_74, %c0_75] : memref<3x128x128xf32, #tpu.memory_space<vmem>>, vector<1x128x128xf32>
    %102 = vector.shape_cast %101 : vector<1x128x128xf32> to vector<128x128xf32>
    %cst_76 = arith.constant dense<0.000000e+00> : vector<128x128xf32>
    %103 = tpu.matmul %100, %102, %cst_76 {dimension_numbers = #tpu.dot_dimension_numbers<[1], [0], [0], [1], [0, 0, 1, 1], [], []>} : vector<128x128xf32>, vector<128x128xf32>, vector<128x128xf32> -> vector<128x128xf32>
    %c2_77 = arith.constant 2 : index
    %c0_78 = arith.constant 0 : index
    %c0_79 = arith.constant 0 : index
    %104 = vector.load %arg5[%c2_77, %c0_78, %c0_79] : memref<3x1x128xf32, #tpu.memory_space<vmem>>, vector<1x1x128xf32>
    %105 = vector.shape_cast %104 : vector<1x1x128xf32> to vector<1x128xf32>
    %106 = vector.broadcast %105 : vector<1x128xf32> to vector<128x128xf32>
    %107 = arith.addf %103, %106 : vector<128x128xf32>
    %cst_80 = arith.constant 0.000000e+00 : f32
    %108 = vector.broadcast %cst_80 : f32 to vector<128x128xf32>
    %109 = arith.maximumf %107, %108 : vector<128x128xf32>
    %c2_81 = arith.constant 2 : index
    %c0_82 = arith.constant 0 : index
    %c0_83 = arith.constant 0 : index
    %110 = vector.load %arg6[%c2_81, %c0_82, %c0_83] : memref<3x128x128xf32, #tpu.memory_space<vmem>>, vector<1x128x128xf32>
    %111 = vector.shape_cast %110 : vector<1x128x128xf32> to vector<128x128xf32>
    %cst_84 = arith.constant dense<0.000000e+00> : vector<128x128xf32>
    %112 = tpu.matmul %109, %111, %cst_84 {dimension_numbers = #tpu.dot_dimension_numbers<[1], [0], [0], [1], [0, 0, 1, 1], [], []>} : vector<128x128xf32>, vector<128x128xf32>, vector<128x128xf32> -> vector<128x128xf32>
    %c2_85 = arith.constant 2 : index
    %c0_86 = arith.constant 0 : index
    %c0_87 = arith.constant 0 : index
    %113 = vector.load %arg7[%c2_85, %c0_86, %c0_87] : memref<3x1x128xf32, #tpu.memory_space<vmem>>, vector<1x1x128xf32>
    %114 = vector.shape_cast %113 : vector<1x1x128xf32> to vector<1x128xf32>
    %115 = vector.broadcast %114 : vector<1x128xf32> to vector<128x128xf32>
    %116 = arith.addf %112, %115 : vector<128x128xf32>
    %cst_88 = arith.constant dense<0.000000e+00> : vector<1x128xf32>
    %117 = tpu.matmul %3, %116, %cst_88 {dimension_numbers = #tpu.dot_dimension_numbers<[1], [0], [0], [1], [0, 0, 1, 1], [], []>} : vector<1x128xf32>, vector<128x128xf32>, vector<1x128xf32> -> vector<1x128xf32>
    %118 = arith.mulf %116, %116 : vector<128x128xf32>
    %cst_89 = arith.constant dense<0.000000e+00> : vector<1x128xf32>
    %119 = tpu.matmul %3, %118, %cst_89 {dimension_numbers = #tpu.dot_dimension_numbers<[1], [0], [0], [1], [0, 0, 1, 1], [], []>} : vector<1x128xf32>, vector<128x128xf32>, vector<1x128xf32> -> vector<1x128xf32>
    %cst_90 = arith.constant 1.250000e-01 : f32
    %120 = vector.broadcast %cst_90 : f32 to vector<1x128xf32>
    %121 = arith.mulf %117, %120 : vector<1x128xf32>
    %cst_91 = arith.constant 1.250000e-01 : f32
    %122 = vector.broadcast %cst_91 : f32 to vector<1x128xf32>
    %123 = arith.mulf %119, %122 : vector<1x128xf32>
    %124 = arith.mulf %121, %121 : vector<1x128xf32>
    %125 = arith.subf %123, %124 : vector<1x128xf32>
    %c2_92 = arith.constant 2 : index
    %c0_93 = arith.constant 0 : index
    %c0_94 = arith.constant 0 : index
    %126 = vector.load %arg8[%c2_92, %c0_93, %c0_94] : memref<3x1x128xf32, #tpu.memory_space<vmem>>, vector<1x1x128xf32>
    %127 = vector.shape_cast %126 : vector<1x1x128xf32> to vector<1x128xf32>
    %cst_95 = arith.constant 9.99999974E-6 : f32
    %128 = vector.broadcast %cst_95 : f32 to vector<1x128xf32>
    %129 = arith.addf %125, %128 : vector<1x128xf32>
    %130 = math.rsqrt %129 : vector<1x128xf32>
    %131 = arith.mulf %127, %130 : vector<1x128xf32>
    %132 = vector.broadcast %131 : vector<1x128xf32> to vector<128x128xf32>
    %133 = arith.mulf %116, %132 : vector<128x128xf32>
    %c2_96 = arith.constant 2 : index
    %c0_97 = arith.constant 0 : index
    %c0_98 = arith.constant 0 : index
    %134 = vector.load %arg9[%c2_96, %c0_97, %c0_98] : memref<3x1x128xf32, #tpu.memory_space<vmem>>, vector<1x1x128xf32>
    %135 = vector.shape_cast %134 : vector<1x1x128xf32> to vector<1x128xf32>
    %136 = arith.mulf %121, %131 : vector<1x128xf32>
    %137 = arith.subf %135, %136 : vector<1x128xf32>
    %138 = vector.broadcast %137 : vector<1x128xf32> to vector<128x128xf32>
    %139 = arith.addf %133, %138 : vector<128x128xf32>
    %c0_99 = arith.constant 0 : index
    %c0_100 = arith.constant 0 : index
    %140 = vector.load %arg11[%c0_99, %c0_100] : memref<128x128xf32, #tpu.memory_space<vmem>>, vector<128x128xf32>
    %cst_101 = arith.constant dense<0.000000e+00> : vector<128x128xf32>
    %141 = tpu.matmul %139, %140, %cst_101 {dimension_numbers = #tpu.dot_dimension_numbers<[1], [0], [0], [1], [0, 0, 1, 1], [], []>} : vector<128x128xf32>, vector<128x128xf32>, vector<128x128xf32> -> vector<128x128xf32>
    %c0_102 = arith.constant 0 : index
    %c0_103 = arith.constant 0 : index
    %142 = vector.load %arg12[%c0_102, %c0_103] : memref<1x128xf32, #tpu.memory_space<vmem>>, vector<1x128xf32>
    %143 = vector.broadcast %142 : vector<1x128xf32> to vector<128x128xf32>
    %144 = arith.addf %141, %143 : vector<128x128xf32>
    %c0_104 = arith.constant 0 : index
    %c0_105 = arith.constant 0 : index
    %145 = vector.load %arg13[%c0_104, %c0_105] : memref<128x128xf32, #tpu.memory_space<vmem>>, vector<128x128xf32>
    tpu.vector_store %arg13[%c0_104, %c0_105], %144 {strides = array<i32>} : memref<128x128xf32, #tpu.memory_space<vmem>>, vector<128x128xf32>,
    return
  }
}

</mosaic_0001>

<llo_original>
// kernel: tpu_custom_call.1
$region0: #{tpu_custom_call.1}
  #allocation0 [shape = 'u32[]', space=smem, size = 0x4, offset = 0x4, fixed_abs, tag = 'smem constant byte address 0x4 - core index']
  #allocation1 [shape = 'u32[144,128]{1,0:T(1,128)}', space=vmem, size = 0x12000, scoped, tag = 'internal scratch']
  %s0 = inlined_call_operand.vmem [shape: f32[128,128], index: 0, kind: input, shape index: {}]
  %s1 = inlined_call_operand.hbm [shape: f32[128,128], index: 1, kind: input, shape index: {}]
  %s2 = inlined_call_operand.vmem [shape: f32[128,8], index: 2, kind: input, shape index: {}]
  %s3 = inlined_call_operand.hbm [shape: f32[3,8,128], index: 3, kind: input, shape index: {}]
  %s4 = inlined_call_operand.hbm [shape: f32[3,128,128], index: 4, kind: input, shape index: {}]
  %s5 = inlined_call_operand.vmem [shape: f32[3,1,128], index: 5, kind: input, shape index: {}]
  %s6 = inlined_call_operand.hbm [shape: f32[3,128,128], index: 6, kind: input, shape index: {}]
  %s7 = inlined_call_operand.vmem [shape: f32[3,1,128], index: 7, kind: input, shape index: {}]
  %s8 = inlined_call_operand.vmem [shape: f32[3,1,128], index: 8, kind: input, shape index: {}]
  %s9 = inlined_call_operand.vmem [shape: f32[3,1,128], index: 9, kind: input, shape index: {}]
  %s10 = inlined_call_operand.vmem [shape: f32[1,128], index: 10, kind: input, shape index: {}]
  %s11 = inlined_call_operand.hbm [shape: f32[128,128], index: 11, kind: input, shape index: {}]
  %s12 = inlined_call_operand.vmem [shape: f32[1,128], index: 12, kind: input, shape index: {}]
  %s13 = inlined_call_operand.hbm [shape: f32[128,128], index: 13, kind: output, shape index: {}]
  %s14 = sld [smem:[#allocation0]]
  $region82: #{tpu_custom_call.1} parent=0
    _
  %s16 = ssub.s32 1, %s14
  %s17 = scalar_select 0, %s16, %s14
  $region1: #{tpu_custom_call.1} parent=0
    #allocation2 [shape = 'u8[65536]{0}', space=vmem, size = 0x10000, scoped, tag = 'input window, operand 1, single buffered']
    #allocation3 [shape = 's32[1]{0}', space=sflag, size = 0x4, scoped, tag = 'scoped memory for tpu_custom_call.1']
    #allocation4 [shape = 's32[1]{0}', space=sflag, size = 0x4, scoped, tag = 'scoped memory for tpu_custom_call.1']
    #allocation5 [shape = 'u8[12288]{0}', space=vmem, size = 0x3000, scoped, tag = 'input window, operand 3, single buffered']
    #allocation6 [shape = 's32[1]{0}', space=sflag, size = 0x4, scoped, tag = 'scoped memory for tpu_custom_call.1']
    #allocation7 [shape = 'u8[196608]{0}', space=vmem, size = 0x30000, scoped, tag = 'input window, operand 4, single buffered']
    #allocation8 [shape = 'u8[196608]{0}', space=vmem, size = 0x30000, scoped, tag = 'input window, operand 6, single buffered']
    #allocation9 [shape = 's32[1]{0}', space=sflag, size = 0x4, scoped, tag = 'scoped memory for tpu_custom_call.1']
    #allocation10 [shape = 'u8[65536]{0}', space=vmem, size = 0x10000, scoped, tag = 'input window, operand 11, single buffered']
    #allocation11 [shape = 'u8[65536]{0}', space=vmem, size = 0x10000, scoped, tag = 'output window, operand 0, single buffered']
    %18 = vsyncpa [#allocation3], 0
    %19 = vsyncpa [#allocation6], 0
    %20 = vsyncpa [#allocation9], 0
    %21 = vsyncpa [#allocation4], 0
    // Predicated region
    $region2: #{tpu_custom_call.1} parent=1 // pred_check
      _
    $region3: #{tpu_custom_call.1} parent=1 // pred_check_branch
      %23 = sbr.rel (0) target = $region5
    $region4: #{tpu_custom_call.1} parent=1 // pred_region
      _
    $region5: #{tpu_custom_call.1} parent=1 // pred_fallthru
      _
    // Predicated region
    $region6: #{tpu_custom_call.1} parent=1 // pred_check
      _
    $region7: #{tpu_custom_call.1} parent=1 // pred_check_branch
      %25 = sbr.rel (0) target = $region9
    $region8: #{tpu_custom_call.1} parent=1 // pred_region
      %s27 = ssub.s32 2048, 2048
      %28 = vsyncadd [#allocation3], %s27
      %s29 = sshll.u32 [#allocation2], 4
      %s30 = int_to_ptr.vmem [resolvable:$true] %s29
      %35 = dma.hbm_to_vmem [thread:$0]  %s1, 2048, %s30, [#allocation3], 128, 128, 8
    $region9: #{tpu_custom_call.1} parent=1 // pred_fallthru
      _
    // Predicated region
    $region10: #{tpu_custom_call.1} parent=1 // pred_check
      _
    $region11: #{tpu_custom_call.1} parent=1 // pred_check_branch
      %37 = sbr.rel (0) target = $region13
    $region12: #{tpu_custom_call.1} parent=1 // pred_region
      _
    $region13: #{tpu_custom_call.1} parent=1 // pred_fallthru
      _
    // Predicated region
    $region14: #{tpu_custom_call.1} parent=1 // pred_check
      _
    $region15: #{tpu_custom_call.1} parent=1 // pred_check_branch
      %39 = sbr.rel (0) target = $region17
    $region16: #{tpu_custom_call.1} parent=1 // pred_region
      %s41 = ssub.s32 384, 384
      %42 = vsyncadd [#allocation6], %s41
      %s43 = sshll.u32 [#allocation5], 4
      %s44 = int_to_ptr.vmem [resolvable:$true] %s43
      %49 = dma.hbm_to_vmem [thread:$0]  %s3, 384, %s44, [#allocation6], 128, 128, 8
    $region17: #{tpu_custom_call.1} parent=1 // pred_fallthru
      _
    // Predicated region
    $region18: #{tpu_custom_call.1} parent=1 // pred_check
      _
    $region19: #{tpu_custom_call.1} parent=1 // pred_check_branch
      %51 = sbr.rel (0) target = $region21
    $region20: #{tpu_custom_call.1} parent=1 // pred_region
      %s53 = ssub.s32 6144, 6144
      %54 = vsyncadd [#allocation6], %s53
      %s55 = sshll.u32 [#allocation7], 4
      %s56 = int_to_ptr.vmem [resolvable:$true] %s55
      %61 = dma.hbm_to_vmem [thread:$0]  %s4, 6144, %s56, [#allocation6], 128, 128, 8
    $region21: #{tpu_custom_call.1} parent=1 // pred_fallthru
      _
    // Predicated region
    $region22: #{tpu_custom_call.1} parent=1 // pred_check
      _
    $region23: #{tpu_custom_call.1} parent=1 // pred_check_branch
      %63 = sbr.rel (0) target = $region25
    $region24: #{tpu_custom_call.1} parent=1 // pred_region
      _
    $region25: #{tpu_custom_call.1} parent=1 // pred_fallthru
      _
    // Predicated region
    $region26: #{tpu_custom_call.1} parent=1 // pred_check
      _
    $region27: #{tpu_custom_call.1} parent=1 // pred_check_branch
      %65 = sbr.rel (0) target = $region29
    $region28: #{tpu_custom_call.1} parent=1 // pred_region
      %s67 = ssub.s32 6144, 6144
      %68 = vsyncadd [#allocation9], %s67
      %s69 = sshll.u32 [#allocation8], 4
      %s70 = int_to_ptr.vmem [resolvable:$true] %s69
      %75 = dma.hbm_to_vmem [thread:$0]  %s6, 6144, %s70, [#allocation9], 128, 128, 8
    $region29: #{tpu_custom_call.1} parent=1 // pred_fallthru
      _
    // Predicated region
    $region30: #{tpu_custom_call.1} parent=1 // pred_check
      _
    $region31: #{tpu_custom_call.1} parent=1 // pred_check_branch
      %77 = sbr.rel (0) target = $region33
    $region32: #{tpu_custom_call.1} parent=1 // pred_region
      _
    $region33: #{tpu_custom_call.1} parent=1 // pred_fallthru
      _
    // Predicated region
    $region34: #{tpu_custom_call.1} parent=1 // pred_check
      _
    $region35: #{tpu_custom_call.1} parent=1 // pred_check_branch
      %79 = sbr.rel (0) target = $region37
    $region36: #{tpu_custom_call.1} parent=1 // pred_region
      _
    $region37: #{tpu_custom_call.1} parent=1 // pred_fallthru
      _
    // Predicated region
    $region38: #{tpu_custom_call.1} parent=1 // pred_check
      _
    $region39: #{tpu_custom_call.1} parent=1 // pred_check_branch
      %81 = sbr.rel (0) target = $region41
    $region40: #{tpu_custom_call.1} parent=1 // pred_region
      _
    $region41: #{tpu_custom_call.1} parent=1 // pred_fallthru
      _
    // Predicated region
    $region42: #{tpu_custom_call.1} parent=1 // pred_check
      _
    $region43: #{tpu_custom_call.1} parent=1 // pred_check_branch
      %83 = sbr.rel (0) target = $region45
    $region44: #{tpu_custom_call.1} parent=1 // pred_region
      _
    $region45: #{tpu_custom_call.1} parent=1 // pred_fallthru
      _
    // Predicated region
    $region46: #{tpu_custom_call.1} parent=1 // pred_check
      _
    $region47: #{tpu_custom_call.1} parent=1 // pred_check_branch
      %85 = sbr.rel (0) target = $region49
    $region48: #{tpu_custom_call.1} parent=1 // pred_region
      %s87 = ssub.s32 2048, 2048
      %88 = vsyncadd [#allocation9], %s87
      %s89 = sshll.u32 [#allocation10], 4
      %s90 = int_to_ptr.vmem [resolvable:$true] %s89
      %95 = dma.hbm_to_vmem [thread:$0]  %s11, 2048, %s90, [#allocation9], 128, 128, 8
    $region49: #{tpu_custom_call.1} parent=1 // pred_fallthru
      _
    // Predicated region
    $region50: #{tpu_custom_call.1} parent=1 // pred_check
      _
    $region51: #{tpu_custom_call.1} parent=1 // pred_check_branch
      %97 = sbr.rel (0) target = $region53
    $region52: #{tpu_custom_call.1} parent=1 // pred_region
      _
    $region53: #{tpu_custom_call.1} parent=1 // pred_fallthru
      _
    // Predicated region
    $region54: #{tpu_custom_call.1} parent=1 // pred_check
      _
    $region55: #{tpu_custom_call.1} parent=1 // pred_check_branch
      %99 = sbr.rel (0) target = $region57
    $region56: #{tpu_custom_call.1} parent=1 // pred_region
      %100 = dma.done [#allocation3], 2048
    $region57: #{tpu_custom_call.1} parent=1 // pred_fallthru
      _
    // Predicated region
    $region58: #{tpu_custom_call.1} parent=1 // pred_check
      _
    $region59: #{tpu_custom_call.1} parent=1 // pred_check_branch
      %102 = sbr.rel (0) target = $region61
    $region60: #{tpu_custom_call.1} parent=1 // pred_region
      %103 = dma.done [#allocation6], 384
    $region61: #{tpu_custom_call.1} parent=1 // pred_fallthru
      _
    // Predicated region
    $region62: #{tpu_custom_call.1} parent=1 // pred_check
      _
    $region63: #{tpu_custom_call.1} parent=1 // pred_check_branch
      %105 = sbr.rel (0) target = $region65
    $region64: #{tpu_custom_call.1} parent=1 // pred_region
      %106 = dma.done [#allocation6], 6144
    $region65: #{tpu_custom_call.1} parent=1 // pred_fallthru
      _
    // Predicated region
    $region66: #{tpu_custom_call.1} parent=1 // pred_check
      _
    $region67: #{tpu_custom_call.1} parent=1 // pred_check_branch
      %108 = sbr.rel (0) target = $region69
    $region68: #{tpu_custom_call.1} parent=1 // pred_region
      %109 = dma.done [#allocation9], 6144
    $region69: #{tpu_custom_call.1} parent=1 // pred_fallthru
      _
    // Predicated region
    $region70: #{tpu_custom_call.1} parent=1 // pred_check
      _
    $region71: #{tpu_custom_call.1} parent=1 // pred_check_branch
      %111 = sbr.rel (0) target = $region73
    $region72: #{tpu_custom_call.1} parent=1 // pred_region
      %112 = dma.done [#allocation9], 2048
    $region73: #{tpu_custom_call.1} parent=1 // pred_fallthru
      _
    %v113 = vld [vmem:[%s0] sm:$0xff]
    %v114 = vld [vmem:[%s0 + $0x8] sm:$0xff]
    %v115 = vld [vmem:[%s0 + $0x10] sm:$0xff]
    %v116 = vld [vmem:[%s0 + $0x18] sm:$0xff]
    %v117 = vld [vmem:[%s0 + $0x20] sm:$0xff]
    %v118 = vld [vmem:[%s0 + $0x28] sm:$0xff]
    %v119 = vld [vmem:[%s0 + $0x30] sm:$0xff]
    %v120 = vld [vmem:[%s0 + $0x38] sm:$0xff]
    %v121 = vld [vmem:[%s0 + $0x40] sm:$0xff]
    %v122 = vld [vmem:[%s0 + $0x48] sm:$0xff]
    %v123 = vld [vmem:[%s0 + $0x50] sm:$0xff]
    %v124 = vld [vmem:[%s0 + $0x58] sm:$0xff]
    %v125 = vld [vmem:[%s0 + $0x60] sm:$0xff]
    %v126 = vld [vmem:[%s0 + $0x68] sm:$0xff]
    %v127 = vld [vmem:[%s0 + $0x70] sm:$0xff]
    %v128 = vld [vmem:[%s0 + $0x78] sm:$0xff]
    %v129 = vld [vmem:[#allocation2] sm:$0xff]
    %v130 = vld [vmem:[#allocation2 + $0x8] sm:$0xff]
    %v131 = vld [vmem:[#allocation2 + $0x10] sm:$0xff]
    %v132 = vld [vmem:[#allocation2 + $0x18] sm:$0xff]
    %v133 = vld [vmem:[#allocation2 + $0x20] sm:$0xff]
    %v134 = vld [vmem:[#allocation2 + $0x28] sm:$0xff]
    %v135 = vld [vmem:[#allocation2 + $0x30] sm:$0xff]
    %v136 = vld [vmem:[#allocation2 + $0x38] sm:$0xff]
    %v137 = vld [vmem:[#allocation2 + $0x40] sm:$0xff]
    %v138 = vld [vmem:[#allocation2 + $0x48] sm:$0xff]
    %v139 = vld [vmem:[#allocation2 + $0x50] sm:$0xff]
    %v140 = vld [vmem:[#allocation2 + $0x58] sm:$0xff]
    %v141 = vld [vmem:[#allocation2 + $0x60] sm:$0xff]
    %v142 = vld [vmem:[#allocation2 + $0x68] sm:$0xff]
    %v143 = vld [vmem:[#allocation2 + $0x70] sm:$0xff]
    %v144 = vld [vmem:[#allocation2 + $0x78] sm:$0xff]
    %v145 = vld [vmem:[%s2] sm:$0xff]
    %v146 = vld [vmem:[%s2 + $0x8] sm:$0xff]
    %v147 = vld [vmem:[%s2 + $0x10] sm:$0xff]
    %v148 = vld [vmem:[%s2 + $0x18] sm:$0xff]
    %v149 = vld [vmem:[%s2 + $0x20] sm:$0xff]
    %v150 = vld [vmem:[%s2 + $0x28] sm:$0xff]
    %v151 = vld [vmem:[%s2 + $0x30] sm:$0xff]
    %v152 = vld [vmem:[%s2 + $0x38] sm:$0xff]
    %v153 = vld [vmem:[%s2 + $0x40] sm:$0xff]
    %v154 = vld [vmem:[%s2 + $0x48] sm:$0xff]
    %v155 = vld [vmem:[%s2 + $0x50] sm:$0xff]
    %v156 = vld [vmem:[%s2 + $0x58] sm:$0xff]
    %v157 = vld [vmem:[%s2 + $0x60] sm:$0xff]
    %v158 = vld [vmem:[%s2 + $0x68] sm:$0xff]
    %v159 = vld [vmem:[%s2 + $0x70] sm:$0xff]
    %v160 = vld [vmem:[%s2 + $0x78] sm:$0xff]
    %v161 = vld [vmem:[%s10] sm:$0x1]
    %v162 = vld [vmem:[#allocation5] sm:$0xff]
    %vm163 = vcmask 64512
    %v165 = vsel %vm163, %v145, 0
    %v168 = vsel %vm163, %v146, 0
    %v171 = vsel %vm163, %v147, 0
    %v174 = vsel %vm163, %v148, 0
    %v177 = vsel %vm163, %v149, 0
    %v180 = vsel %vm163, %v150, 0
    %v183 = vsel %vm163, %v151, 0
    %v186 = vsel %vm163, %v152, 0
    %v189 = vsel %vm163, %v153, 0
    %v192 = vsel %vm163, %v154, 0
    %v195 = vsel %vm163, %v155, 0
    %v198 = vsel %vm163, %v156, 0
    %v201 = vsel %vm163, %v157, 0
    %v204 = vsel %vm163, %v158, 0
    %v207 = vsel %vm163, %v159, 0
    %v210 = vsel %vm163, %v160, 0
    %212 = vmatprep.subr.mxu0 0.0
    %213 = vmatpush1.msra.mxu0 %v162
    %214 = vmatprep.subr.mxu0 0.0
    %215 = vmatpush1.msra.mxu0 0.0
    %216 = vmatprep.subr.mxu0 0.0
    %217 = vmatpush1.msra.mxu0 0.0
    %218 = vmatprep.subr.mxu0 0.0
    %219 = vmatpush1.msra.mxu0 0.0
    %220 = vmatprep.subr.mxu0 0.0
    %221 = vmatpush1.msra.mxu0 0.0
    %222 = vmatprep.subr.mxu0 0.0
    %223 = vmatpush1.msra.mxu0 0.0
    %224 = vmatprep.subr.mxu0 0.0
    %225 = vmatpush1.msra.mxu0 0.0
    %226 = vmatprep.subr.mxu0 0.0
    %227 = vmatpush1.msra.mxu0 0.0
    %228 = vmatprep.subr.mxu0 0.0
    %229 = vmatpush1.msra.mxu0 0.0
    %230 = vmatprep.subr.mxu0 0.0
    %231 = vmatpush1.msra.mxu0 0.0
    %232 = vmatprep.subr.mxu0 0.0
    %233 = vmatpush1.msra.mxu0 0.0
    %234 = vmatprep.subr.mxu0 0.0
    %235 = vmatpush1.msra.mxu0 0.0
    %236 = vmatprep.subr.mxu0 0.0
    %237 = vmatpush1.msra.mxu0 0.0
    %238 = vmatprep.subr.mxu0 0.0
    %239 = vmatpush1.msra.mxu0 0.0
    %240 = vmatprep.subr.mxu0 0.0
    %241 = vmatpush1.msra.mxu0 0.0
    %242 = vmatprep.subr.mxu0 0.0
    %243 = vmatpush1.msra.mxu0 0.0
    %244 = vmatprep.subr.mxu0 0.0
    %245 = vmatpush1.msra.mxu0 0.0
    %246 = vmatprep.subr.mxu0 0.0
    %247 = vmatpush1.msra.mxu0 0.0
    %248 = vmatprep.subr.mxu0 0.0
    %249 = vmatpush1.msra.mxu0 0.0
    %250 = vmatprep.subr.mxu0 0.0
    %251 = vmatpush1.msra.mxu0 0.0
    %252 = vmatprep.subr.mxu0 0.0
    %253 = vmatpush1.msra.mxu0 0.0
    %254 = vmatprep.subr.mxu0 0.0
    %255 = vmatpush1.msra.mxu0 0.0
    %256 = vmatprep.subr.mxu0 0.0
    %257 = vmatpush1.msra.mxu0 0.0
    %258 = vmatprep.subr.mxu0 0.0
    %259 = vmatpush1.msra.mxu0 0.0
    %260 = vmatprep.subr.mxu0 0.0
    %261 = vmatpush1.msra.mxu0 0.0
    %262 = vmatprep.subr.mxu0 0.0
    %263 = vmatpush1.msra.mxu0 0.0
    %264 = vmatprep.subr.mxu0 0.0
    %265 = vmatpush1.msra.mxu0 0.0
    %266 = vmatprep.subr.mxu0 0.0
    %267 = vmatpush1.msra.mxu0 0.0
    %268 = vmatprep.subr.mxu0 0.0
    %269 = vmatpush1.msra.mxu0 0.0
    %270 = vmatprep.subr.mxu0 0.0
    %271 = vmatpush1.msra.mxu0 0.0
    %272 = vmatprep.subr.mxu0 0.0
    %273 = vmatpush1.msra.mxu0 0.0
    %274 = vmatprep.subr.mxu0 0.0
    %275 = vmatpush1.msra.mxu0 0.0
    %276 = vmatprep.mubr.f32.mxu0 0.0
    %277 = vmatmul.mubr.f32.gmra.mrb[0].mxu0 %v165
    %v278 = vpop.f32.mrb[0].mxu0
    %v279 = vadd.f32 0.0, %v278
    %v280 = vpop.f32.mrb[0].mxu0
    %281 = vmatprep.mubr.f32.mxu0 0.0
    %282 = vmatmul.mubr.f32.gmra.mrb[0].mxu0 %v168
    %v283 = vpop.f32.mrb[0].mxu0
    %v284 = vadd.f32 0.0, %v283
    %v285 = vpop.f32.mrb[0].mxu0
    %286 = vmatprep.mubr.f32.mxu0 0.0
    %287 = vmatmul.mubr.f32.gmra.mrb[0].mxu0 %v171
    %v288 = vpop.f32.mrb[0].mxu0
    %v289 = vadd.f32 0.0, %v288
    %v290 = vpop.f32.mrb[0].mxu0
    %291 = vmatprep.mubr.f32.mxu0 0.0
    %292 = vmatmul.mubr.f32.gmra.mrb[0].mxu0 %v174
    %v293 = vpop.f32.mrb[0].mxu0
    %v294 = vadd.f32 0.0, %v293
    %v295 = vpop.f32.mrb[0].mxu0
    %296 = vmatprep.mubr.f32.mxu0 0.0
    %297 = vmatmul.mubr.f32.gmra.mrb[0].mxu0 %v177
    %v298 = vpop.f32.mrb[0].mxu0
    %v299 = vadd.f32 0.0, %v298
    %v300 = vpop.f32.mrb[0].mxu0
    %301 = vmatprep.mubr.f32.mxu0 0.0
    %302 = vmatmul.mubr.f32.gmra.mrb[0].mxu0 %v180
    %v303 = vpop.f32.mrb[0].mxu0
    %v304 = vadd.f32 0.0, %v303
    %v305 = vpop.f32.mrb[0].mxu0
    %306 = vmatprep.mubr.f32.mxu0 0.0
    %307 = vmatmul.mubr.f32.gmra.mrb[0].mxu0 %v183
    %v308 = vpop.f32.mrb[0].mxu0
    %v309 = vadd.f32 0.0, %v308
    %v310 = vpop.f32.mrb[0].mxu0
    %311 = vmatprep.mubr.f32.mxu0 0.0
    %312 = vmatmul.mubr.f32.gmra.mrb[0].mxu0 %v186
    %v313 = vpop.f32.mrb[0].mxu0
    %v314 = vadd.f32 0.0, %v313
    %v315 = vpop.f32.mrb[0].mxu0
    %316 = vmatprep.mubr.f32.mxu0 0.0
    %317 = vmatmul.mubr.f32.gmra.mrb[0].mxu0 %v189
    %v318 = vpop.f32.mrb[0].mxu0
    %v319 = vadd.f32 0.0, %v318
    %v320 = vpop.f32.mrb[0].mxu0
    %321 = vmatprep.mubr.f32.mxu0 0.0
    %322 = vmatmul.mubr.f32.gmra.mrb[0].mxu0 %v192
    %v323 = vpop.f32.mrb[0].mxu0
    %v324 = vadd.f32 0.0, %v323
    %v325 = vpop.f32.mrb[0].mxu0
    %326 = vmatprep.mubr.f32.mxu0 0.0
    %327 = vmatmul.mubr.f32.gmra.mrb[0].mxu0 %v195
    %v328 = vpop.f32.mrb[0].mxu0
    %v329 = vadd.f32 0.0, %v328
    %v330 = vpop.f32.mrb[0].mxu0
    %331 = vmatprep.mubr.f32.mxu0 0.0
    %332 = vmatmul.mubr.f32.gmra.mrb[0].mxu0 %v198
    %v333 = vpop.f32.mrb[0].mxu0
    %v334 = vadd.f32 0.0, %v333
    %v335 = vpop.f32.mrb[0].mxu0
    %336 = vmatprep.mubr.f32.mxu0 0.0
    %337 = vmatmul.mubr.f32.gmra.mrb[0].mxu0 %v201
    %v338 = vpop.f32.mrb[0].mxu0
    %v339 = vadd.f32 0.0, %v338
    %v340 = vpop.f32.mrb[0].mxu0
    %341 = vmatprep.mubr.f32.mxu0 0.0
    %342 = vmatmul.mubr.f32.gmra.mrb[0].mxu0 %v204
    %v343 = vpop.f32.mrb[0].mxu0
    %v344 = vadd.f32 0.0, %v343
    %v345 = vpop.f32.mrb[0].mxu0
    %346 = vmatprep.mubr.f32.mxu0 0.0
    %347 = vmatmul.mubr.f32.gmra.mrb[0].mxu0 %v207
    %v348 = vpop.f32.mrb[0].mxu0
    %v349 = vadd.f32 0.0, %v348
    %v350 = vpop.f32.mrb[0].mxu0
    %351 = vmatprep.mubr.f32.mxu0 0.0
    %352 = vmatmul.mubr.f32.gmra.mrb[0].mxu0 %v210
    %v353 = vpop.f32.mrb[0].mxu0
    %v354 = vadd.f32 0.0, %v353
    %v355 = vpop.f32.mrb[0].mxu0
    %356 = vdwg.mxu0
    %357 = vmatprep.subr.mxu0 0.0
    %358 = vmatpush1.msra.mxu0 %v113
    %359 = vmatprep.subr.mxu0 0.0
    %360 = vmatpush1.msra.mxu0 %v114
    %361 = vmatprep.subr.mxu0 0.0
    %362 = vmatpush1.msra.mxu0 %v115
    %363 = vmatprep.subr.mxu0 0.0
    %364 = vmatpush1.msra.mxu0 %v116
    %365 = vmatprep.subr.mxu0 0.0
    %366 = vmatpush1.msra.mxu0 %v117
    %367 = vmatprep.subr.mxu0 0.0
    %368 = vmatpush1.msra.mxu0 %v118
    %369 = vmatprep.subr.mxu0 0.0
    %370 = vmatpush1.msra.mxu0 %v119
    %371 = vmatprep.subr.mxu0 0.0
    %372 = vmatpush1.msra.mxu0 %v120
    %373 = vmatprep.subr.mxu0 0.0
    %374 = vmatpush1.msra.mxu0 %v121
    %375 = vmatprep.subr.mxu0 0.0
    %376 = vmatpush1.msra.mxu0 %v122
    %377 = vmatprep.subr.mxu0 0.0
    %378 = vmatpush1.msra.mxu0 %v123
    %379 = vmatprep.subr.mxu0 0.0
    %380 = vmatpush1.msra.mxu0 %v124
    %381 = vmatprep.subr.mxu0 0.0
    %382 = vmatpush1.msra.mxu0 %v125
    %383 = vmatprep.subr.mxu0 0.0
    %384 = vmatpush1.msra.mxu0 %v126
    %385 = vmatprep.subr.mxu0 0.0
    %386 = vmatpush1.msra.mxu0 %v127
    %387 = vmatprep.subr.mxu0 0.0
    %388 = vmatpush1.msra.mxu0 %v128
    %389 = vmatprep.subr.mxu0 0.0
    %390 = vmatpush1.msra.mxu0 0.0
    %391 = vmatprep.subr.mxu0 0.0
    %392 = vmatpush1.msra.mxu0 0.0
    %393 = vmatprep.subr.mxu0 0.0
    %394 = vmatpush1.msra.mxu0 0.0
    %395 = vmatprep.subr.mxu0 0.0
    %396 = vmatpush1.msra.mxu0 0.0
    %397 = vmatprep.subr.mxu0 0.0
    %398 = vmatpush1.msra.mxu0 0.0
    %399 = vmatprep.subr.mxu0 0.0
    %400 = vmatpush1.msra.mxu0 0.0
    %401 = vmatprep.subr.mxu0 0.0
    %402 = vmatpush1.msra.mxu0 0.0
    %403 = vmatprep.subr.mxu0 0.0
    %404 = vmatpush1.msra.mxu0 0.0
    %405 = vmatprep.subr.mxu0 0.0
    %406 = vmatpush1.msra.mxu0 0.0
    %407 = vmatprep.subr.mxu0 0.0
    %408 = vmatpush1.msra.mxu0 0.0
    %409 = vmatprep.subr.mxu0 0.0
    %410 = vmatpush1.msra.mxu0 0.0
    %411 = vmatprep.subr.mxu0 0.0
    %412 = vmatpush1.msra.mxu0 0.0
    %413 = vmatprep.subr.mxu0 0.0
    %414 = vmatpush1.msra.mxu0 0.0
    %415 = vmatprep.subr.mxu0 0.0
    %416 = vmatpush1.msra.mxu0 0.0
    %417 = vmatprep.subr.mxu0 0.0
    %418 = vmatpush1.msra.mxu0 0.0
    %419 = vmatprep.subr.mxu0 0.0
    %420 = vmatpush1.msra.mxu0 0.0
    %421 = vmatprep.mubr.f32.mxu0 0.0
    %422 = vmatmul.mubr.f32.gmra.mrb[0].mxu0 %v129
    %v423 = vpop.f32.mrb[0].mxu0
    %v424 = vadd.f32 %v279, %v423
    %v425 = vpop.f32.mrb[0].mxu0
    %426 = vmatprep.mubr.f32.mxu0 0.0
    %427 = vmatmul.mubr.f32.gmra.mrb[0].mxu0 %v130
    %v428 = vpop.f32.mrb[0].mxu0
    %v429 = vadd.f32 %v284, %v428
    %v430 = vpop.f32.mrb[0].mxu0
    %431 = vmatprep.mubr.f32.mxu0 0.0
    %432 = vmatmul.mubr.f32.gmra.mrb[0].mxu0 %v131
    %v433 = vpop.f32.mrb[0].mxu0
    %v434 = vadd.f32 %v289, %v433
    %v435 = vpop.f32.mrb[0].mxu0
    %436 = vmatprep.mubr.f32.mxu0 0.0
    %437 = vmatmul.mubr.f32.gmra.mrb[0].mxu0 %v132
    %v438 = vpop.f32.mrb[0].mxu0
    %v439 = vadd.f32 %v294, %v438
    %v440 = vpop.f32.mrb[0].mxu0
    %441 = vmatprep.mubr.f32.mxu0 0.0
    %442 = vmatmul.mubr.f32.gmra.mrb[0].mxu0 %v133
    %v443 = vpop.f32.mrb[0].mxu0
    %v444 = vadd.f32 %v299, %v443
    %v445 = vpop.f32.mrb[0].mxu0
    %446 = vmatprep.mubr.f32.mxu0 0.0
    %447 = vmatmul.mubr.f32.gmra.mrb[0].mxu0 %v134
    %v448 = vpop.f32.mrb[0].mxu0
    %v449 = vadd.f32 %v304, %v448
    %v450 = vpop.f32.mrb[0].mxu0
    %451 = vmatprep.mubr.f32.mxu0 0.0
    %452 = vmatmul.mubr.f32.gmra.mrb[0].mxu0 %v135
    %v453 = vpop.f32.mrb[0].mxu0
    %v454 = vadd.f32 %v309, %v453
    %v455 = vpop.f32.mrb[0].mxu0
    %456 = vmatprep.mubr.f32.mxu0 0.0
    %457 = vmatmul.mubr.f32.gmra.mrb[0].mxu0 %v136
    %v458 = vpop.f32.mrb[0].mxu0
    %v459 = vadd.f32 %v314, %v458
    %v460 = vpop.f32.mrb[0].mxu0
    %461 = vmatprep.mubr.f32.mxu0 0.0
    %462 = vmatmul.mubr.f32.gmra.mrb[0].mxu0 %v137
    %v463 = vpop.f32.mrb[0].mxu0
    %v464 = vadd.f32 %v319, %v463
    %v465 = vpop.f32.mrb[0].mxu0
    %466 = vmatprep.mubr.f32.mxu0 0.0
    %467 = vmatmul.mubr.f32.gmra.mrb[0].mxu0 %v138
    %v468 = vpop.f32.mrb[0].mxu0
    %v469 = vadd.f32 %v324, %v468
    %v470 = vpop.f32.mrb[0].mxu0
    %471 = vmatprep.mubr.f32.mxu0 0.0
    %472 = vmatmul.mubr.f32.gmra.mrb[0].mxu0 %v139
    %v473 = vpop.f32.mrb[0].mxu0
    %v474 = vadd.f32 %v329, %v473
    %v475 = vpop.f32.mrb[0].mxu0
    %476 = vmatprep.mubr.f32.mxu0 0.0
    %477 = vmatmul.mubr.f32.gmra.mrb[0].mxu0 %v140
    %v478 = vpop.f32.mrb[0].mxu0
    %v479 = vadd.f32 %v334, %v478
    %v480 = vpop.f32.mrb[0].mxu0
    %481 = vmatprep.mubr.f32.mxu0 0.0
    %482 = vmatmul.mubr.f32.gmra.mrb[0].mxu0 %v141
    %v483 = vpop.f32.mrb[0].mxu0
    %v484 = vadd.f32 %v339, %v483
    %v485 = vpop.f32.mrb[0].mxu0
    %486 = vmatprep.mubr.f32.mxu0 0.0
    %487 = vmatmul.mubr.f32.gmra.mrb[0].mxu0 %v142
    %v488 = vpop.f32.mrb[0].mxu0
    %v489 = vadd.f32 %v344, %v488
    %v490 = vpop.f32.mrb[0].mxu0
    %491 = vmatprep.mubr.f32.mxu0 0.0
    %492 = vmatmul.mubr.f32.gmra.mrb[0].mxu0 %v143
    %v493 = vpop.f32.mrb[0].mxu0
    %v494 = vadd.f32 %v349, %v493
    %v495 = vpop.f32.mrb[0].mxu0
    %496 = vmatprep.mubr.f32.mxu0 0.0
    %497 = vmatmul.mubr.f32.gmra.mrb[0].mxu0 %v144
    %v498 = vpop.f32.mrb[0].mxu0
    %v499 = vadd.f32 %v354, %v498
    %v500 = vpop.f32.mrb[0].mxu0
    %501 = vdwg.mxu0
    %v502 = vld [vmem:[#allocation7] sm:$0xff]
    %v503 = vld [vmem:[#allocation7 + $0x8] sm:$0xff]
    %v504 = vld [vmem:[#allocation7 + $0x10] sm:$0xff]
    %v505 = vld [vmem:[#allocation7 + $0x18] sm:$0xff]
    %v506 = vld [vmem:[#allocation7 + $0x20] sm:$0xff]
    %v507 = vld [vmem:[#allocation7 + $0x28] sm:$0xff]
    %v508 = vld [vmem:[#allocation7 + $0x30] sm:$0xff]
    %v509 = vld [vmem:[#allocation7 + $0x38] sm:$0xff]
    %v510 = vld [vmem:[#allocation7 + $0x40] sm:$0xff]
    %v511 = vld [vmem:[#allocation7 + $0x48] sm:$0xff]
    %v512 = vld [vmem:[#allocation7 + $0x50] sm:$0xff]
    %v513 = vld [vmem:[#allocation7 + $0x58] sm:$0xff]
    %v514 = vld [vmem:[#allocation7 + $0x60] sm:$0xff]
    %v515 = vld [vmem:[#allocation7 + $0x68] sm:$0xff]
    %v516 = vld [vmem:[#allocation7 + $0x70] sm:$0xff]
    %v517 = vld [vmem:[#allocation7 + $0x78] sm:$0xff]
    %v518 = vld [vmem:[%s5] sm:$0x1]
    %v520 = vlaneseq
    %v521 = vshrl.u32 %v520, 7
    %v522 = vsub.s32 0, %v521
    %v523 = vrot.slane %v518, %v522
    %525 = vmatprep.subr.mxu0 0.0
    %526 = vmatpush1.msra.mxu0 %v502
    %527 = vmatprep.subr.mxu0 0.0
    %528 = vmatpush1.msra.mxu0 %v503
    %529 = vmatprep.subr.mxu0 0.0
    %530 = vmatpush1.msra.mxu0 %v504
    %531 = vmatprep.subr.mxu0 0.0
    %532 = vmatpush1.msra.mxu0 %v505
    %533 = vmatprep.subr.mxu0 0.0
    %534 = vmatpush1.msra.mxu0 %v506
    %535 = vmatprep.subr.mxu0 0.0
    %536 = vmatpush1.msra.mxu0 %v507
    %537 = vmatprep.subr.mxu0 0.0
    %538 = vmatpush1.msra.mxu0 %v508
    %539 = vmatprep.subr.mxu0 0.0
    %540 = vmatpush1.msra.mxu0 %v509
    %541 = vmatprep.subr.mxu0 0.0
    %542 = vmatpush1.msra.mxu0 %v510
    %543 = vmatprep.subr.mxu0 0.0
    %544 = vmatpush1.msra.mxu0 %v511
    %545 = vmatprep.subr.mxu0 0.0
    %546 = vmatpush1.msra.mxu0 %v512
    %547 = vmatprep.subr.mxu0 0.0
    %548 = vmatpush1.msra.mxu0 %v513
    %549 = vmatprep.subr.mxu0 0.0
    %550 = vmatpush1.msra.mxu0 %v514
    %551 = vmatprep.subr.mxu0 0.0
    %552 = vmatpush1.msra.mxu0 %v515
    %553 = vmatprep.subr.mxu0 0.0
    %554 = vmatpush1.msra.mxu0 %v516
    %555 = vmatprep.subr.mxu0 0.0
    %556 = vmatpush1.msra.mxu0 %v517
    %557 = vmatprep.subr.mxu0 0.0
    %558 = vmatpush1.msra.mxu0 0.0
    %559 = vmatprep.subr.mxu0 0.0
    %560 = vmatpush1.msra.mxu0 0.0
    %561 = vmatprep.subr.mxu0 0.0
    %562 = vmatpush1.msra.mxu0 0.0
    %563 = vmatprep.subr.mxu0 0.0
    %564 = vmatpush1.msra.mxu0 0.0
    %565 = vmatprep.subr.mxu0 0.0
    %566 = vmatpush1.msra.mxu0 0.0
    %567 = vmatprep.subr.mxu0 0.0
    %568 = vmatpush1.msra.mxu0 0.0
    %569 = vmatprep.subr.mxu0 0.0
    %570 = vmatpush1.msra.mxu0 0.0
    %571 = vmatprep.subr.mxu0 0.0
    %572 = vmatpush1.msra.mxu0 0.0
    %573 = vmatprep.subr.mxu0 0.0
    %574 = vmatpush1.msra.mxu0 0.0
    %575 = vmatprep.subr.mxu0 0.0
    %576 = vmatpush1.msra.mxu0 0.0
    %577 = vmatprep.subr.mxu0 0.0
    %578 = vmatpush1.msra.mxu0 0.0
    %579 = vmatprep.subr.mxu0 0.0
    %580 = vmatpush1.msra.mxu0 0.0
    %581 = vmatprep.subr.mxu0 0.0
    %582 = vmatpush1.msra.mxu0 0.0
    %583 = vmatprep.subr.mxu0 0.0
    %584 = vmatpush1.msra.mxu0 0.0
    %585 = vmatprep.subr.mxu0 0.0
    %586 = vmatpush1.msra.mxu0 0.0
    %587 = vmatprep.subr.mxu0 0.0
    %588 = vmatpush1.msra.mxu0 0.0
    %589 = vmatprep.mubr.f32.mxu0 0.0
    %590 = vmatmul.mubr.f32.gmra.mrb[0].mxu0 %v424
    %v591 = vpop.f32.mrb[0].mxu0
    %v592 = vadd.f32 %v523, %v591
    %v593 = vpop.f32.mrb[0].mxu0
    %594 = vmatprep.mubr.f32.mxu0 0.0
    %595 = vmatmul.mubr.f32.gmra.mrb[0].mxu0 %v429
    %v596 = vpop.f32.mrb[0].mxu0
    %v597 = vadd.f32 %v523, %v596
    %v598 = vpop.f32.mrb[0].mxu0
    %599 = vmatprep.mubr.f32.mxu0 0.0
    %600 = vmatmul.mubr.f32.gmra.mrb[0].mxu0 %v434
    %v601 = vpop.f32.mrb[0].mxu0
    %v602 = vadd.f32 %v523, %v601
    %v603 = vpop.f32.mrb[0].mxu0
    %604 = vmatprep.mubr.f32.mxu0 0.0
    %605 = vmatmul.mubr.f32.gmra.mrb[0].mxu0 %v439
    %v606 = vpop.f32.mrb[0].mxu0
    %v607 = vadd.f32 %v523, %v606
    %v608 = vpop.f32.mrb[0].mxu0
    %609 = vmatprep.mubr.f32.mxu0 0.0
    %610 = vmatmul.mubr.f32.gmra.mrb[0].mxu0 %v444
    %v611 = vpop.f32.mrb[0].mxu0
    %v612 = vadd.f32 %v523, %v611
    %v613 = vpop.f32.mrb[0].mxu0
    %614 = vmatprep.mubr.f32.mxu0 0.0
    %615 = vmatmul.mubr.f32.gmra.mrb[0].mxu0 %v449
    %v616 = vpop.f32.mrb[0].mxu0
    %v617 = vadd.f32 %v523, %v616
    %v618 = vpop.f32.mrb[0].mxu0
    %619 = vmatprep.mubr.f32.mxu0 0.0
    %620 = vmatmul.mubr.f32.gmra.mrb[0].mxu0 %v454
    %v621 = vpop.f32.mrb[0].mxu0
    %v622 = vadd.f32 %v523, %v621
    %v623 = vpop.f32.mrb[0].mxu0
    %624 = vmatprep.mubr.f32.mxu0 0.0
    %625 = vmatmul.mubr.f32.gmra.mrb[0].mxu0 %v459
    %v626 = vpop.f32.mrb[0].mxu0
    %v627 = vadd.f32 %v523, %v626
    %v628 = vpop.f32.mrb[0].mxu0
    %629 = vmatprep.mubr.f32.mxu0 0.0
    %630 = vmatmul.mubr.f32.gmra.mrb[0].mxu0 %v464
    %v631 = vpop.f32.mrb[0].mxu0
    %v632 = vadd.f32 %v523, %v631
    %v633 = vpop.f32.mrb[0].mxu0
    %634 = vmatprep.mubr.f32.mxu0 0.0
    %635 = vmatmul.mubr.f32.gmra.mrb[0].mxu0 %v469
    %v636 = vpop.f32.mrb[0].mxu0
    %v637 = vadd.f32 %v523, %v636
    %v638 = vpop.f32.mrb[0].mxu0
    %639 = vmatprep.mubr.f32.mxu0 0.0
    %640 = vmatmul.mubr.f32.gmra.mrb[0].mxu0 %v474
    %v641 = vpop.f32.mrb[0].mxu0
    %v642 = vadd.f32 %v523, %v641
    %v643 = vpop.f32.mrb[0].mxu0
    %644 = vmatprep.mubr.f32.mxu0 0.0
    %645 = vmatmul.mubr.f32.gmra.mrb[0].mxu0 %v479
    %v646 = vpop.f32.mrb[0].mxu0
    %v647 = vadd.f32 %v523, %v646
    %v648 = vpop.f32.mrb[0].mxu0
    %649 = vmatprep.mubr.f32.mxu0 0.0
    %650 = vmatmul.mubr.f32.gmra.mrb[0].mxu0 %v484
    %v651 = vpop.f32.mrb[0].mxu0
    %v652 = vadd.f32 %v523, %v651
    %v653 = vpop.f32.mrb[0].mxu0
    %654 = vmatprep.mubr.f32.mxu0 0.0
    %655 = vmatmul.mubr.f32.gmra.mrb[0].mxu0 %v489
    %v656 = vpop.f32.mrb[0].mxu0
    %v657 = vadd.f32 %v523, %v656
    %v658 = vpop.f32.mrb[0].mxu0
    %659 = vmatprep.mubr.f32.mxu0 0.0
    %660 = vmatmul.mubr.f32.gmra.mrb[0].mxu0 %v494
    %v661 = vpop.f32.mrb[0].mxu0
    %v662 = vadd.f32 %v523, %v661
    %v663 = vpop.f32.mrb[0].mxu0
    %664 = vmatprep.mubr.f32.mxu0 0.0
    %665 = vmatmul.mubr.f32.gmra.mrb[0].mxu0 %v499
    %v666 = vpop.f32.mrb[0].mxu0
    %v667 = vadd.f32 %v523, %v666
    %v668 = vpop.f32.mrb[0].mxu0
    %669 = vdwg.mxu0
    %v670 = vmax.f32 %v592, 0.0
    %v671 = vmax.f32 %v597, 0.0
    %v672 = vmax.f32 %v602, 0.0
    %v673 = vmax.f32 %v607, 0.0
    %v674 = vmax.f32 %v612, 0.0
    %v675 = vmax.f32 %v617, 0.0
    %v676 = vmax.f32 %v622, 0.0
    %v677 = vmax.f32 %v627, 0.0
    %v678 = vmax.f32 %v632, 0.0
    %v679 = vmax.f32 %v637, 0.0
    %v680 = vmax.f32 %v642, 0.0
    %v681 = vmax.f32 %v647, 0.0
    %v682 = vmax.f32 %v652, 0.0
    %v683 = vmax.f32 %v657, 0.0
    %v684 = vmax.f32 %v662, 0.0
    %v685 = vmax.f32 %v667, 0.0
    %v686 = vld [vmem:[#allocation8] sm:$0xff]
    %v687 = vld [vmem:[#allocation8 + $0x8] sm:$0xff]
    %v688 = vld [vmem:[#allocation8 + $0x10] sm:$0xff]
    %v689 = vld [vmem:[#allocation8 + $0x18] sm:$0xff]
    %v690 = vld [vmem:[#allocation8 + $0x20] sm:$0xff]
    %v691 = vld [vmem:[#allocation8 + $0x28] sm:$0xff]
    %v692 = vld [vmem:[#allocation8 + $0x30] sm:$0xff]
    %v693 = vld [vmem:[#allocation8 + $0x38] sm:$0xff]
    %v694 = vld [vmem:[#allocation8 + $0x40] sm:$0xff]
    %v695 = vld [vmem:[#allocation8 + $0x48] sm:$0xff]
    %v696 = vld [vmem:[#allocation8 + $0x50] sm:$0xff]
    %v697 = vld [vmem:[#allocation8 + $0x58] sm:$0xff]
    %v698 = vld [vmem:[#allocation8 + $0x60] sm:$0xff]
    %v699 = vld [vmem:[#allocation8 + $0x68] sm:$0xff]
    %v700 = vld [vmem:[#allocation8 + $0x70] sm:$0xff]
    %v701 = vld [vmem:[#allocation8 + $0x78] sm:$0xff]
    %v702 = vld [vmem:[%s7] sm:$0x1]
    %v704 = vlaneseq
    %v705 = vshrl.u32 %v704, 7
    %v706 = vsub.s32 0, %v705
    %v707 = vrot.slane %v702, %v706
    %709 = vmatprep.subr.mxu0 0.0
    %710 = vmatpush1.msra.mxu0 %v686
    %711 = vmatprep.subr.mxu0 0.0
    %712 = vmatpush1.msra.mxu0 %v687
    %713 = vmatprep.subr.mxu0 0.0
    %714 = vmatpush1.msra.mxu0 %v688
    %715 = vmatprep.subr.mxu0 0.0
    %716 = vmatpush1.msra.mxu0 %v689
    %717 = vmatprep.subr.mxu0 0.0
    %718 = vmatpush1.msra.mxu0 %v690
    %719 = vmatprep.subr.mxu0 0.0
    %720 = vmatpush1.msra.mxu0 %v691
    %721 = vmatprep.subr.mxu0 0.0
    %722 = vmatpush1.msra.mxu0 %v692
    %723 = vmatprep.subr.mxu0 0.0
    %724 = vmatpush1.msra.mxu0 %v693
    %725 = vmatprep.subr.mxu0 0.0
    %726 = vmatpush1.msra.mxu0 %v694
    %727 = vmatprep.subr.mxu0 0.0
    %728 = vmatpush1.msra.mxu0 %v695
    %729 = vmatprep.subr.mxu0 0.0
    %730 = vmatpush1.msra.mxu0 %v696
    %731 = vmatprep.subr.mxu0 0.0
    %732 = vmatpush1.msra.mxu0 %v697
    %733 = vmatprep.subr.mxu0 0.0
    %734 = vmatpush1.msra.mxu0 %v698
    %735 = vmatprep.subr.mxu0 0.0
    %736 = vmatpush1.msra.mxu0 %v699
    %737 = vmatprep.subr.mxu0 0.0
    %738 = vmatpush1.msra.mxu0 %v700
    %739 = vmatprep.subr.mxu0 0.0
    %740 = vmatpush1.msra.mxu0 %v701
    %741 = vmatprep.subr.mxu0 0.0
    %742 = vmatpush1.msra.mxu0 0.0
    %743 = vmatprep.subr.mxu0 0.0
    %744 = vmatpush1.msra.mxu0 0.0
    %745 = vmatprep.subr.mxu0 0.0
    %746 = vmatpush1.msra.mxu0 0.0
    %747 = vmatprep.subr.mxu0 0.0
    %748 = vmatpush1.msra.mxu0 0.0
    %749 = vmatprep.subr.mxu0 0.0
    %750 = vmatpush1.msra.mxu0 0.0
    %751 = vmatprep.subr.mxu0 0.0
    %752 = vmatpush1.msra.mxu0 0.0
    %753 = vmatprep.subr.mxu0 0.0
    %754 = vmatpush1.msra.mxu0 0.0
    %755 = vmatprep.subr.mxu0 0.0
    %756 = vmatpush1.msra.mxu0 0.0
    %757 = vmatprep.subr.mxu0 0.0
    %758 = vmatpush1.msra.mxu0 0.0
    %759 = vmatprep.subr.mxu0 0.0
    %760 = vmatpush1.msra.mxu0 0.0
    %761 = vmatprep.subr.mxu0 0.0
    %762 = vmatpush1.msra.mxu0 0.0
    %763 = vmatprep.subr.mxu0 0.0
    %764 = vmatpush1.msra.mxu0 0.0
    %765 = vmatprep.subr.mxu0 0.0
    %766 = vmatpush1.msra.mxu0 0.0
    %767 = vmatprep.subr.mxu0 0.0
    %768 = vmatpush1.msra.mxu0 0.0
    %769 = vmatprep.subr.mxu0 0.0
    %770 = vmatpush1.msra.mxu0 0.0
    %771 = vmatprep.subr.mxu0 0.0
    %772 = vmatpush1.msra.mxu0 0.0
    %773 = vmatprep.mubr.f32.mxu0 0.0
    %774 = vmatmul.mubr.f32.gmra.mrb[0].mxu0 %v670
    %v775 = vpop.f32.mrb[0].mxu0
    %v776 = vadd.f32 %v707, %v775
    %v777 = vpop.f32.mrb[0].mxu0
    %778 = vmatprep.mubr.f32.mxu0 0.0
    %779 = vmatmul.mubr.f32.gmra.mrb[0].mxu0 %v671
    %v780 = vpop.f32.mrb[0].mxu0
    %v781 = vadd.f32 %v707, %v780
    %v782 = vpop.f32.mrb[0].mxu0
    %783 = vmatprep.mubr.f32.mxu0 0.0
    %784 = vmatmul.mubr.f32.gmra.mrb[0].mxu0 %v672
    %v785 = vpop.f32.mrb[0].mxu0
    %v786 = vadd.f32 %v707, %v785
    %v787 = vpop.f32.mrb[0].mxu0
    %788 = vmatprep.mubr.f32.mxu0 0.0
    %789 = vmatmul.mubr.f32.gmra.mrb[0].mxu0 %v673
    %v790 = vpop.f32.mrb[0].mxu0
    %v791 = vadd.f32 %v707, %v790
    %v792 = vpop.f32.mrb[0].mxu0
    %793 = vmatprep.mubr.f32.mxu0 0.0
    %794 = vmatmul.mubr.f32.gmra.mrb[0].mxu0 %v674
    %v795 = vpop.f32.mrb[0].mxu0
    %v796 = vadd.f32 %v707, %v795
    %v797 = vpop.f32.mrb[0].mxu0
    %798 = vmatprep.mubr.f32.mxu0 0.0
    %799 = vmatmul.mubr.f32.gmra.mrb[0].mxu0 %v675
    %v800 = vpop.f32.mrb[0].mxu0
    %v801 = vadd.f32 %v707, %v800
    %v802 = vpop.f32.mrb[0].mxu0
    %803 = vmatprep.mubr.f32.mxu0 0.0
    %804 = vmatmul.mubr.f32.gmra.mrb[0].mxu0 %v676
    %v805 = vpop.f32.mrb[0].mxu0
    %v806 = vadd.f32 %v707, %v805
    %v807 = vpop.f32.mrb[0].mxu0
    %808 = vmatprep.mubr.f32.mxu0 0.0
    %809 = vmatmul.mubr.f32.gmra.mrb[0].mxu0 %v677
    %v810 = vpop.f32.mrb[0].mxu0
    %v811 = vadd.f32 %v707, %v810
    %v812 = vpop.f32.mrb[0].mxu0
    %813 = vmatprep.mubr.f32.mxu0 0.0
    %814 = vmatmul.mubr.f32.gmra.mrb[0].mxu0 %v678
    %v815 = vpop.f32.mrb[0].mxu0
    %v816 = vadd.f32 %v707, %v815
    %v817 = vpop.f32.mrb[0].mxu0
    %818 = vmatprep.mubr.f32.mxu0 0.0
    %819 = vmatmul.mubr.f32.gmra.mrb[0].mxu0 %v679
    %v820 = vpop.f32.mrb[0].mxu0
    %v821 = vadd.f32 %v707, %v820
    %v822 = vpop.f32.mrb[0].mxu0
    %823 = vmatprep.mubr.f32.mxu0 0.0
    %824 = vmatmul.mubr.f32.gmra.mrb[0].mxu0 %v680
    %v825 = vpop.f32.mrb[0].mxu0
    %v826 = vadd.f32 %v707, %v825
    %v827 = vpop.f32.mrb[0].mxu0
    %828 = vmatprep.mubr.f32.mxu0 0.0
    %829 = vmatmul.mubr.f32.gmra.mrb[0].mxu0 %v681
    %v830 = vpop.f32.mrb[0].mxu0
    %v831 = vadd.f32 %v707, %v830
    %v832 = vpop.f32.mrb[0].mxu0
    %833 = vmatprep.mubr.f32.mxu0 0.0
    %834 = vmatmul.mubr.f32.gmra.mrb[0].mxu0 %v682
    %v835 = vpop.f32.mrb[0].mxu0
    %v836 = vadd.f32 %v707, %v835
    %v837 = vpop.f32.mrb[0].mxu0
    %838 = vmatprep.mubr.f32.mxu0 0.0
    %839 = vmatmul.mubr.f32.gmra.mrb[0].mxu0 %v683
    %v840 = vpop.f32.mrb[0].mxu0
    %v841 = vadd.f32 %v707, %v840
    %v842 = vpop.f32.mrb[0].mxu0
    %843 = vmatprep.mubr.f32.mxu0 0.0
    %844 = vmatmul.mubr.f32.gmra.mrb[0].mxu0 %v684
    %v845 = vpop.f32.mrb[0].mxu0
    %v846 = vadd.f32 %v707, %v845
    %v847 = vpop.f32.mrb[0].mxu0
    %848 = vmatprep.mubr.f32.mxu0 0.0
    %849 = vmatmul.mubr.f32.gmra.mrb[0].mxu0 %v685
    %v850 = vpop.f32.mrb[0].mxu0
    %v851 = vadd.f32 %v707, %v850
    %v852 = vpop.f32.mrb[0].mxu0
    %853 = vdwg.mxu0
    %854 = vmatprep.subr.mxu0 0.0
    %855 = vmatpush1.msra.mxu0 %v776
    %856 = vmatprep.subr.mxu0 0.0
    %857 = vmatpush1.msra.mxu0 %v781
    %858 = vmatprep.subr.mxu0 0.0
    %859 = vmatpush1.msra.mxu0 %v786
    %860 = vmatprep.subr.mxu0 0.0
    %861 = vmatpush1.msra.mxu0 %v791
    %862 = vmatprep.subr.mxu0 0.0
    %863 = vmatpush1.msra.mxu0 %v796
    %864 = vmatprep.subr.mxu0 0.0
    %865 = vmatpush1.msra.mxu0 %v801
    %866 = vmatprep.subr.mxu0 0.0
    %867 = vmatpush1.msra.mxu0 %v806
    %868 = vmatprep.subr.mxu0 0.0
    %869 = vmatpush1.msra.mxu0 %v811
    %870 = vmatprep.subr.mxu0 0.0
    %871 = vmatpush1.msra.mxu0 %v816
    %872 = vmatprep.subr.mxu0 0.0
    %873 = vmatpush1.msra.mxu0 %v821
    %874 = vmatprep.subr.mxu0 0.0
    %875 = vmatpush1.msra.mxu0 %v826
    %876 = vmatprep.subr.mxu0 0.0
    %877 = vmatpush1.msra.mxu0 %v831
    %878 = vmatprep.subr.mxu0 0.0
    %879 = vmatpush1.msra.mxu0 %v836
    %880 = vmatprep.subr.mxu0 0.0
    %881 = vmatpush1.msra.mxu0 %v841
    %882 = vmatprep.subr.mxu0 0.0
    %883 = vmatpush1.msra.mxu0 %v846
    %884 = vmatprep.subr.mxu0 0.0
    %885 = vmatpush1.msra.mxu0 %v851
    %886 = vmatprep.subr.mxu0 0.0
    %887 = vmatpush1.msra.mxu0 0.0
    %888 = vmatprep.subr.mxu0 0.0
    %889 = vmatpush1.msra.mxu0 0.0
    %890 = vmatprep.subr.mxu0 0.0
    %891 = vmatpush1.msra.mxu0 0.0
    %892 = vmatprep.subr.mxu0 0.0
    %893 = vmatpush1.msra.mxu0 0.0
    %894 = vmatprep.subr.mxu0 0.0
    %895 = vmatpush1.msra.mxu0 0.0
    %896 = vmatprep.subr.mxu0 0.0
    %897 = vmatpush1.msra.mxu0 0.0
    %898 = vmatprep.subr.mxu0 0.0
    %899 = vmatpush1.msra.mxu0 0.0
    %900 = vmatprep.subr.mxu0 0.0
    %901 = vmatpush1.msra.mxu0 0.0
    %902 = vmatprep.subr.mxu0 0.0
    %903 = vmatpush1.msra.mxu0 0.0
    %904 = vmatprep.subr.mxu0 0.0
    %905 = vmatpush1.msra.mxu0 0.0
    %906 = vmatprep.subr.mxu0 0.0
    %907 = vmatpush1.msra.mxu0 0.0
    %908 = vmatprep.subr.mxu0 0.0
    %909 = vmatpush1.msra.mxu0 0.0
    %910 = vmatprep.subr.mxu0 0.0
    %911 = vmatpush1.msra.mxu0 0.0
    %912 = vmatprep.subr.mxu0 0.0
    %913 = vmatpush1.msra.mxu0 0.0
    %914 = vmatprep.subr.mxu0 0.0
    %915 = vmatpush1.msra.mxu0 0.0
    %916 = vmatprep.subr.mxu0 0.0
    %917 = vmatpush1.msra.mxu0 0.0
    %918 = vmatprep.mubr.f32.mxu0 0.0
    %919 = vmatmul.mubr.f32.gmra.mrb[0].mxu0 %v161
    %v920 = vpop.f32.mrb[0].mxu0
    %v921 = vadd.f32 0.0, %v920
    %v922 = vpop.f32.mrb[0].mxu0
    %923 = vdwg.mxu0
    %v924 = vmul.f32 %v776, %v776
    %v925 = vmul.f32 %v781, %v781
    %v926 = vmul.f32 %v786, %v786
    %v927 = vmul.f32 %v791, %v791
    %v928 = vmul.f32 %v796, %v796
    %v929 = vmul.f32 %v801, %v801
    %v930 = vmul.f32 %v806, %v806
    %v931 = vmul.f32 %v811, %v811
    %v932 = vmul.f32 %v816, %v816
    %v933 = vmul.f32 %v821, %v821
    %v934 = vmul.f32 %v826, %v826
    %v935 = vmul.f32 %v831, %v831
    %v936 = vmul.f32 %v836, %v836
    %v937 = vmul.f32 %v841, %v841
    %v938 = vmul.f32 %v846, %v846
    %v939 = vmul.f32 %v851, %v851
    %940 = vmatprep.subr.mxu0 0.0
    %941 = vmatpush1.msra.mxu0 %v924
    %942 = vmatprep.subr.mxu0 0.0
    %943 = vmatpush1.msra.mxu0 %v925
    %944 = vmatprep.subr.mxu0 0.0
    %945 = vmatpush1.msra.mxu0 %v926
    %946 = vmatprep.subr.mxu0 0.0
    %947 = vmatpush1.msra.mxu0 %v927
    %948 = vmatprep.subr.mxu0 0.0
    %949 = vmatpush1.msra.mxu0 %v928
    %950 = vmatprep.subr.mxu0 0.0
    %951 = vmatpush1.msra.mxu0 %v929
    %952 = vmatprep.subr.mxu0 0.0
    %953 = vmatpush1.msra.mxu0 %v930
    %954 = vmatprep.subr.mxu0 0.0
    %955 = vmatpush1.msra.mxu0 %v931
    %956 = vmatprep.subr.mxu0 0.0
    %957 = vmatpush1.msra.mxu0 %v932
    %958 = vmatprep.subr.mxu0 0.0
    %959 = vmatpush1.msra.mxu0 %v933
    %960 = vmatprep.subr.mxu0 0.0
    %961 = vmatpush1.msra.mxu0 %v934
    %962 = vmatprep.subr.mxu0 0.0
    %963 = vmatpush1.msra.mxu0 %v935
    %964 = vmatprep.subr.mxu0 0.0
    %965 = vmatpush1.msra.mxu0 %v936
    %966 = vmatprep.subr.mxu0 0.0
    %967 = vmatpush1.msra.mxu0 %v937
    %968 = vmatprep.subr.mxu0 0.0
    %969 = vmatpush1.msra.mxu0 %v938
    %970 = vmatprep.subr.mxu0 0.0
    %971 = vmatpush1.msra.mxu0 %v939
    %972 = vmatprep.subr.mxu0 0.0
    %973 = vmatpush1.msra.mxu0 0.0
    %974 = vmatprep.subr.mxu0 0.0
    %975 = vmatpush1.msra.mxu0 0.0
    %976 = vmatprep.subr.mxu0 0.0
    %977 = vmatpush1.msra.mxu0 0.0
    %978 = vmatprep.subr.mxu0 0.0
    %979 = vmatpush1.msra.mxu0 0.0
    %980 = vmatprep.subr.mxu0 0.0
    %981 = vmatpush1.msra.mxu0 0.0
    %982 = vmatprep.subr.mxu0 0.0
    %983 = vmatpush1.msra.mxu0 0.0
    %984 = vmatprep.subr.mxu0 0.0
    %985 = vmatpush1.msra.mxu0 0.0
    %986 = vmatprep.subr.mxu0 0.0
    %987 = vmatpush1.msra.mxu0 0.0
    %988 = vmatprep.subr.mxu0 0.0
    %989 = vmatpush1.msra.mxu0 0.0
    %990 = vmatprep.subr.mxu0 0.0
    %991 = vmatpush1.msra.mxu0 0.0
    %992 = vmatprep.subr.mxu0 0.0
    %993 = vmatpush1.msra.mxu0 0.0
    %994 = vmatprep.subr.mxu0 0.0
    %995 = vmatpush1.msra.mxu0 0.0
    %996 = vmatprep.subr.mxu0 0.0
    %997 = vmatpush1.msra.mxu0 0.0
    %998 = vmatprep.subr.mxu0 0.0
    %999 = vmatpush1.msra.mxu0 0.0
    %1000 = vmatprep.subr.mxu0 0.0
    %1001 = vmatpush1.msra.mxu0 0.0
    %1002 = vmatprep.subr.mxu0 0.0
    %1003 = vmatpush1.msra.mxu0 0.0
    %1004 = vmatprep.mubr.f32.mxu0 0.0
    %1005 = vmatmul.mubr.f32.gmra.mrb[0].mxu0 %v161
    %v1006 = vpop.f32.mrb[0].mxu0
    %v1007 = vadd.f32 0.0, %v1006
    %v1008 = vpop.f32.mrb[0].mxu0
    %1009 = vdwg.mxu0
    %v1010 = vmul.f32 %v921, 0.125
    %v1011 = vmul.f32 %v1007, 0.125
    %v1012 = vmul.f32 %v1010, %v1010
    %v1013 = vsub.f32 %v1011, %v1012
    %v1014 = vld [vmem:[%s8] sm:$0x1]
    %v1015 = vadd.f32 %v1013, 1e-05
    %v1016 = vrsqrt.pop %v1015
    %v1017 = vmul.f32 %v1014, %v1016
    %v1019 = vlaneseq
    %v1020 = vshrl.u32 %v1019, 7
    %v1021 = vsub.s32 0, %v1020
    %v1022 = vrot.slane %v1017, %v1021
    %v1024 = vmul.f32 %v776, %v1022
    %v1025 = vmul.f32 %v781, %v1022
    %v1026 = vmul.f32 %v786, %v1022
    %v1027 = vmul.f32 %v791, %v1022
    %v1028 = vmul.f32 %v796, %v1022
    %v1029 = vmul.f32 %v801, %v1022
    %v1030 = vmul.f32 %v806, %v1022
    %v1031 = vmul.f32 %v811, %v1022
    %v1032 = vmul.f32 %v816, %v1022
    %v1033 = vmul.f32 %v821, %v1022
    %v1034 = vmul.f32 %v826, %v1022
    %v1035 = vmul.f32 %v831, %v1022
    %v1036 = vmul.f32 %v836, %v1022
    %v1037 = vmul.f32 %v841, %v1022
    %v1038 = vmul.f32 %v846, %v1022
    %v1039 = vmul.f32 %v851, %v1022
    %v1040 = vld [vmem:[%s9] sm:$0x1]
    %v1041 = vmul.f32 %v1010, %v1017
    %v1042 = vsub.f32 %v1040, %v1041
    %v1044 = vlaneseq
    %v1045 = vshrl.u32 %v1044, 7
    %v1046 = vsub.s32 0, %v1045
    %v1047 = vrot.slane %v1042, %v1046
    %v1049 = vadd.f32 %v1024, %v1047
    %v1050 = vadd.f32 %v1025, %v1047
    %v1051 = vadd.f32 %v1026, %v1047
    %v1052 = vadd.f32 %v1027, %v1047
    %v1053 = vadd.f32 %v1028, %v1047
    %v1054 = vadd.f32 %v1029, %v1047
    %v1055 = vadd.f32 %v1030, %v1047
    %v1056 = vadd.f32 %v1031, %v1047
    %v1057 = vadd.f32 %v1032, %v1047
    %v1058 = vadd.f32 %v1033, %v1047
    %v1059 = vadd.f32 %v1034, %v1047
    %v1060 = vadd.f32 %v1035, %v1047
    %v1061 = vadd.f32 %v1036, %v1047
    %v1062 = vadd.f32 %v1037, %v1047
    %v1063 = vadd.f32 %v1038, %v1047
    %v1064 = vadd.f32 %v1039, %v1047
    %v1065 = vmax.f32 %v1049, 0.0
    %v1066 = vmax.f32 %v1050, 0.0
    %v1067 = vmax.f32 %v1051, 0.0
    %v1068 = vmax.f32 %v1052, 0.0
    %v1069 = vmax.f32 %v1053, 0.0
    %v1070 = vmax.f32 %v1054, 0.0
    %v1071 = vmax.f32 %v1055, 0.0
    %v1072 = vmax.f32 %v1056, 0.0
    %v1073 = vmax.f32 %v1057, 0.0
    %v1074 = vmax.f32 %v1058, 0.0
    %v1075 = vmax.f32 %v1059, 0.0
    %v1076 = vmax.f32 %v1060, 0.0
    %v1077 = vmax.f32 %v1061, 0.0
    %v1078 = vmax.f32 %v1062, 0.0
    %v1079 = vmax.f32 %v1063, 0.0
    %v1080 = vmax.f32 %v1064, 0.0
    %s1081 = scalar_lea.vmem [#allocation5], 8
    %v1082 = vld [vmem:[%s1081] sm:$0xff]
    %1083 = vmatprep.subr.mxu0 0.0
    %1084 = vmatpush1.msra.mxu0 %v1082
    %1085 = vmatprep.subr.mxu0 0.0
    %1086 = vmatpush1.msra.mxu0 0.0
    %1087 = vmatprep.subr.mxu0 0.0
    %1088 = vmatpush1.msra.mxu0 0.0
    %1089 = vmatprep.subr.mxu0 0.0
    %1090 = vmatpush1.msra.mxu0 0.0
    %1091 = vmatprep.subr.mxu0 0.0
    %1092 = vmatpush1.msra.mxu0 0.0
    %1093 = vmatprep.subr.mxu0 0.0
    %1094 = vmatpush1.msra.mxu0 0.0
    %1095 = vmatprep.subr.mxu0 0.0
    %1096 = vmatpush1.msra.mxu0 0.0
    %1097 = vmatprep.subr.mxu0 0.0
    %1098 = vmatpush1.msra.mxu0 0.0
    %1099 = vmatprep.subr.mxu0 0.0
    %1100 = vmatpush1.msra.mxu0 0.0
    %1101 = vmatprep.subr.mxu0 0.0
    %1102 = vmatpush1.msra.mxu0 0.0
    %1103 = vmatprep.subr.mxu0 0.0
    %1104 = vmatpush1.msra.mxu0 0.0
    %1105 = vmatprep.subr.mxu0 0.0
    %1106 = vmatpush1.msra.mxu0 0.0
    %1107 = vmatprep.subr.mxu0 0.0
    %1108 = vmatpush1.msra.mxu0 0.0
    %1109 = vmatprep.subr.mxu0 0.0
    %1110 = vmatpush1.msra.mxu0 0.0
    %1111 = vmatprep.subr.mxu0 0.0
    %1112 = vmatpush1.msra.mxu0 0.0
    %1113 = vmatprep.subr.mxu0 0.0
    %1114 = vmatpush1.msra.mxu0 0.0
    %1115 = vmatprep.subr.mxu0 0.0
    %1116 = vmatpush1.msra.mxu0 0.0
    %1117 = vmatprep.subr.mxu0 0.0
    %1118 = vmatpush1.msra.mxu0 0.0
    %1119 = vmatprep.subr.mxu0 0.0
    %1120 = vmatpush1.msra.mxu0 0.0
    %1121 = vmatprep.subr.mxu0 0.0
    %1122 = vmatpush1.msra.mxu0 0.0
    %1123 = vmatprep.subr.mxu0 0.0
    %1124 = vmatpush1.msra.mxu0 0.0
    %1125 = vmatprep.subr.mxu0 0.0
    %1126 = vmatpush1.msra.mxu0 0.0
    %1127 = vmatprep.subr.mxu0 0.0
    %1128 = vmatpush1.msra.mxu0 0.0
    %1129 = vmatprep.subr.mxu0 0.0
    %1130 = vmatpush1.msra.mxu0 0.0
    %1131 = vmatprep.subr.mxu0 0.0
    %1132 = vmatpush1.msra.mxu0 0.0
    %1133 = vmatprep.subr.mxu0 0.0
    %1134 = vmatpush1.msra.mxu0 0.0
    %1135 = vmatprep.subr.mxu0 0.0
    %1136 = vmatpush1.msra.mxu0 0.0
    %1137 = vmatprep.subr.mxu0 0.0
    %1138 = vmatpush1.msra.mxu0 0.0
    %1139 = vmatprep.subr.mxu0 0.0
    %1140 = vmatpush1.msra.mxu0 0.0
    %1141 = vmatprep.subr.mxu0 0.0
    %1142 = vmatpush1.msra.mxu0 0.0
    %1143 = vmatprep.subr.mxu0 0.0
    %1144 = vmatpush1.msra.mxu0 0.0
    %1145 = vmatprep.subr.mxu0 0.0
    %1146 = vmatpush1.msra.mxu0 0.0
    %1147 = vmatprep.mubr.f32.mxu0 0.0
    %1148 = vmatmul.mubr.f32.gmra.mrb[0].mxu0 %v165
    %v1149 = vpop.f32.mrb[0].mxu0
    %v1150 = vadd.f32 0.0, %v1149
    %v1151 = vpop.f32.mrb[0].mxu0
    %1152 = vmatprep.mubr.f32.mxu0 0.0
    %1153 = vmatmul.mubr.f32.gmra.mrb[0].mxu0 %v168
    %v1154 = vpop.f32.mrb[0].mxu0
    %v1155 = vadd.f32 0.0, %v1154
    %v1156 = vpop.f32.mrb[0].mxu0
    %1157 = vmatprep.mubr.f32.mxu0 0.0
    %1158 = vmatmul.mubr.f32.gmra.mrb[0].mxu0 %v171
    %v1159 = vpop.f32.mrb[0].mxu0
    %v1160 = vadd.f32 0.0, %v1159
    %v1161 = vpop.f32.mrb[0].mxu0
    %1162 = vmatprep.mubr.f32.mxu0 0.0
    %1163 = vmatmul.mubr.f32.gmra.mrb[0].mxu0 %v174
    %v1164 = vpop.f32.mrb[0].mxu0
    %v1165 = vadd.f32 0.0, %v1164
    %v1166 = vpop.f32.mrb[0].mxu0
    %1167 = vmatprep.mubr.f32.mxu0 0.0
    %1168 = vmatmul.mubr.f32.gmra.mrb[0].mxu0 %v177
    %v1169 = vpop.f32.mrb[0].mxu0
    %v1170 = vadd.f32 0.0, %v1169
    %v1171 = vpop.f32.mrb[0].mxu0
    %1172 = vmatprep.mubr.f32.mxu0 0.0
    %1173 = vmatmul.mubr.f32.gmra.mrb[0].mxu0 %v180
    %v1174 = vpop.f32.mrb[0].mxu0
    %v1175 = vadd.f32 0.0, %v1174
    %v1176 = vpop.f32.mrb[0].mxu0
    %1177 = vmatprep.mubr.f32.mxu0 0.0
    %1178 = vmatmul.mubr.f32.gmra.mrb[0].mxu0 %v183
    %v1179 = vpop.f32.mrb[0].mxu0
    %v1180 = vadd.f32 0.0, %v1179
    %v1181 = vpop.f32.mrb[0].mxu0
    %1182 = vmatprep.mubr.f32.mxu0 0.0
    %1183 = vmatmul.mubr.f32.gmra.mrb[0].mxu0 %v186
    %v1184 = vpop.f32.mrb[0].mxu0
    %v1185 = vadd.f32 0.0, %v1184
    %v1186 = vpop.f32.mrb[0].mxu0
    %1187 = vmatprep.mubr.f32.mxu0 0.0
    %1188 = vmatmul.mubr.f32.gmra.mrb[0].mxu0 %v189
    %v1189 = vpop.f32.mrb[0].mxu0
    %v1190 = vadd.f32 0.0, %v1189
    %v1191 = vpop.f32.mrb[0].mxu0
    %1192 = vmatprep.mubr.f32.mxu0 0.0
    %1193 = vmatmul.mubr.f32.gmra.mrb[0].mxu0 %v192
    %v1194 = vpop.f32.mrb[0].mxu0
    %v1195 = vadd.f32 0.0, %v1194
    %v1196 = vpop.f32.mrb[0].mxu0
    %1197 = vmatprep.mubr.f32.mxu0 0.0
    %1198 = vmatmul.mubr.f32.gmra.mrb[0].mxu0 %v195
    %v1199 = vpop.f32.mrb[0].mxu0
    %v1200 = vadd.f32 0.0, %v1199
    %v1201 = vpop.f32.mrb[0].mxu0
    %1202 = vmatprep.mubr.f32.mxu0 0.0
    %1203 = vmatmul.mubr.f32.gmra.mrb[0].mxu0 %v198
    %v1204 = vpop.f32.mrb[0].mxu0
    %v1205 = vadd.f32 0.0, %v1204
    %v1206 = vpop.f32.mrb[0].mxu0
    %1207 = vmatprep.mubr.f32.mxu0 0.0
    %1208 = vmatmul.mubr.f32.gmra.mrb[0].mxu0 %v201
    %v1209 = vpop.f32.mrb[0].mxu0
    %v1210 = vadd.f32 0.0, %v1209
    %v1211 = vpop.f32.mrb[0].mxu0
    %1212 = vmatprep.mubr.f32.mxu0 0.0
    %1213 = vmatmul.mubr.f32.gmra.mrb[0].mxu0 %v204
    %v1214 = vpop.f32.mrb[0].mxu0
    %v1215 = vadd.f32 0.0, %v1214
    %v1216 = vpop.f32.mrb[0].mxu0
    %1217 = vmatprep.mubr.f32.mxu0 0.0
    %1218 = vmatmul.mubr.f32.gmra.mrb[0].mxu0 %v207
    %v1219 = vpop.f32.mrb[0].mxu0
    %v1220 = vadd.f32 0.0, %v1219
    %v1221 = vpop.f32.mrb[0].mxu0
    %1222 = vmatprep.mubr.f32.mxu0 0.0
    %1223 = vmatmul.mubr.f32.gmra.mrb[0].mxu0 %v210
    %v1224 = vpop.f32.mrb[0].mxu0
    %v1225 = vadd.f32 0.0, %v1224
    %v1226 = vpop.f32.mrb[0].mxu0
    %1227 = vdwg.mxu0
    %1228 = vmatprep.subr.mxu0 0.0
    %1229 = vmatpush1.msra.mxu0 %v1065
    %1230 = vmatprep.subr.mxu0 0.0
    %1231 = vmatpush1.msra.mxu0 %v1066
    %1232 = vmatprep.subr.mxu0 0.0
    %1233 = vmatpush1.msra.mxu0 %v1067
    %1234 = vmatprep.subr.mxu0 0.0
    %1235 = vmatpush1.msra.mxu0 %v1068
    %1236 = vmatprep.subr.mxu0 0.0
    %1237 = vmatpush1.msra.mxu0 %v1069
    %1238 = vmatprep.subr.mxu0 0.0
    %1239 = vmatpush1.msra.mxu0 %v1070
    %1240 = vmatprep.subr.mxu0 0.0
    %1241 = vmatpush1.msra.mxu0 %v1071
    %1242 = vmatprep.subr.mxu0 0.0
    %1243 = vmatpush1.msra.mxu0 %v1072
    %1244 = vmatprep.subr.mxu0 0.0
    %1245 = vmatpush1.msra.mxu0 %v1073
    %1246 = vmatprep.subr.mxu0 0.0
    %1247 = vmatpush1.msra.mxu0 %v1074
    %1248 = vmatprep.subr.mxu0 0.0
    %1249 = vmatpush1.msra.mxu0 %v1075
    %1250 = vmatprep.subr.mxu0 0.0
    %1251 = vmatpush1.msra.mxu0 %v1076
    %1252 = vmatprep.subr.mxu0 0.0
    %1253 = vmatpush1.msra.mxu0 %v1077
    %1254 = vmatprep.subr.mxu0 0.0
    %1255 = vmatpush1.msra.mxu0 %v1078
    %1256 = vmatprep.subr.mxu0 0.0
    %1257 = vmatpush1.msra.mxu0 %v1079
    %1258 = vmatprep.subr.mxu0 0.0
    %1259 = vmatpush1.msra.mxu0 %v1080
    %1260 = vmatprep.subr.mxu0 0.0
    %1261 = vmatpush1.msra.mxu0 0.0
    %1262 = vmatprep.subr.mxu0 0.0
    %1263 = vmatpush1.msra.mxu0 0.0
    %1264 = vmatprep.subr.mxu0 0.0
    %1265 = vmatpush1.msra.mxu0 0.0
    %1266 = vmatprep.subr.mxu0 0.0
    %1267 = vmatpush1.msra.mxu0 0.0
    %1268 = vmatprep.subr.mxu0 0.0
    %1269 = vmatpush1.msra.mxu0 0.0
    %1270 = vmatprep.subr.mxu0 0.0
    %1271 = vmatpush1.msra.mxu0 0.0
    %1272 = vmatprep.subr.mxu0 0.0
    %1273 = vmatpush1.msra.mxu0 0.0
    %1274 = vmatprep.subr.mxu0 0.0
    %1275 = vmatpush1.msra.mxu0 0.0
    %1276 = vmatprep.subr.mxu0 0.0
    %1277 = vmatpush1.msra.mxu0 0.0
    %1278 = vmatprep.subr.mxu0 0.0
    %1279 = vmatpush1.msra.mxu0 0.0
    %1280 = vmatprep.subr.mxu0 0.0
    %1281 = vmatpush1.msra.mxu0 0.0
    %1282 = vmatprep.subr.mxu0 0.0
    %1283 = vmatpush1.msra.mxu0 0.0
    %1284 = vmatprep.subr.mxu0 0.0
    %1285 = vmatpush1.msra.mxu0 0.0
    %1286 = vmatprep.subr.mxu0 0.0
    %1287 = vmatpush1.msra.mxu0 0.0
    %1288 = vmatprep.subr.mxu0 0.0
    %1289 = vmatpush1.msra.mxu0 0.0
    %1290 = vmatprep.subr.mxu0 0.0
    %1291 = vmatpush1.msra.mxu0 0.0
    %1292 = vmatprep.mubr.f32.mxu0 0.0
    %1293 = vmatmul.mubr.f32.gmra.mrb[0].mxu0 %v129
    %v1294 = vpop.f32.mrb[0].mxu0
    %v1295 = vadd.f32 %v1150, %v1294
    %v1296 = vpop.f32.mrb[0].mxu0
    %1297 = vmatprep.mubr.f32.mxu0 0.0
    %1298 = vmatmul.mubr.f32.gmra.mrb[0].mxu0 %v130
    %v1299 = vpop.f32.mrb[0].mxu0
    %v1300 = vadd.f32 %v1155, %v1299
    %v1301 = vpop.f32.mrb[0].mxu0
    %1302 = vmatprep.mubr.f32.mxu0 0.0
    %1303 = vmatmul.mubr.f32.gmra.mrb[0].mxu0 %v131
    %v1304 = vpop.f32.mrb[0].mxu0
    %v1305 = vadd.f32 %v1160, %v1304
    %v1306 = vpop.f32.mrb[0].mxu0
    %1307 = vmatprep.mubr.f32.mxu0 0.0
    %1308 = vmatmul.mubr.f32.gmra.mrb[0].mxu0 %v132
    %v1309 = vpop.f32.mrb[0].mxu0
    %v1310 = vadd.f32 %v1165, %v1309
    %v1311 = vpop.f32.mrb[0].mxu0
    %1312 = vmatprep.mubr.f32.mxu0 0.0
    %1313 = vmatmul.mubr.f32.gmra.mrb[0].mxu0 %v133
    %v1314 = vpop.f32.mrb[0].mxu0
    %v1315 = vadd.f32 %v1170, %v1314
    %v1316 = vpop.f32.mrb[0].mxu0
    %1317 = vmatprep.mubr.f32.mxu0 0.0
    %1318 = vmatmul.mubr.f32.gmra.mrb[0].mxu0 %v134
    %v1319 = vpop.f32.mrb[0].mxu0
    %v1320 = vadd.f32 %v1175, %v1319
    %v1321 = vpop.f32.mrb[0].mxu0
    %1322 = vmatprep.mubr.f32.mxu0 0.0
    %1323 = vmatmul.mubr.f32.gmra.mrb[0].mxu0 %v135
    %v1324 = vpop.f32.mrb[0].mxu0
    %v1325 = vadd.f32 %v1180, %v1324
    %v1326 = vpop.f32.mrb[0].mxu0
    %1327 = vmatprep.mubr.f32.mxu0 0.0
    %1328 = vmatmul.mubr.f32.gmra.mrb[0].mxu0 %v136
    %v1329 = vpop.f32.mrb[0].mxu0
    %v1330 = vadd.f32 %v1185, %v1329
    %v1331 = vpop.f32.mrb[0].mxu0
    %1332 = vmatprep.mubr.f32.mxu0 0.0
    %1333 = vmatmul.mubr.f32.gmra.mrb[0].mxu0 %v137
    %v1334 = vpop.f32.mrb[0].mxu0
    %v1335 = vadd.f32 %v1190, %v1334
    %v1336 = vpop.f32.mrb[0].mxu0
    %1337 = vmatprep.mubr.f32.mxu0 0.0
    %1338 = vmatmul.mubr.f32.gmra.mrb[0].mxu0 %v138
    %v1339 = vpop.f32.mrb[0].mxu0
    %v1340 = vadd.f32 %v1195, %v1339
    %v1341 = vpop.f32.mrb[0].mxu0
    %1342 = vmatprep.mubr.f32.mxu0 0.0
    %1343 = vmatmul.mubr.f32.gmra.mrb[0].mxu0 %v139
    %v1344 = vpop.f32.mrb[0].mxu0
    %v1345 = vadd.f32 %v1200, %v1344
    %v1346 = vpop.f32.mrb[0].mxu0
    %1347 = vmatprep.mubr.f32.mxu0 0.0
    %1348 = vmatmul.mubr.f32.gmra.mrb[0].mxu0 %v140
    %v1349 = vpop.f32.mrb[0].mxu0
    %v1350 = vadd.f32 %v1205, %v1349
    %v1351 = vpop.f32.mrb[0].mxu0
    %1352 = vmatprep.mubr.f32.mxu0 0.0
    %1353 = vmatmul.mubr.f32.gmra.mrb[0].mxu0 %v141
    %v1354 = vpop.f32.mrb[0].mxu0
    %v1355 = vadd.f32 %v1210, %v1354
    %v1356 = vpop.f32.mrb[0].mxu0
    %1357 = vmatprep.mubr.f32.mxu0 0.0
    %1358 = vmatmul.mubr.f32.gmra.mrb[0].mxu0 %v142
    %v1359 = vpop.f32.mrb[0].mxu0
    %v1360 = vadd.f32 %v1215, %v1359
    %v1361 = vpop.f32.mrb[0].mxu0
    %1362 = vmatprep.mubr.f32.mxu0 0.0
    %1363 = vmatmul.mubr.f32.gmra.mrb[0].mxu0 %v143
    %v1364 = vpop.f32.mrb[0].mxu0
    %v1365 = vadd.f32 %v1220, %v1364
    %v1366 = vpop.f32.mrb[0].mxu0
    %1367 = vmatprep.mubr.f32.mxu0 0.0
    %1368 = vmatmul.mubr.f32.gmra.mrb[0].mxu0 %v144
    %v1369 = vpop.f32.mrb[0].mxu0
    %v1370 = vadd.f32 %v1225, %v1369
    %v1371 = vpop.f32.mrb[0].mxu0
    %1372 = vdwg.mxu0
    %s1373 = scalar_lea.vmem [#allocation7], 128
    %v1374 = vld [vmem:[%s1373] sm:$0xff]
    %v1375 = vld [vmem:[%s1373 + $0x8] sm:$0xff]
    %v1376 = vld [vmem:[%s1373 + $0x10] sm:$0xff]
    %v1377 = vld [vmem:[%s1373 + $0x18] sm:$0xff]
    %v1378 = vld [vmem:[%s1373 + $0x20] sm:$0xff]
    %v1379 = vld [vmem:[%s1373 + $0x28] sm:$0xff]
    %v1380 = vld [vmem:[%s1373 + $0x30] sm:$0xff]
    %v1381 = vld [vmem:[%s1373 + $0x38] sm:$0xff]
    %v1382 = vld [vmem:[%s1373 + $0x40] sm:$0xff]
    %v1383 = vld [vmem:[%s1373 + $0x48] sm:$0xff]
    %v1384 = vld [vmem:[%s1373 + $0x50] sm:$0xff]
    %v1385 = vld [vmem:[%s1373 + $0x58] sm:$0xff]
    %v1386 = vld [vmem:[%s1373 + $0x60] sm:$0xff]
    %v1387 = vld [vmem:[%s1373 + $0x68] sm:$0xff]
    %v1388 = vld [vmem:[%s1373 + $0x70] sm:$0xff]
    %v1389 = vld [vmem:[%s1373 + $0x78] sm:$0xff]
    %s1390 = scalar_lea.vmem %s5, 1
    %v1391 = vld [vmem:[%s1390] sm:$0x1]
    %v1393 = vlaneseq
    %v1394 = vshrl.u32 %v1393, 7
    %v1395 = vsub.s32 0, %v1394
    %v1396 = vrot.slane %v1391, %v1395
    %1398 = vmatprep.subr.mxu0 0.0
    %1399 = vmatpush1.msra.mxu0 %v1374
    %1400 = vmatprep.subr.mxu0 0.0
    %1401 = vmatpush1.msra.mxu0 %v1375
    %1402 = vmatprep.subr.mxu0 0.0
    %1403 = vmatpush1.msra.mxu0 %v1376
    %1404 = vmatprep.subr.mxu0 0.0
    %1405 = vmatpush1.msra.mxu0 %v1377
    %1406 = vmatprep.subr.mxu0 0.0
    %1407 = vmatpush1.msra.mxu0 %v1378
    %1408 = vmatprep.subr.mxu0 0.0
    %1409 = vmatpush1.msra.mxu0 %v1379
    %1410 = vmatprep.subr.mxu0 0.0
    %1411 = vmatpush1.msra.mxu0 %v1380
    %1412 = vmatprep.subr.mxu0 0.0
    %1413 = vmatpush1.msra.mxu0 %v1381
    %1414 = vmatprep.subr.mxu0 0.0
    %1415 = vmatpush1.msra.mxu0 %v1382
    %1416 = vmatprep.subr.mxu0 0.0
    %1417 = vmatpush1.msra.mxu0 %v1383
    %1418 = vmatprep.subr.mxu0 0.0
    %1419 = vmatpush1.msra.mxu0 %v1384
    %1420 = vmatprep.subr.mxu0 0.0
    %1421 = vmatpush1.msra.mxu0 %v1385
    %1422 = vmatprep.subr.mxu0 0.0
    %1423 = vmatpush1.msra.mxu0 %v1386
    %1424 = vmatprep.subr.mxu0 0.0
    %1425 = vmatpush1.msra.mxu0 %v1387
    %1426 = vmatprep.subr.mxu0 0.0
    %1427 = vmatpush1.msra.mxu0 %v1388
    %1428 = vmatprep.subr.mxu0 0.0
    %1429 = vmatpush1.msra.mxu0 %v1389
    %1430 = vmatprep.subr.mxu0 0.0
    %1431 = vmatpush1.msra.mxu0 0.0
    %1432 = vmatprep.subr.mxu0 0.0
    %1433 = vmatpush1.msra.mxu0 0.0
    %1434 = vmatprep.subr.mxu0 0.0
    %1435 = vmatpush1.msra.mxu0 0.0
    %1436 = vmatprep.subr.mxu0 0.0
    %1437 = vmatpush1.msra.mxu0 0.0
    %1438 = vmatprep.subr.mxu0 0.0
    %1439 = vmatpush1.msra.mxu0 0.0
    %1440 = vmatprep.subr.mxu0 0.0
    %1441 = vmatpush1.msra.mxu0 0.0
    %1442 = vmatprep.subr.mxu0 0.0
    %1443 = vmatpush1.msra.mxu0 0.0
    %1444 = vmatprep.subr.mxu0 0.0
    %1445 = vmatpush1.msra.mxu0 0.0
    %1446 = vmatprep.subr.mxu0 0.0
    %1447 = vmatpush1.msra.mxu0 0.0
    %1448 = vmatprep.subr.mxu0 0.0
    %1449 = vmatpush1.msra.mxu0 0.0
    %1450 = vmatprep.subr.mxu0 0.0
    %1451 = vmatpush1.msra.mxu0 0.0
    %1452 = vmatprep.subr.mxu0 0.0
    %1453 = vmatpush1.msra.mxu0 0.0
    %1454 = vmatprep.subr.mxu0 0.0
    %1455 = vmatpush1.msra.mxu0 0.0
    %1456 = vmatprep.subr.mxu0 0.0
    %1457 = vmatpush1.msra.mxu0 0.0
    %1458 = vmatprep.subr.mxu0 0.0
    %1459 = vmatpush1.msra.mxu0 0.0
    %1460 = vmatprep.subr.mxu0 0.0
    %1461 = vmatpush1.msra.mxu0 0.0
    %1462 = vmatprep.mubr.f32.mxu0 0.0
    %1463 = vmatmul.mubr.f32.gmra.mrb[0].mxu0 %v1295
    %v1464 = vpop.f32.mrb[0].mxu0
    %v1465 = vadd.f32 %v1396, %v1464
    %v1466 = vpop.f32.mrb[0].mxu0
    %1467 = vmatprep.mubr.f32.mxu0 0.0
    %1468 = vmatmul.mubr.f32.gmra.mrb[0].mxu0 %v1300
    %v1469 = vpop.f32.mrb[0].mxu0
    %v1470 = vadd.f32 %v1396, %v1469
    %v1471 = vpop.f32.mrb[0].mxu0
    %1472 = vmatprep.mubr.f32.mxu0 0.0
    %1473 = vmatmul.mubr.f32.gmra.mrb[0].mxu0 %v1305
    %v1474 = vpop.f32.mrb[0].mxu0
    %v1475 = vadd.f32 %v1396, %v1474
    %v1476 = vpop.f32.mrb[0].mxu0
    %1477 = vmatprep.mubr.f32.mxu0 0.0
    %1478 = vmatmul.mubr.f32.gmra.mrb[0].mxu0 %v1310
    %v1479 = vpop.f32.mrb[0].mxu0
    %v1480 = vadd.f32 %v1396, %v1479
    %v1481 = vpop.f32.mrb[0].mxu0
    %1482 = vmatprep.mubr.f32.mxu0 0.0
    %1483 = vmatmul.mubr.f32.gmra.mrb[0].mxu0 %v1315
    %v1484 = vpop.f32.mrb[0].mxu0
    %v1485 = vadd.f32 %v1396, %v1484
    %v1486 = vpop.f32.mrb[0].mxu0
    %1487 = vmatprep.mubr.f32.mxu0 0.0
    %1488 = vmatmul.mubr.f32.gmra.mrb[0].mxu0 %v1320
    %v1489 = vpop.f32.mrb[0].mxu0
    %v1490 = vadd.f32 %v1396, %v1489
    %v1491 = vpop.f32.mrb[0].mxu0
    %1492 = vmatprep.mubr.f32.mxu0 0.0
    %1493 = vmatmul.mubr.f32.gmra.mrb[0].mxu0 %v1325
    %v1494 = vpop.f32.mrb[0].mxu0
    %v1495 = vadd.f32 %v1396, %v1494
    %v1496 = vpop.f32.mrb[0].mxu0
    %1497 = vmatprep.mubr.f32.mxu0 0.0
    %1498 = vmatmul.mubr.f32.gmra.mrb[0].mxu0 %v1330
    %v1499 = vpop.f32.mrb[0].mxu0
    %v1500 = vadd.f32 %v1396, %v1499
    %v1501 = vpop.f32.mrb[0].mxu0
    %1502 = vmatprep.mubr.f32.mxu0 0.0
    %1503 = vmatmul.mubr.f32.gmra.mrb[0].mxu0 %v1335
    %v1504 = vpop.f32.mrb[0].mxu0
    %v1505 = vadd.f32 %v1396, %v1504
    %v1506 = vpop.f32.mrb[0].mxu0
    %1507 = vmatprep.mubr.f32.mxu0 0.0
    %1508 = vmatmul.mubr.f32.gmra.mrb[0].mxu0 %v1340
    %v1509 = vpop.f32.mrb[0].mxu0
    %v1510 = vadd.f32 %v1396, %v1509
    %v1511 = vpop.f32.mrb[0].mxu0
    %1512 = vmatprep.mubr.f32.mxu0 0.0
    %1513 = vmatmul.mubr.f32.gmra.mrb[0].mxu0 %v1345
    %v1514 = vpop.f32.mrb[0].mxu0
    %v1515 = vadd.f32 %v1396, %v1514
    %v1516 = vpop.f32.mrb[0].mxu0
    %1517 = vmatprep.mubr.f32.mxu0 0.0
    %1518 = vmatmul.mubr.f32.gmra.mrb[0].mxu0 %v1350
    %v1519 = vpop.f32.mrb[0].mxu0
    %v1520 = vadd.f32 %v1396, %v1519
    %v1521 = vpop.f32.mrb[0].mxu0
    %1522 = vmatprep.mubr.f32.mxu0 0.0
    %1523 = vmatmul.mubr.f32.gmra.mrb[0].mxu0 %v1355
    %v1524 = vpop.f32.mrb[0].mxu0
    %v1525 = vadd.f32 %v1396, %v1524
    %v1526 = vpop.f32.mrb[0].mxu0
    %1527 = vmatprep.mubr.f32.mxu0 0.0
    %1528 = vmatmul.mubr.f32.gmra.mrb[0].mxu0 %v1360
    %v1529 = vpop.f32.mrb[0].mxu0
    %v1530 = vadd.f32 %v1396, %v1529
    %v1531 = vpop.f32.mrb[0].mxu0
    %1532 = vmatprep.mubr.f32.mxu0 0.0
    %1533 = vmatmul.mubr.f32.gmra.mrb[0].mxu0 %v1365
    %v1534 = vpop.f32.mrb[0].mxu0
    %v1535 = vadd.f32 %v1396, %v1534
    %v1536 = vpop.f32.mrb[0].mxu0
    %1537 = vmatprep.mubr.f32.mxu0 0.0
    %1538 = vmatmul.mubr.f32.gmra.mrb[0].mxu0 %v1370
    %v1539 = vpop.f32.mrb[0].mxu0
    %v1540 = vadd.f32 %v1396, %v1539
    %v1541 = vpop.f32.mrb[0].mxu0
    %1542 = vdwg.mxu0
    %v1543 = vmax.f32 %v1465, 0.0
    %v1544 = vmax.f32 %v1470, 0.0
    %v1545 = vmax.f32 %v1475, 0.0
    %v1546 = vmax.f32 %v1480, 0.0
    %v1547 = vmax.f32 %v1485, 0.0
    %v1548 = vmax.f32 %v1490, 0.0
    %v1549 = vmax.f32 %v1495, 0.0
    %v1550 = vmax.f32 %v1500, 0.0
    %v1551 = vmax.f32 %v1505, 0.0
    %v1552 = vmax.f32 %v1510, 0.0
    %v1553 = vmax.f32 %v1515, 0.0
    %v1554 = vmax.f32 %v1520, 0.0
    %v1555 = vmax.f32 %v1525, 0.0
    %v1556 = vmax.f32 %v1530, 0.0
    %v1557 = vmax.f32 %v1535, 0.0
    %v1558 = vmax.f32 %v1540, 0.0
    %s1559 = scalar_lea.vmem [#allocation8], 128
    %v1560 = vld [vmem:[%s1559] sm:$0xff]
    %v1561 = vld [vmem:[%s1559 + $0x8] sm:$0xff]
    %v1562 = vld [vmem:[%s1559 + $0x10] sm:$0xff]
    %v1563 = vld [vmem:[%s1559 + $0x18] sm:$0xff]
    %v1564 = vld [vmem:[%s1559 + $0x20] sm:$0xff]
    %v1565 = vld [vmem:[%s1559 + $0x28] sm:$0xff]
    %v1566 = vld [vmem:[%s1559 + $0x30] sm:$0xff]
    %v1567 = vld [vmem:[%s1559 + $0x38] sm:$0xff]
    %v1568 = vld [vmem:[%s1559 + $0x40] sm:$0xff]
    %v1569 = vld [vmem:[%s1559 + $0x48] sm:$0xff]
    %v1570 = vld [vmem:[%s1559 + $0x50] sm:$0xff]
    %v1571 = vld [vmem:[%s1559 + $0x58] sm:$0xff]
    %v1572 = vld [vmem:[%s1559 + $0x60] sm:$0xff]
    %v1573 = vld [vmem:[%s1559 + $0x68] sm:$0xff]
    %v1574 = vld [vmem:[%s1559 + $0x70] sm:$0xff]
    %v1575 = vld [vmem:[%s1559 + $0x78] sm:$0xff]
    %s1576 = scalar_lea.vmem %s7, 1
    %v1577 = vld [vmem:[%s1576] sm:$0x1]
    %v1579 = vlaneseq
    %v1580 = vshrl.u32 %v1579, 7
    %v1581 = vsub.s32 0, %v1580
    %v1582 = vrot.slane %v1577, %v1581
    %1584 = vmatprep.subr.mxu0 0.0
    %1585 = vmatpush1.msra.mxu0 %v1560
    %1586 = vmatprep.subr.mxu0 0.0
    %1587 = vmatpush1.msra.mxu0 %v1561
    %1588 = vmatprep.subr.mxu0 0.0
    %1589 = vmatpush1.msra.mxu0 %v1562
    %1590 = vmatprep.subr.mxu0 0.0
    %1591 = vmatpush1.msra.mxu0 %v1563
    %1592 = vmatprep.subr.mxu0 0.0
    %1593 = vmatpush1.msra.mxu0 %v1564
    %1594 = vmatprep.subr.mxu0 0.0
    %1595 = vmatpush1.msra.mxu0 %v1565
    %1596 = vmatprep.subr.mxu0 0.0
    %1597 = vmatpush1.msra.mxu0 %v1566
    %1598 = vmatprep.subr.mxu0 0.0
    %1599 = vmatpush1.msra.mxu0 %v1567
    %1600 = vmatprep.subr.mxu0 0.0
    %1601 = vmatpush1.msra.mxu0 %v1568
    %1602 = vmatprep.subr.mxu0 0.0
    %1603 = vmatpush1.msra.mxu0 %v1569
    %1604 = vmatprep.subr.mxu0 0.0
    %1605 = vmatpush1.msra.mxu0 %v1570
    %1606 = vmatprep.subr.mxu0 0.0
    %1607 = vmatpush1.msra.mxu0 %v1571
    %1608 = vmatprep.subr.mxu0 0.0
    %1609 = vmatpush1.msra.mxu0 %v1572
    %1610 = vmatprep.subr.mxu0 0.0
    %1611 = vmatpush1.msra.mxu0 %v1573
    %1612 = vmatprep.subr.mxu0 0.0
    %1613 = vmatpush1.msra.mxu0 %v1574
    %1614 = vmatprep.subr.mxu0 0.0
    %1615 = vmatpush1.msra.mxu0 %v1575
    %1616 = vmatprep.subr.mxu0 0.0
    %1617 = vmatpush1.msra.mxu0 0.0
    %1618 = vmatprep.subr.mxu0 0.0
    %1619 = vmatpush1.msra.mxu0 0.0
    %1620 = vmatprep.subr.mxu0 0.0
    %1621 = vmatpush1.msra.mxu0 0.0
    %1622 = vmatprep.subr.mxu0 0.0
    %1623 = vmatpush1.msra.mxu0 0.0
    %1624 = vmatprep.subr.mxu0 0.0
    %1625 = vmatpush1.msra.mxu0 0.0
    %1626 = vmatprep.subr.mxu0 0.0
    %1627 = vmatpush1.msra.mxu0 0.0
    %1628 = vmatprep.subr.mxu0 0.0
    %1629 = vmatpush1.msra.mxu0 0.0
    %1630 = vmatprep.subr.mxu0 0.0
    %1631 = vmatpush1.msra.mxu0 0.0
    %1632 = vmatprep.subr.mxu0 0.0
    %1633 = vmatpush1.msra.mxu0 0.0
    %1634 = vmatprep.subr.mxu0 0.0
    %1635 = vmatpush1.msra.mxu0 0.0
    %1636 = vmatprep.subr.mxu0 0.0
    %1637 = vmatpush1.msra.mxu0 0.0
    %1638 = vmatprep.subr.mxu0 0.0
    %1639 = vmatpush1.msra.mxu0 0.0
    %1640 = vmatprep.subr.mxu0 0.0
    %1641 = vmatpush1.msra.mxu0 0.0
    %1642 = vmatprep.subr.mxu0 0.0
    %1643 = vmatpush1.msra.mxu0 0.0
    %1644 = vmatprep.subr.mxu0 0.0
    %1645 = vmatpush1.msra.mxu0 0.0
    %1646 = vmatprep.subr.mxu0 0.0
    %1647 = vmatpush1.msra.mxu0 0.0
    %1648 = vmatprep.mubr.f32.mxu0 0.0
    %1649 = vmatmul.mubr.f32.gmra.mrb[0].mxu0 %v1543
    %v1650 = vpop.f32.mrb[0].mxu0
    %v1651 = vadd.f32 %v1582, %v1650
    %v1652 = vpop.f32.mrb[0].mxu0
    %1653 = vmatprep.mubr.f32.mxu0 0.0
    %1654 = vmatmul.mubr.f32.gmra.mrb[0].mxu0 %v1544
    %v1655 = vpop.f32.mrb[0].mxu0
    %v1656 = vadd.f32 %v1582, %v1655
    %v1657 = vpop.f32.mrb[0].mxu0
    %1658 = vmatprep.mubr.f32.mxu0 0.0
    %1659 = vmatmul.mubr.f32.gmra.mrb[0].mxu0 %v1545
    %v1660 = vpop.f32.mrb[0].mxu0
    %v1661 = vadd.f32 %v1582, %v1660
    %v1662 = vpop.f32.mrb[0].mxu0
    %1663 = vmatprep.mubr.f32.mxu0 0.0
    %1664 = vmatmul.mubr.f32.gmra.mrb[0].mxu0 %v1546
    %v1665 = vpop.f32.mrb[0].mxu0
    %v1666 = vadd.f32 %v1582, %v1665
    %v1667 = vpop.f32.mrb[0].mxu0
    %1668 = vmatprep.mubr.f32.mxu0 0.0
    %1669 = vmatmul.mubr.f32.gmra.mrb[0].mxu0 %v1547
    %v1670 = vpop.f32.mrb[0].mxu0
    %v1671 = vadd.f32 %v1582, %v1670
    %v1672 = vpop.f32.mrb[0].mxu0
    %1673 = vmatprep.mubr.f32.mxu0 0.0
    %1674 = vmatmul.mubr.f32.gmra.mrb[0].mxu0 %v1548
    %v1675 = vpop.f32.mrb[0].mxu0
    %v1676 = vadd.f32 %v1582, %v1675
    %v1677 = vpop.f32.mrb[0].mxu0
    %1678 = vmatprep.mubr.f32.mxu0 0.0
    %1679 = vmatmul.mubr.f32.gmra.mrb[0].mxu0 %v1549
    %v1680 = vpop.f32.mrb[0].mxu0
    %v1681 = vadd.f32 %v1582, %v1680
    %v1682 = vpop.f32.mrb[0].mxu0
    %1683 = vmatprep.mubr.f32.mxu0 0.0
    %1684 = vmatmul.mubr.f32.gmra.mrb[0].mxu0 %v1550
    %v1685 = vpop.f32.mrb[0].mxu0
    %v1686 = vadd.f32 %v1582, %v1685
    %v1687 = vpop.f32.mrb[0].mxu0
    %1688 = vmatprep.mubr.f32.mxu0 0.0
    %1689 = vmatmul.mubr.f32.gmra.mrb[0].mxu0 %v1551
    %v1690 = vpop.f32.mrb[0].mxu0
    %v1691 = vadd.f32 %v1582, %v1690
    %v1692 = vpop.f32.mrb[0].mxu0
    %1693 = vmatprep.mubr.f32.mxu0 0.0
    %1694 = vmatmul.mubr.f32.gmra.mrb[0].mxu0 %v1552
    %v1695 = vpop.f32.mrb[0].mxu0
    %v1696 = vadd.f32 %v1582, %v1695
    %v1697 = vpop.f32.mrb[0].mxu0
    %1698 = vmatprep.mubr.f32.mxu0 0.0
    %1699 = vmatmul.mubr.f32.gmra.mrb[0].mxu0 %v1553
    %v1700 = vpop.f32.mrb[0].mxu0
    %v1701 = vadd.f32 %v1582, %v1700
    %v1702 = vpop.f32.mrb[0].mxu0
    %1703 = vmatprep.mubr.f32.mxu0 0.0
    %1704 = vmatmul.mubr.f32.gmra.mrb[0].mxu0 %v1554
    %v1705 = vpop.f32.mrb[0].mxu0
    %v1706 = vadd.f32 %v1582, %v1705
    %v1707 = vpop.f32.mrb[0].mxu0
    %1708 = vmatprep.mubr.f32.mxu0 0.0
    %1709 = vmatmul.mubr.f32.gmra.mrb[0].mxu0 %v1555
    %v1710 = vpop.f32.mrb[0].mxu0
    %v1711 = vadd.f32 %v1582, %v1710
    %v1712 = vpop.f32.mrb[0].mxu0
    %1713 = vmatprep.mubr.f32.mxu0 0.0
    %1714 = vmatmul.mubr.f32.gmra.mrb[0].mxu0 %v1556
    %v1715 = vpop.f32.mrb[0].mxu0
    %v1716 = vadd.f32 %v1582, %v1715
    %v1717 = vpop.f32.mrb[0].mxu0
    %1718 = vmatprep.mubr.f32.mxu0 0.0
    %1719 = vmatmul.mubr.f32.gmra.mrb[0].mxu0 %v1557
    %v1720 = vpop.f32.mrb[0].mxu0
    %v1721 = vadd.f32 %v1582, %v1720
    %v1722 = vpop.f32.mrb[0].mxu0
    %1723 = vmatprep.mubr.f32.mxu0 0.0
    %1724 = vmatmul.mubr.f32.gmra.mrb[0].mxu0 %v1558
    %v1725 = vpop.f32.mrb[0].mxu0
    %v1726 = vadd.f32 %v1582, %v1725
    %v1727 = vpop.f32.mrb[0].mxu0
    %1728 = vdwg.mxu0
    %1729 = vmatprep.subr.mxu0 0.0
    %1730 = vmatpush1.msra.mxu0 %v1651
    %1731 = vmatprep.subr.mxu0 0.0
    %1732 = vmatpush1.msra.mxu0 %v1656
    %1733 = vmatprep.subr.mxu0 0.0
    %1734 = vmatpush1.msra.mxu0 %v1661
    %1735 = vmatprep.subr.mxu0 0.0
    %1736 = vmatpush1.msra.mxu0 %v1666
    %1737 = vmatprep.subr.mxu0 0.0
    %1738 = vmatpush1.msra.mxu0 %v1671
    %1739 = vmatprep.subr.mxu0 0.0
    %1740 = vmatpush1.msra.mxu0 %v1676
    %1741 = vmatprep.subr.mxu0 0.0
    %1742 = vmatpush1.msra.mxu0 %v1681
    %1743 = vmatprep.subr.mxu0 0.0
    %1744 = vmatpush1.msra.mxu0 %v1686
    %1745 = vmatprep.subr.mxu0 0.0
    %1746 = vmatpush1.msra.mxu0 %v1691
    %1747 = vmatprep.subr.mxu0 0.0
    %1748 = vmatpush1.msra.mxu0 %v1696
    %1749 = vmatprep.subr.mxu0 0.0
    %1750 = vmatpush1.msra.mxu0 %v1701
    %1751 = vmatprep.subr.mxu0 0.0
    %1752 = vmatpush1.msra.mxu0 %v1706
    %1753 = vmatprep.subr.mxu0 0.0
    %1754 = vmatpush1.msra.mxu0 %v1711
    %1755 = vmatprep.subr.mxu0 0.0
    %1756 = vmatpush1.msra.mxu0 %v1716
    %1757 = vmatprep.subr.mxu0 0.0
    %1758 = vmatpush1.msra.mxu0 %v1721
    %1759 = vmatprep.subr.mxu0 0.0
    %1760 = vmatpush1.msra.mxu0 %v1726
    %1761 = vmatprep.subr.mxu0 0.0
    %1762 = vmatpush1.msra.mxu0 0.0
    %1763 = vmatprep.subr.mxu0 0.0
    %1764 = vmatpush1.msra.mxu0 0.0
    %1765 = vmatprep.subr.mxu0 0.0
    %1766 = vmatpush1.msra.mxu0 0.0
    %1767 = vmatprep.subr.mxu0 0.0
    %1768 = vmatpush1.msra.mxu0 0.0
    %1769 = vmatprep.subr.mxu0 0.0
    %1770 = vmatpush1.msra.mxu0 0.0
    %1771 = vmatprep.subr.mxu0 0.0
    %1772 = vmatpush1.msra.mxu0 0.0
    %1773 = vmatprep.subr.mxu0 0.0
    %1774 = vmatpush1.msra.mxu0 0.0
    %1775 = vmatprep.subr.mxu0 0.0
    %1776 = vmatpush1.msra.mxu0 0.0
    %1777 = vmatprep.subr.mxu0 0.0
    %1778 = vmatpush1.msra.mxu0 0.0
    %1779 = vmatprep.subr.mxu0 0.0
    %1780 = vmatpush1.msra.mxu0 0.0
    %1781 = vmatprep.subr.mxu0 0.0
    %1782 = vmatpush1.msra.mxu0 0.0
    %1783 = vmatprep.subr.mxu0 0.0
    %1784 = vmatpush1.msra.mxu0 0.0
    %1785 = vmatprep.subr.mxu0 0.0
    %1786 = vmatpush1.msra.mxu0 0.0
    %1787 = vmatprep.subr.mxu0 0.0
    %1788 = vmatpush1.msra.mxu0 0.0
    %1789 = vmatprep.subr.mxu0 0.0
    %1790 = vmatpush1.msra.mxu0 0.0
    %1791 = vmatprep.subr.mxu0 0.0
    %1792 = vmatpush1.msra.mxu0 0.0
    %1793 = vmatprep.mubr.f32.mxu0 0.0
    %1794 = vmatmul.mubr.f32.gmra.mrb[0].mxu0 %v161
    %v1795 = vpop.f32.mrb[0].mxu0
    %v1796 = vadd.f32 0.0, %v1795
    %v1797 = vpop.f32.mrb[0].mxu0
    %1798 = vdwg.mxu0
    %v1799 = vmul.f32 %v1651, %v1651
    %v1800 = vmul.f32 %v1656, %v1656
    %v1801 = vmul.f32 %v1661, %v1661
    %v1802 = vmul.f32 %v1666, %v1666
    %v1803 = vmul.f32 %v1671, %v1671
    %v1804 = vmul.f32 %v1676, %v1676
    %v1805 = vmul.f32 %v1681, %v1681
    %v1806 = vmul.f32 %v1686, %v1686
    %v1807 = vmul.f32 %v1691, %v1691
    %v1808 = vmul.f32 %v1696, %v1696
    %v1809 = vmul.f32 %v1701, %v1701
    %v1810 = vmul.f32 %v1706, %v1706
    %v1811 = vmul.f32 %v1711, %v1711
    %v1812 = vmul.f32 %v1716, %v1716
    %v1813 = vmul.f32 %v1721, %v1721
    %v1814 = vmul.f32 %v1726, %v1726
    %1815 = vmatprep.subr.mxu0 0.0
    %1816 = vmatpush1.msra.mxu0 %v1799
    %1817 = vmatprep.subr.mxu0 0.0
    %1818 = vmatpush1.msra.mxu0 %v1800
    %1819 = vmatprep.subr.mxu0 0.0
    %1820 = vmatpush1.msra.mxu0 %v1801
    %1821 = vmatprep.subr.mxu0 0.0
    %1822 = vmatpush1.msra.mxu0 %v1802
    %1823 = vmatprep.subr.mxu0 0.0
    %1824 = vmatpush1.msra.mxu0 %v1803
    %1825 = vmatprep.subr.mxu0 0.0
    %1826 = vmatpush1.msra.mxu0 %v1804
    %1827 = vmatprep.subr.mxu0 0.0
    %1828 = vmatpush1.msra.mxu0 %v1805
    %1829 = vmatprep.subr.mxu0 0.0
    %1830 = vmatpush1.msra.mxu0 %v1806
    %1831 = vmatprep.subr.mxu0 0.0
    %1832 = vmatpush1.msra.mxu0 %v1807
    %1833 = vmatprep.subr.mxu0 0.0
    %1834 = vmatpush1.msra.mxu0 %v1808
    %1835 = vmatprep.subr.mxu0 0.0
    %1836 = vmatpush1.msra.mxu0 %v1809
    %1837 = vmatprep.subr.mxu0 0.0
    %1838 = vmatpush1.msra.mxu0 %v1810
    %1839 = vmatprep.subr.mxu0 0.0
    %1840 = vmatpush1.msra.mxu0 %v1811
    %1841 = vmatprep.subr.mxu0 0.0
    %1842 = vmatpush1.msra.mxu0 %v1812
    %1843 = vmatprep.subr.mxu0 0.0
    %1844 = vmatpush1.msra.mxu0 %v1813
    %1845 = vmatprep.subr.mxu0 0.0
    %1846 = vmatpush1.msra.mxu0 %v1814
    %1847 = vmatprep.subr.mxu0 0.0
    %1848 = vmatpush1.msra.mxu0 0.0
    %1849 = vmatprep.subr.mxu0 0.0
    %1850 = vmatpush1.msra.mxu0 0.0
    %1851 = vmatprep.subr.mxu0 0.0
    %1852 = vmatpush1.msra.mxu0 0.0
    %1853 = vmatprep.subr.mxu0 0.0
    %1854 = vmatpush1.msra.mxu0 0.0
    %1855 = vmatprep.subr.mxu0 0.0
    %1856 = vmatpush1.msra.mxu0 0.0
    %1857 = vmatprep.subr.mxu0 0.0
    %1858 = vmatpush1.msra.mxu0 0.0
    %1859 = vmatprep.subr.mxu0 0.0
    %1860 = vmatpush1.msra.mxu0 0.0
    %1861 = vmatprep.subr.mxu0 0.0
    %1862 = vmatpush1.msra.mxu0 0.0
    %1863 = vmatprep.subr.mxu0 0.0
    %1864 = vmatpush1.msra.mxu0 0.0
    %1865 = vmatprep.subr.mxu0 0.0
    %1866 = vmatpush1.msra.mxu0 0.0
    %1867 = vmatprep.subr.mxu0 0.0
    %1868 = vmatpush1.msra.mxu0 0.0
    %1869 = vmatprep.subr.mxu0 0.0
    %1870 = vmatpush1.msra.mxu0 0.0
    %1871 = vmatprep.subr.mxu0 0.0
    %1872 = vmatpush1.msra.mxu0 0.0
    %1873 = vmatprep.subr.mxu0 0.0
    %1874 = vmatpush1.msra.mxu0 0.0
    %1875 = vmatprep.subr.mxu0 0.0
    %1876 = vmatpush1.msra.mxu0 0.0
    %1877 = vmatprep.subr.mxu0 0.0
    %1878 = vmatpush1.msra.mxu0 0.0
    %1879 = vmatprep.mubr.f32.mxu0 0.0
    %1880 = vmatmul.mubr.f32.gmra.mrb[0].mxu0 %v161
    %v1881 = vpop.f32.mrb[0].mxu0
    %v1882 = vadd.f32 0.0, %v1881
    %v1883 = vpop.f32.mrb[0].mxu0
    %1884 = vdwg.mxu0
    %v1885 = vmul.f32 %v1796, 0.125
    %v1886 = vmul.f32 %v1882, 0.125
    %v1887 = vmul.f32 %v1885, %v1885
    %v1888 = vsub.f32 %v1886, %v1887
    %s1889 = scalar_lea.vmem %s8, 1
    %v1890 = vld [vmem:[%s1889] sm:$0x1]
    %v1891 = vadd.f32 %v1888, 1e-05
    %v1892 = vrsqrt.pop %v1891
    %v1893 = vmul.f32 %v1890, %v1892
    %v1895 = vlaneseq
    %v1896 = vshrl.u32 %v1895, 7
    %v1897 = vsub.s32 0, %v1896
    %v1898 = vrot.slane %v1893, %v1897
    %v1900 = vmul.f32 %v1651, %v1898
    %v1901 = vmul.f32 %v1656, %v1898
    %v1902 = vmul.f32 %v1661, %v1898
    %v1903 = vmul.f32 %v1666, %v1898
    %v1904 = vmul.f32 %v1671, %v1898
    %v1905 = vmul.f32 %v1676, %v1898
    %v1906 = vmul.f32 %v1681, %v1898
    %v1907 = vmul.f32 %v1686, %v1898
    %v1908 = vmul.f32 %v1691, %v1898
    %v1909 = vmul.f32 %v1696, %v1898
    %v1910 = vmul.f32 %v1701, %v1898
    %v1911 = vmul.f32 %v1706, %v1898
    %v1912 = vmul.f32 %v1711, %v1898
    %v1913 = vmul.f32 %v1716, %v1898
    %v1914 = vmul.f32 %v1721, %v1898
    %v1915 = vmul.f32 %v1726, %v1898
    %s1916 = scalar_lea.vmem %s9, 1
    %v1917 = vld [vmem:[%s1916] sm:$0x1]
    %v1918 = vmul.f32 %v1885, %v1893
    %v1919 = vsub.f32 %v1917, %v1918
    %v1921 = vlaneseq
    %v1922 = vshrl.u32 %v1921, 7
    %v1923 = vsub.s32 0, %v1922
    %v1924 = vrot.slane %v1919, %v1923
    %v1926 = vadd.f32 %v1900, %v1924
    %v1927 = vadd.f32 %v1901, %v1924
    %v1928 = vadd.f32 %v1902, %v1924
    %v1929 = vadd.f32 %v1903, %v1924
    %v1930 = vadd.f32 %v1904, %v1924
    %v1931 = vadd.f32 %v1905, %v1924
    %v1932 = vadd.f32 %v1906, %v1924
    %v1933 = vadd.f32 %v1907, %v1924
    %v1934 = vadd.f32 %v1908, %v1924
    %v1935 = vadd.f32 %v1909, %v1924
    %v1936 = vadd.f32 %v1910, %v1924
    %v1937 = vadd.f32 %v1911, %v1924
    %v1938 = vadd.f32 %v1912, %v1924
    %v1939 = vadd.f32 %v1913, %v1924
    %v1940 = vadd.f32 %v1914, %v1924
    %v1941 = vadd.f32 %v1915, %v1924
    %v1942 = vmax.f32 %v1926, 0.0
    %v1943 = vmax.f32 %v1927, 0.0
    %v1944 = vmax.f32 %v1928, 0.0
    %v1945 = vmax.f32 %v1929, 0.0
    %v1946 = vmax.f32 %v1930, 0.0
    %v1947 = vmax.f32 %v1931, 0.0
    %v1948 = vmax.f32 %v1932, 0.0
    %v1949 = vmax.f32 %v1933, 0.0
    %v1950 = vmax.f32 %v1934, 0.0
    %v1951 = vmax.f32 %v1935, 0.0
    %v1952 = vmax.f32 %v1936, 0.0
    %v1953 = vmax.f32 %v1937, 0.0
    %v1954 = vmax.f32 %v1938, 0.0
    %v1955 = vmax.f32 %v1939, 0.0
    %v1956 = vmax.f32 %v1940, 0.0
    %v1957 = vmax.f32 %v1941, 0.0
    %s1958 = scalar_lea.vmem [#allocation5], 16
    %v1959 = vld [vmem:[%s1958] sm:$0xff]
    %1960 = vmatprep.subr.mxu0 0.0
    %1961 = vmatpush1.msra.mxu0 %v1959
    %1962 = vmatprep.subr.mxu0 0.0
    %1963 = vmatpush1.msra.mxu0 0.0
    %1964 = vmatprep.subr.mxu0 0.0
    %1965 = vmatpush1.msra.mxu0 0.0
    %1966 = vmatprep.subr.mxu0 0.0
    %1967 = vmatpush1.msra.mxu0 0.0
    %1968 = vmatprep.subr.mxu0 0.0
    %1969 = vmatpush1.msra.mxu0 0.0
    %1970 = vmatprep.subr.mxu0 0.0
    %1971 = vmatpush1.msra.mxu0 0.0
    %1972 = vmatprep.subr.mxu0 0.0
    %1973 = vmatpush1.msra.mxu0 0.0
    %1974 = vmatprep.subr.mxu0 0.0
    %1975 = vmatpush1.msra.mxu0 0.0
    %1976 = vmatprep.subr.mxu0 0.0
    %1977 = vmatpush1.msra.mxu0 0.0
    %1978 = vmatprep.subr.mxu0 0.0
    %1979 = vmatpush1.msra.mxu0 0.0
    %1980 = vmatprep.subr.mxu0 0.0
    %1981 = vmatpush1.msra.mxu0 0.0
    %1982 = vmatprep.subr.mxu0 0.0
    %1983 = vmatpush1.msra.mxu0 0.0
    %1984 = vmatprep.subr.mxu0 0.0
    %1985 = vmatpush1.msra.mxu0 0.0
    %1986 = vmatprep.subr.mxu0 0.0
    %1987 = vmatpush1.msra.mxu0 0.0
    %1988 = vmatprep.subr.mxu0 0.0
    %1989 = vmatpush1.msra.mxu0 0.0
    %1990 = vmatprep.subr.mxu0 0.0
    %1991 = vmatpush1.msra.mxu0 0.0
    %1992 = vmatprep.subr.mxu0 0.0
    %1993 = vmatpush1.msra.mxu0 0.0
    %1994 = vmatprep.subr.mxu0 0.0
    %1995 = vmatpush1.msra.mxu0 0.0
    %1996 = vmatprep.subr.mxu0 0.0
    %1997 = vmatpush1.msra.mxu0 0.0
    %1998 = vmatprep.subr.mxu0 0.0
    %1999 = vmatpush1.msra.mxu0 0.0
    %2000 = vmatprep.subr.mxu0 0.0
    %2001 = vmatpush1.msra.mxu0 0.0
    %2002 = vmatprep.subr.mxu0 0.0
    %2003 = vmatpush1.msra.mxu0 0.0
    %2004 = vmatprep.subr.mxu0 0.0
    %2005 = vmatpush1.msra.mxu0 0.0
    %2006 = vmatprep.subr.mxu0 0.0
    %2007 = vmatpush1.msra.mxu0 0.0
    %2008 = vmatprep.subr.mxu0 0.0
    %2009 = vmatpush1.msra.mxu0 0.0
    %2010 = vmatprep.subr.mxu0 0.0
    %2011 = vmatpush1.msra.mxu0 0.0
    %2012 = vmatprep.subr.mxu0 0.0
    %2013 = vmatpush1.msra.mxu0 0.0
    %2014 = vmatprep.subr.mxu0 0.0
    %2015 = vmatpush1.msra.mxu0 0.0
    %2016 = vmatprep.subr.mxu0 0.0
    %2017 = vmatpush1.msra.mxu0 0.0
    %2018 = vmatprep.subr.mxu0 0.0
    %2019 = vmatpush1.msra.mxu0 0.0
    %2020 = vmatprep.subr.mxu0 0.0
    %2021 = vmatpush1.msra.mxu0 0.0
    %2022 = vmatprep.subr.mxu0 0.0
    %2023 = vmatpush1.msra.mxu0 0.0
    %2024 = vmatprep.mubr.f32.mxu0 0.0
    %2025 = vmatmul.mubr.f32.gmra.mrb[0].mxu0 %v165
    %v2026 = vpop.f32.mrb[0].mxu0
    %v2027 = vadd.f32 0.0, %v2026
    %v2028 = vpop.f32.mrb[0].mxu0
    %2029 = vmatprep.mubr.f32.mxu0 0.0
    %2030 = vmatmul.mubr.f32.gmra.mrb[0].mxu0 %v168
    %v2031 = vpop.f32.mrb[0].mxu0
    %v2032 = vadd.f32 0.0, %v2031
    %v2033 = vpop.f32.mrb[0].mxu0
    %2034 = vmatprep.mubr.f32.mxu0 0.0
    %2035 = vmatmul.mubr.f32.gmra.mrb[0].mxu0 %v171
    %v2036 = vpop.f32.mrb[0].mxu0
    %v2037 = vadd.f32 0.0, %v2036
    %v2038 = vpop.f32.mrb[0].mxu0
    %2039 = vmatprep.mubr.f32.mxu0 0.0
    %2040 = vmatmul.mubr.f32.gmra.mrb[0].mxu0 %v174
    %v2041 = vpop.f32.mrb[0].mxu0
    %v2042 = vadd.f32 0.0, %v2041
    %v2043 = vpop.f32.mrb[0].mxu0
    %2044 = vmatprep.mubr.f32.mxu0 0.0
    %2045 = vmatmul.mubr.f32.gmra.mrb[0].mxu0 %v177
    %v2046 = vpop.f32.mrb[0].mxu0
    %v2047 = vadd.f32 0.0, %v2046
    %v2048 = vpop.f32.mrb[0].mxu0
    %2049 = vmatprep.mubr.f32.mxu0 0.0
    %2050 = vmatmul.mubr.f32.gmra.mrb[0].mxu0 %v180
    %v2051 = vpop.f32.mrb[0].mxu0
    %v2052 = vadd.f32 0.0, %v2051
    %v2053 = vpop.f32.mrb[0].mxu0
    %2054 = vmatprep.mubr.f32.mxu0 0.0
    %2055 = vmatmul.mubr.f32.gmra.mrb[0].mxu0 %v183
    %v2056 = vpop.f32.mrb[0].mxu0
    %v2057 = vadd.f32 0.0, %v2056
    %v2058 = vpop.f32.mrb[0].mxu0
    %2059 = vmatprep.mubr.f32.mxu0 0.0
    %2060 = vmatmul.mubr.f32.gmra.mrb[0].mxu0 %v186
    %v2061 = vpop.f32.mrb[0].mxu0
    %v2062 = vadd.f32 0.0, %v2061
    %v2063 = vpop.f32.mrb[0].mxu0
    %2064 = vmatprep.mubr.f32.mxu0 0.0
    %2065 = vmatmul.mubr.f32.gmra.mrb[0].mxu0 %v189
    %v2066 = vpop.f32.mrb[0].mxu0
    %v2067 = vadd.f32 0.0, %v2066
    %v2068 = vpop.f32.mrb[0].mxu0
    %2069 = vmatprep.mubr.f32.mxu0 0.0
    %2070 = vmatmul.mubr.f32.gmra.mrb[0].mxu0 %v192
    %v2071 = vpop.f32.mrb[0].mxu0
    %v2072 = vadd.f32 0.0, %v2071
    %v2073 = vpop.f32.mrb[0].mxu0
    %2074 = vmatprep.mubr.f32.mxu0 0.0
    %2075 = vmatmul.mubr.f32.gmra.mrb[0].mxu0 %v195
    %v2076 = vpop.f32.mrb[0].mxu0
    %v2077 = vadd.f32 0.0, %v2076
    %v2078 = vpop.f32.mrb[0].mxu0
    %2079 = vmatprep.mubr.f32.mxu0 0.0
    %2080 = vmatmul.mubr.f32.gmra.mrb[0].mxu0 %v198
    %v2081 = vpop.f32.mrb[0].mxu0
    %v2082 = vadd.f32 0.0, %v2081
    %v2083 = vpop.f32.mrb[0].mxu0
    %2084 = vmatprep.mubr.f32.mxu0 0.0
    %2085 = vmatmul.mubr.f32.gmra.mrb[0].mxu0 %v201
    %v2086 = vpop.f32.mrb[0].mxu0
    %v2087 = vadd.f32 0.0, %v2086
    %v2088 = vpop.f32.mrb[0].mxu0
    %2089 = vmatprep.mubr.f32.mxu0 0.0
    %2090 = vmatmul.mubr.f32.gmra.mrb[0].mxu0 %v204
    %v2091 = vpop.f32.mrb[0].mxu0
    %v2092 = vadd.f32 0.0, %v2091
    %v2093 = vpop.f32.mrb[0].mxu0
    %2094 = vmatprep.mubr.f32.mxu0 0.0
    %2095 = vmatmul.mubr.f32.gmra.mrb[0].mxu0 %v207
    %v2096 = vpop.f32.mrb[0].mxu0
    %v2097 = vadd.f32 0.0, %v2096
    %v2098 = vpop.f32.mrb[0].mxu0
    %2099 = vmatprep.mubr.f32.mxu0 0.0
    %2100 = vmatmul.mubr.f32.gmra.mrb[0].mxu0 %v210
    %v2101 = vpop.f32.mrb[0].mxu0
    %v2102 = vadd.f32 0.0, %v2101
    %v2103 = vpop.f32.mrb[0].mxu0
    %2104 = vdwg.mxu0
    %2105 = vmatprep.subr.mxu0 0.0
    %2106 = vmatpush1.msra.mxu0 %v1942
    %2107 = vmatprep.subr.mxu0 0.0
    %2108 = vmatpush1.msra.mxu0 %v1943
    %2109 = vmatprep.subr.mxu0 0.0
    %2110 = vmatpush1.msra.mxu0 %v1944
    %2111 = vmatprep.subr.mxu0 0.0
    %2112 = vmatpush1.msra.mxu0 %v1945
    %2113 = vmatprep.subr.mxu0 0.0
    %2114 = vmatpush1.msra.mxu0 %v1946
    %2115 = vmatprep.subr.mxu0 0.0
    %2116 = vmatpush1.msra.mxu0 %v1947
    %2117 = vmatprep.subr.mxu0 0.0
    %2118 = vmatpush1.msra.mxu0 %v1948
    %2119 = vmatprep.subr.mxu0 0.0
    %2120 = vmatpush1.msra.mxu0 %v1949
    %2121 = vmatprep.subr.mxu0 0.0
    %2122 = vmatpush1.msra.mxu0 %v1950
    %2123 = vmatprep.subr.mxu0 0.0
    %2124 = vmatpush1.msra.mxu0 %v1951
    %2125 = vmatprep.subr.mxu0 0.0
    %2126 = vmatpush1.msra.mxu0 %v1952
    %2127 = vmatprep.subr.mxu0 0.0
    %2128 = vmatpush1.msra.mxu0 %v1953
    %2129 = vmatprep.subr.mxu0 0.0
    %2130 = vmatpush1.msra.mxu0 %v1954
    %2131 = vmatprep.subr.mxu0 0.0
    %2132 = vmatpush1.msra.mxu0 %v1955
    %2133 = vmatprep.subr.mxu0 0.0
    %2134 = vmatpush1.msra.mxu0 %v1956
    %2135 = vmatprep.subr.mxu0 0.0
    %2136 = vmatpush1.msra.mxu0 %v1957
    %2137 = vmatprep.subr.mxu0 0.0
    %2138 = vmatpush1.msra.mxu0 0.0
    %2139 = vmatprep.subr.mxu0 0.0
    %2140 = vmatpush1.msra.mxu0 0.0
    %2141 = vmatprep.subr.mxu0 0.0
    %2142 = vmatpush1.msra.mxu0 0.0
    %2143 = vmatprep.subr.mxu0 0.0
    %2144 = vmatpush1.msra.mxu0 0.0
    %2145 = vmatprep.subr.mxu0 0.0
    %2146 = vmatpush1.msra.mxu0 0.0
    %2147 = vmatprep.subr.mxu0 0.0
    %2148 = vmatpush1.msra.mxu0 0.0
    %2149 = vmatprep.subr.mxu0 0.0
    %2150 = vmatpush1.msra.mxu0 0.0
    %2151 = vmatprep.subr.mxu0 0.0
    %2152 = vmatpush1.msra.mxu0 0.0
    %2153 = vmatprep.subr.mxu0 0.0
    %2154 = vmatpush1.msra.mxu0 0.0
    %2155 = vmatprep.subr.mxu0 0.0
    %2156 = vmatpush1.msra.mxu0 0.0
    %2157 = vmatprep.subr.mxu0 0.0
    %2158 = vmatpush1.msra.mxu0 0.0
    %2159 = vmatprep.subr.mxu0 0.0
    %2160 = vmatpush1.msra.mxu0 0.0
    %2161 = vmatprep.subr.mxu0 0.0
    %2162 = vmatpush1.msra.mxu0 0.0
    %2163 = vmatprep.subr.mxu0 0.0
    %2164 = vmatpush1.msra.mxu0 0.0
    %2165 = vmatprep.subr.mxu0 0.0
    %2166 = vmatpush1.msra.mxu0 0.0
    %2167 = vmatprep.subr.mxu0 0.0
    %2168 = vmatpush1.msra.mxu0 0.0
    %2169 = vmatprep.mubr.f32.mxu0 0.0
    %2170 = vmatmul.mubr.f32.gmra.mrb[0].mxu0 %v129
    %v2171 = vpop.f32.mrb[0].mxu0
    %v2172 = vadd.f32 %v2027, %v2171
    %v2173 = vpop.f32.mrb[0].mxu0
    %2174 = vmatprep.mubr.f32.mxu0 0.0
    %2175 = vmatmul.mubr.f32.gmra.mrb[0].mxu0 %v130
    %v2176 = vpop.f32.mrb[0].mxu0
    %v2177 = vadd.f32 %v2032, %v2176
    %v2178 = vpop.f32.mrb[0].mxu0
    %2179 = vmatprep.mubr.f32.mxu0 0.0
    %2180 = vmatmul.mubr.f32.gmra.mrb[0].mxu0 %v131
    %v2181 = vpop.f32.mrb[0].mxu0
    %v2182 = vadd.f32 %v2037, %v2181
    %v2183 = vpop.f32.mrb[0].mxu0
    %2184 = vmatprep.mubr.f32.mxu0 0.0
    %2185 = vmatmul.mubr.f32.gmra.mrb[0].mxu0 %v132
    %v2186 = vpop.f32.mrb[0].mxu0
    %v2187 = vadd.f32 %v2042, %v2186
    %v2188 = vpop.f32.mrb[0].mxu0
    %2189 = vmatprep.mubr.f32.mxu0 0.0
    %2190 = vmatmul.mubr.f32.gmra.mrb[0].mxu0 %v133
    %v2191 = vpop.f32.mrb[0].mxu0
    %v2192 = vadd.f32 %v2047, %v2191
    %v2193 = vpop.f32.mrb[0].mxu0
    %2194 = vmatprep.mubr.f32.mxu0 0.0
    %2195 = vmatmul.mubr.f32.gmra.mrb[0].mxu0 %v134
    %v2196 = vpop.f32.mrb[0].mxu0
    %v2197 = vadd.f32 %v2052, %v2196
    %v2198 = vpop.f32.mrb[0].mxu0
    %2199 = vmatprep.mubr.f32.mxu0 0.0
    %2200 = vmatmul.mubr.f32.gmra.mrb[0].mxu0 %v135
    %v2201 = vpop.f32.mrb[0].mxu0
    %v2202 = vadd.f32 %v2057, %v2201
    %v2203 = vpop.f32.mrb[0].mxu0
    %2204 = vmatprep.mubr.f32.mxu0 0.0
    %2205 = vmatmul.mubr.f32.gmra.mrb[0].mxu0 %v136
    %v2206 = vpop.f32.mrb[0].mxu0
    %v2207 = vadd.f32 %v2062, %v2206
    %v2208 = vpop.f32.mrb[0].mxu0
    %2209 = vmatprep.mubr.f32.mxu0 0.0
    %2210 = vmatmul.mubr.f32.gmra.mrb[0].mxu0 %v137
    %v2211 = vpop.f32.mrb[0].mxu0
    %v2212 = vadd.f32 %v2067, %v2211
    %v2213 = vpop.f32.mrb[0].mxu0
    %2214 = vmatprep.mubr.f32.mxu0 0.0
    %2215 = vmatmul.mubr.f32.gmra.mrb[0].mxu0 %v138
    %v2216 = vpop.f32.mrb[0].mxu0
    %v2217 = vadd.f32 %v2072, %v2216
    %v2218 = vpop.f32.mrb[0].mxu0
    %2219 = vmatprep.mubr.f32.mxu0 0.0
    %2220 = vmatmul.mubr.f32.gmra.mrb[0].mxu0 %v139
    %v2221 = vpop.f32.mrb[0].mxu0
    %v2222 = vadd.f32 %v2077, %v2221
    %v2223 = vpop.f32.mrb[0].mxu0
    %2224 = vmatprep.mubr.f32.mxu0 0.0
    %2225 = vmatmul.mubr.f32.gmra.mrb[0].mxu0 %v140
    %v2226 = vpop.f32.mrb[0].mxu0
    %v2227 = vadd.f32 %v2082, %v2226
    %v2228 = vpop.f32.mrb[0].mxu0
    %2229 = vmatprep.mubr.f32.mxu0 0.0
    %2230 = vmatmul.mubr.f32.gmra.mrb[0].mxu0 %v141
    %v2231 = vpop.f32.mrb[0].mxu0
    %v2232 = vadd.f32 %v2087, %v2231
    %v2233 = vpop.f32.mrb[0].mxu0
    %2234 = vmatprep.mubr.f32.mxu0 0.0
    %2235 = vmatmul.mubr.f32.gmra.mrb[0].mxu0 %v142
    %v2236 = vpop.f32.mrb[0].mxu0
    %v2237 = vadd.f32 %v2092, %v2236
    %v2238 = vpop.f32.mrb[0].mxu0
    %2239 = vmatprep.mubr.f32.mxu0 0.0
    %2240 = vmatmul.mubr.f32.gmra.mrb[0].mxu0 %v143
    %v2241 = vpop.f32.mrb[0].mxu0
    %v2242 = vadd.f32 %v2097, %v2241
    %v2243 = vpop.f32.mrb[0].mxu0
    %2244 = vmatprep.mubr.f32.mxu0 0.0
    %2245 = vmatmul.mubr.f32.gmra.mrb[0].mxu0 %v144
    %v2246 = vpop.f32.mrb[0].mxu0
    %v2247 = vadd.f32 %v2102, %v2246
    %v2248 = vpop.f32.mrb[0].mxu0
    %2249 = vdwg.mxu0
    %s2250 = scalar_lea.vmem [#allocation7], 256
    %v2251 = vld [vmem:[%s2250] sm:$0xff]
    %v2252 = vld [vmem:[%s2250 + $0x8] sm:$0xff]
    %v2253 = vld [vmem:[%s2250 + $0x10] sm:$0xff]
    %v2254 = vld [vmem:[%s2250 + $0x18] sm:$0xff]
    %v2255 = vld [vmem:[%s2250 + $0x20] sm:$0xff]
    %v2256 = vld [vmem:[%s2250 + $0x28] sm:$0xff]
    %v2257 = vld [vmem:[%s2250 + $0x30] sm:$0xff]
    %v2258 = vld [vmem:[%s2250 + $0x38] sm:$0xff]
    %v2259 = vld [vmem:[%s2250 + $0x40] sm:$0xff]
    %v2260 = vld [vmem:[%s2250 + $0x48] sm:$0xff]
    %v2261 = vld [vmem:[%s2250 + $0x50] sm:$0xff]
    %v2262 = vld [vmem:[%s2250 + $0x58] sm:$0xff]
    %v2263 = vld [vmem:[%s2250 + $0x60] sm:$0xff]
    %v2264 = vld [vmem:[%s2250 + $0x68] sm:$0xff]
    %v2265 = vld [vmem:[%s2250 + $0x70] sm:$0xff]
    %v2266 = vld [vmem:[%s2250 + $0x78] sm:$0xff]
    %s2267 = scalar_lea.vmem %s5, 2
    %v2268 = vld [vmem:[%s2267] sm:$0x1]
    %v2270 = vlaneseq
    %v2271 = vshrl.u32 %v2270, 7
    %v2272 = vsub.s32 0, %v2271
    %v2273 = vrot.slane %v2268, %v2272
    %2275 = vmatprep.subr.mxu0 0.0
    %2276 = vmatpush1.msra.mxu0 %v2251
    %2277 = vmatprep.subr.mxu0 0.0
    %2278 = vmatpush1.msra.mxu0 %v2252
    %2279 = vmatprep.subr.mxu0 0.0
    %2280 = vmatpush1.msra.mxu0 %v2253
    %2281 = vmatprep.subr.mxu0 0.0
    %2282 = vmatpush1.msra.mxu0 %v2254
    %2283 = vmatprep.subr.mxu0 0.0
    %2284 = vmatpush1.msra.mxu0 %v2255
    %2285 = vmatprep.subr.mxu0 0.0
    %2286 = vmatpush1.msra.mxu0 %v2256
    %2287 = vmatprep.subr.mxu0 0.0
    %2288 = vmatpush1.msra.mxu0 %v2257
    %2289 = vmatprep.subr.mxu0 0.0
    %2290 = vmatpush1.msra.mxu0 %v2258
    %2291 = vmatprep.subr.mxu0 0.0
    %2292 = vmatpush1.msra.mxu0 %v2259
    %2293 = vmatprep.subr.mxu0 0.0
    %2294 = vmatpush1.msra.mxu0 %v2260
    %2295 = vmatprep.subr.mxu0 0.0
    %2296 = vmatpush1.msra.mxu0 %v2261
    %2297 = vmatprep.subr.mxu0 0.0
    %2298 = vmatpush1.msra.mxu0 %v2262
    %2299 = vmatprep.subr.mxu0 0.0
    %2300 = vmatpush1.msra.mxu0 %v2263
    %2301 = vmatprep.subr.mxu0 0.0
    %2302 = vmatpush1.msra.mxu0 %v2264
    %2303 = vmatprep.subr.mxu0 0.0
    %2304 = vmatpush1.msra.mxu0 %v2265
    %2305 = vmatprep.subr.mxu0 0.0
    %2306 = vmatpush1.msra.mxu0 %v2266
    %2307 = vmatprep.subr.mxu0 0.0
    %2308 = vmatpush1.msra.mxu0 0.0
    %2309 = vmatprep.subr.mxu0 0.0
    %2310 = vmatpush1.msra.mxu0 0.0
    %2311 = vmatprep.subr.mxu0 0.0
    %2312 = vmatpush1.msra.mxu0 0.0
    %2313 = vmatprep.subr.mxu0 0.0
    %2314 = vmatpush1.msra.mxu0 0.0
    %2315 = vmatprep.subr.mxu0 0.0
    %2316 = vmatpush1.msra.mxu0 0.0
    %2317 = vmatprep.subr.mxu0 0.0
    %2318 = vmatpush1.msra.mxu0 0.0
    %2319 = vmatprep.subr.mxu0 0.0
    %2320 = vmatpush1.msra.mxu0 0.0
    %2321 = vmatprep.subr.mxu0 0.0
    %2322 = vmatpush1.msra.mxu0 0.0
    %2323 = vmatprep.subr.mxu0 0.0
    %2324 = vmatpush1.msra.mxu0 0.0
    %2325 = vmatprep.subr.mxu0 0.0
    %2326 = vmatpush1.msra.mxu0 0.0
    %2327 = vmatprep.subr.mxu0 0.0
    %2328 = vmatpush1.msra.mxu0 0.0
    %2329 = vmatprep.subr.mxu0 0.0
    %2330 = vmatpush1.msra.mxu0 0.0
    %2331 = vmatprep.subr.mxu0 0.0
    %2332 = vmatpush1.msra.mxu0 0.0
    %2333 = vmatprep.subr.mxu0 0.0
    %2334 = vmatpush1.msra.mxu0 0.0
    %2335 = vmatprep.subr.mxu0 0.0
    %2336 = vmatpush1.msra.mxu0 0.0
    %2337 = vmatprep.subr.mxu0 0.0
    %2338 = vmatpush1.msra.mxu0 0.0
    %2339 = vmatprep.mubr.f32.mxu0 0.0
    %2340 = vmatmul.mubr.f32.gmra.mrb[0].mxu0 %v2172
    %v2341 = vpop.f32.mrb[0].mxu0
    %v2342 = vadd.f32 %v2273, %v2341
    %v2343 = vpop.f32.mrb[0].mxu0
    %2344 = vmatprep.mubr.f32.mxu0 0.0
    %2345 = vmatmul.mubr.f32.gmra.mrb[0].mxu0 %v2177
    %v2346 = vpop.f32.mrb[0].mxu0
    %v2347 = vadd.f32 %v2273, %v2346
    %v2348 = vpop.f32.mrb[0].mxu0
    %2349 = vmatprep.mubr.f32.mxu0 0.0
    %2350 = vmatmul.mubr.f32.gmra.mrb[0].mxu0 %v2182
    %v2351 = vpop.f32.mrb[0].mxu0
    %v2352 = vadd.f32 %v2273, %v2351
    %v2353 = vpop.f32.mrb[0].mxu0
    %2354 = vmatprep.mubr.f32.mxu0 0.0
    %2355 = vmatmul.mubr.f32.gmra.mrb[0].mxu0 %v2187
    %v2356 = vpop.f32.mrb[0].mxu0
    %v2357 = vadd.f32 %v2273, %v2356
    %v2358 = vpop.f32.mrb[0].mxu0
    %2359 = vmatprep.mubr.f32.mxu0 0.0
    %2360 = vmatmul.mubr.f32.gmra.mrb[0].mxu0 %v2192
    %v2361 = vpop.f32.mrb[0].mxu0
    %v2362 = vadd.f32 %v2273, %v2361
    %v2363 = vpop.f32.mrb[0].mxu0
    %2364 = vmatprep.mubr.f32.mxu0 0.0
    %2365 = vmatmul.mubr.f32.gmra.mrb[0].mxu0 %v2197
    %v2366 = vpop.f32.mrb[0].mxu0
    %v2367 = vadd.f32 %v2273, %v2366
    %v2368 = vpop.f32.mrb[0].mxu0
    %2369 = vmatprep.mubr.f32.mxu0 0.0
    %2370 = vmatmul.mubr.f32.gmra.mrb[0].mxu0 %v2202
    %v2371 = vpop.f32.mrb[0].mxu0
    %v2372 = vadd.f32 %v2273, %v2371
    %v2373 = vpop.f32.mrb[0].mxu0
    %2374 = vmatprep.mubr.f32.mxu0 0.0
    %2375 = vmatmul.mubr.f32.gmra.mrb[0].mxu0 %v2207
    %v2376 = vpop.f32.mrb[0].mxu0
    %v2377 = vadd.f32 %v2273, %v2376
    %v2378 = vpop.f32.mrb[0].mxu0
    %2379 = vmatprep.mubr.f32.mxu0 0.0
    %2380 = vmatmul.mubr.f32.gmra.mrb[0].mxu0 %v2212
    %v2381 = vpop.f32.mrb[0].mxu0
    %v2382 = vadd.f32 %v2273, %v2381
    %v2383 = vpop.f32.mrb[0].mxu0
    %2384 = vmatprep.mubr.f32.mxu0 0.0
    %2385 = vmatmul.mubr.f32.gmra.mrb[0].mxu0 %v2217
    %v2386 = vpop.f32.mrb[0].mxu0
    %v2387 = vadd.f32 %v2273, %v2386
    %v2388 = vpop.f32.mrb[0].mxu0
    %2389 = vmatprep.mubr.f32.mxu0 0.0
    %2390 = vmatmul.mubr.f32.gmra.mrb[0].mxu0 %v2222
    %v2391 = vpop.f32.mrb[0].mxu0
    %v2392 = vadd.f32 %v2273, %v2391
    %v2393 = vpop.f32.mrb[0].mxu0
    %2394 = vmatprep.mubr.f32.mxu0 0.0
    %2395 = vmatmul.mubr.f32.gmra.mrb[0].mxu0 %v2227
    %v2396 = vpop.f32.mrb[0].mxu0
    %v2397 = vadd.f32 %v2273, %v2396
    %v2398 = vpop.f32.mrb[0].mxu0
    %2399 = vmatprep.mubr.f32.mxu0 0.0
    %2400 = vmatmul.mubr.f32.gmra.mrb[0].mxu0 %v2232
    %v2401 = vpop.f32.mrb[0].mxu0
    %v2402 = vadd.f32 %v2273, %v2401
    %v2403 = vpop.f32.mrb[0].mxu0
    %2404 = vmatprep.mubr.f32.mxu0 0.0
    %2405 = vmatmul.mubr.f32.gmra.mrb[0].mxu0 %v2237
    %v2406 = vpop.f32.mrb[0].mxu0
    %v2407 = vadd.f32 %v2273, %v2406
    %v2408 = vpop.f32.mrb[0].mxu0
    %2409 = vmatprep.mubr.f32.mxu0 0.0
    %2410 = vmatmul.mubr.f32.gmra.mrb[0].mxu0 %v2242
    %v2411 = vpop.f32.mrb[0].mxu0
    %v2412 = vadd.f32 %v2273, %v2411
    %v2413 = vpop.f32.mrb[0].mxu0
    %2414 = vmatprep.mubr.f32.mxu0 0.0
    %2415 = vmatmul.mubr.f32.gmra.mrb[0].mxu0 %v2247
    %v2416 = vpop.f32.mrb[0].mxu0
    %v2417 = vadd.f32 %v2273, %v2416
    %v2418 = vpop.f32.mrb[0].mxu0
    %2419 = vdwg.mxu0
    %v2420 = vmax.f32 %v2342, 0.0
    %v2421 = vmax.f32 %v2347, 0.0
    %v2422 = vmax.f32 %v2352, 0.0
    %v2423 = vmax.f32 %v2357, 0.0
    %v2424 = vmax.f32 %v2362, 0.0
    %v2425 = vmax.f32 %v2367, 0.0
    %v2426 = vmax.f32 %v2372, 0.0
    %v2427 = vmax.f32 %v2377, 0.0
    %v2428 = vmax.f32 %v2382, 0.0
    %v2429 = vmax.f32 %v2387, 0.0
    %v2430 = vmax.f32 %v2392, 0.0
    %v2431 = vmax.f32 %v2397, 0.0
    %v2432 = vmax.f32 %v2402, 0.0
    %v2433 = vmax.f32 %v2407, 0.0
    %v2434 = vmax.f32 %v2412, 0.0
    %v2435 = vmax.f32 %v2417, 0.0
    %s2436 = scalar_lea.vmem [#allocation8], 256
    %v2437 = vld [vmem:[%s2436] sm:$0xff]
    %v2438 = vld [vmem:[%s2436 + $0x8] sm:$0xff]
    %v2439 = vld [vmem:[%s2436 + $0x10] sm:$0xff]
    %v2440 = vld [vmem:[%s2436 + $0x18] sm:$0xff]
    %v2441 = vld [vmem:[%s2436 + $0x20] sm:$0xff]
    %v2442 = vld [vmem:[%s2436 + $0x28] sm:$0xff]
    %v2443 = vld [vmem:[%s2436 + $0x30] sm:$0xff]
    %v2444 = vld [vmem:[%s2436 + $0x38] sm:$0xff]
    %v2445 = vld [vmem:[%s2436 + $0x40] sm:$0xff]
    %v2446 = vld [vmem:[%s2436 + $0x48] sm:$0xff]
    %v2447 = vld [vmem:[%s2436 + $0x50] sm:$0xff]
    %v2448 = vld [vmem:[%s2436 + $0x58] sm:$0xff]
    %v2449 = vld [vmem:[%s2436 + $0x60] sm:$0xff]
    %v2450 = vld [vmem:[%s2436 + $0x68] sm:$0xff]
    %v2451 = vld [vmem:[%s2436 + $0x70] sm:$0xff]
    %v2452 = vld [vmem:[%s2436 + $0x78] sm:$0xff]
    %s2453 = scalar_lea.vmem %s7, 2
    %v2454 = vld [vmem:[%s2453] sm:$0x1]
    %v2456 = vlaneseq
    %v2457 = vshrl.u32 %v2456, 7
    %v2458 = vsub.s32 0, %v2457
    %v2459 = vrot.slane %v2454, %v2458
    %2461 = vmatprep.subr.mxu0 0.0
    %2462 = vmatpush1.msra.mxu0 %v2437
    %2463 = vmatprep.subr.mxu0 0.0
    %2464 = vmatpush1.msra.mxu0 %v2438
    %2465 = vmatprep.subr.mxu0 0.0
    %2466 = vmatpush1.msra.mxu0 %v2439
    %2467 = vmatprep.subr.mxu0 0.0
    %2468 = vmatpush1.msra.mxu0 %v2440
    %2469 = vmatprep.subr.mxu0 0.0
    %2470 = vmatpush1.msra.mxu0 %v2441
    %2471 = vmatprep.subr.mxu0 0.0
    %2472 = vmatpush1.msra.mxu0 %v2442
    %2473 = vmatprep.subr.mxu0 0.0
    %2474 = vmatpush1.msra.mxu0 %v2443
    %2475 = vmatprep.subr.mxu0 0.0
    %2476 = vmatpush1.msra.mxu0 %v2444
    %2477 = vmatprep.subr.mxu0 0.0
    %2478 = vmatpush1.msra.mxu0 %v2445
    %2479 = vmatprep.subr.mxu0 0.0
    %2480 = vmatpush1.msra.mxu0 %v2446
    %2481 = vmatprep.subr.mxu0 0.0
    %2482 = vmatpush1.msra.mxu0 %v2447
    %2483 = vmatprep.subr.mxu0 0.0
    %2484 = vmatpush1.msra.mxu0 %v2448
    %2485 = vmatprep.subr.mxu0 0.0
    %2486 = vmatpush1.msra.mxu0 %v2449
    %2487 = vmatprep.subr.mxu0 0.0
    %2488 = vmatpush1.msra.mxu0 %v2450
    %2489 = vmatprep.subr.mxu0 0.0
    %2490 = vmatpush1.msra.mxu0 %v2451
    %2491 = vmatprep.subr.mxu0 0.0
    %2492 = vmatpush1.msra.mxu0 %v2452
    %2493 = vmatprep.subr.mxu0 0.0
    %2494 = vmatpush1.msra.mxu0 0.0
    %2495 = vmatprep.subr.mxu0 0.0
    %2496 = vmatpush1.msra.mxu0 0.0
    %2497 = vmatprep.subr.mxu0 0.0
    %2498 = vmatpush1.msra.mxu0 0.0
    %2499 = vmatprep.subr.mxu0 0.0
    %2500 = vmatpush1.msra.mxu0 0.0
    %2501 = vmatprep.subr.mxu0 0.0
    %2502 = vmatpush1.msra.mxu0 0.0
    %2503 = vmatprep.subr.mxu0 0.0
    %2504 = vmatpush1.msra.mxu0 0.0
    %2505 = vmatprep.subr.mxu0 0.0
    %2506 = vmatpush1.msra.mxu0 0.0
    %2507 = vmatprep.subr.mxu0 0.0
    %2508 = vmatpush1.msra.mxu0 0.0
    %2509 = vmatprep.subr.mxu0 0.0
    %2510 = vmatpush1.msra.mxu0 0.0
    %2511 = vmatprep.subr.mxu0 0.0
    %2512 = vmatpush1.msra.mxu0 0.0
    %2513 = vmatprep.subr.mxu0 0.0
    %2514 = vmatpush1.msra.mxu0 0.0
    %2515 = vmatprep.subr.mxu0 0.0
    %2516 = vmatpush1.msra.mxu0 0.0
    %2517 = vmatprep.subr.mxu0 0.0
    %2518 = vmatpush1.msra.mxu0 0.0
    %2519 = vmatprep.subr.mxu0 0.0
    %2520 = vmatpush1.msra.mxu0 0.0
    %2521 = vmatprep.subr.mxu0 0.0
    %2522 = vmatpush1.msra.mxu0 0.0
    %2523 = vmatprep.subr.mxu0 0.0
    %2524 = vmatpush1.msra.mxu0 0.0
    %2525 = vmatprep.mubr.f32.mxu0 0.0
    %2526 = vmatmul.mubr.f32.gmra.mrb[0].mxu0 %v2420
    %v2527 = vpop.f32.mrb[0].mxu0
    %v2528 = vadd.f32 %v2459, %v2527
    %v2529 = vpop.f32.mrb[0].mxu0
    %2530 = vmatprep.mubr.f32.mxu0 0.0
    %2531 = vmatmul.mubr.f32.gmra.mrb[0].mxu0 %v2421
    %v2532 = vpop.f32.mrb[0].mxu0
    %v2533 = vadd.f32 %v2459, %v2532
    %v2534 = vpop.f32.mrb[0].mxu0
    %2535 = vmatprep.mubr.f32.mxu0 0.0
    %2536 = vmatmul.mubr.f32.gmra.mrb[0].mxu0 %v2422
    %v2537 = vpop.f32.mrb[0].mxu0
    %v2538 = vadd.f32 %v2459, %v2537
    %v2539 = vpop.f32.mrb[0].mxu0
    %2540 = vmatprep.mubr.f32.mxu0 0.0
    %2541 = vmatmul.mubr.f32.gmra.mrb[0].mxu0 %v2423
    %v2542 = vpop.f32.mrb[0].mxu0
    %v2543 = vadd.f32 %v2459, %v2542
    %v2544 = vpop.f32.mrb[0].mxu0
    %2545 = vmatprep.mubr.f32.mxu0 0.0
    %2546 = vmatmul.mubr.f32.gmra.mrb[0].mxu0 %v2424
    %v2547 = vpop.f32.mrb[0].mxu0
    %v2548 = vadd.f32 %v2459, %v2547
    %v2549 = vpop.f32.mrb[0].mxu0
    %2550 = vmatprep.mubr.f32.mxu0 0.0
    %2551 = vmatmul.mubr.f32.gmra.mrb[0].mxu0 %v2425
    %v2552 = vpop.f32.mrb[0].mxu0
    %v2553 = vadd.f32 %v2459, %v2552
    %v2554 = vpop.f32.mrb[0].mxu0
    %2555 = vmatprep.mubr.f32.mxu0 0.0
    %2556 = vmatmul.mubr.f32.gmra.mrb[0].mxu0 %v2426
    %v2557 = vpop.f32.mrb[0].mxu0
    %v2558 = vadd.f32 %v2459, %v2557
    %v2559 = vpop.f32.mrb[0].mxu0
    %2560 = vmatprep.mubr.f32.mxu0 0.0
    %2561 = vmatmul.mubr.f32.gmra.mrb[0].mxu0 %v2427
    %v2562 = vpop.f32.mrb[0].mxu0
    %v2563 = vadd.f32 %v2459, %v2562
    %v2564 = vpop.f32.mrb[0].mxu0
    %2565 = vmatprep.mubr.f32.mxu0 0.0
    %2566 = vmatmul.mubr.f32.gmra.mrb[0].mxu0 %v2428
    %v2567 = vpop.f32.mrb[0].mxu0
    %v2568 = vadd.f32 %v2459, %v2567
    %v2569 = vpop.f32.mrb[0].mxu0
    %2570 = vmatprep.mubr.f32.mxu0 0.0
    %2571 = vmatmul.mubr.f32.gmra.mrb[0].mxu0 %v2429
    %v2572 = vpop.f32.mrb[0].mxu0
    %v2573 = vadd.f32 %v2459, %v2572
    %v2574 = vpop.f32.mrb[0].mxu0
    %2575 = vmatprep.mubr.f32.mxu0 0.0
    %2576 = vmatmul.mubr.f32.gmra.mrb[0].mxu0 %v2430
    %v2577 = vpop.f32.mrb[0].mxu0
    %v2578 = vadd.f32 %v2459, %v2577
    %v2579 = vpop.f32.mrb[0].mxu0
    %2580 = vmatprep.mubr.f32.mxu0 0.0
    %2581 = vmatmul.mubr.f32.gmra.mrb[0].mxu0 %v2431
    %v2582 = vpop.f32.mrb[0].mxu0
    %v2583 = vadd.f32 %v2459, %v2582
    %v2584 = vpop.f32.mrb[0].mxu0
    %2585 = vmatprep.mubr.f32.mxu0 0.0
    %2586 = vmatmul.mubr.f32.gmra.mrb[0].mxu0 %v2432
    %v2587 = vpop.f32.mrb[0].mxu0
    %v2588 = vadd.f32 %v2459, %v2587
    %v2589 = vpop.f32.mrb[0].mxu0
    %2590 = vmatprep.mubr.f32.mxu0 0.0
    %2591 = vmatmul.mubr.f32.gmra.mrb[0].mxu0 %v2433
    %v2592 = vpop.f32.mrb[0].mxu0
    %v2593 = vadd.f32 %v2459, %v2592
    %v2594 = vpop.f32.mrb[0].mxu0
    %2595 = vmatprep.mubr.f32.mxu0 0.0
    %2596 = vmatmul.mubr.f32.gmra.mrb[0].mxu0 %v2434
    %v2597 = vpop.f32.mrb[0].mxu0
    %v2598 = vadd.f32 %v2459, %v2597
    %v2599 = vpop.f32.mrb[0].mxu0
    %2600 = vmatprep.mubr.f32.mxu0 0.0
    %2601 = vmatmul.mubr.f32.gmra.mrb[0].mxu0 %v2435
    %v2602 = vpop.f32.mrb[0].mxu0
    %v2603 = vadd.f32 %v2459, %v2602
    %v2604 = vpop.f32.mrb[0].mxu0
    %2605 = vdwg.mxu0
    %2606 = vmatprep.subr.mxu0 0.0
    %2607 = vmatpush1.msra.mxu0 %v2528
    %2608 = vmatprep.subr.mxu0 0.0
    %2609 = vmatpush1.msra.mxu0 %v2533
    %2610 = vmatprep.subr.mxu0 0.0
    %2611 = vmatpush1.msra.mxu0 %v2538
    %2612 = vmatprep.subr.mxu0 0.0
    %2613 = vmatpush1.msra.mxu0 %v2543
    %2614 = vmatprep.subr.mxu0 0.0
    %2615 = vmatpush1.msra.mxu0 %v2548
    %2616 = vmatprep.subr.mxu0 0.0
    %2617 = vmatpush1.msra.mxu0 %v2553
    %2618 = vmatprep.subr.mxu0 0.0
    %2619 = vmatpush1.msra.mxu0 %v2558
    %2620 = vmatprep.subr.mxu0 0.0
    %2621 = vmatpush1.msra.mxu0 %v2563
    %2622 = vmatprep.subr.mxu0 0.0
    %2623 = vmatpush1.msra.mxu0 %v2568
    %2624 = vmatprep.subr.mxu0 0.0
    %2625 = vmatpush1.msra.mxu0 %v2573
    %2626 = vmatprep.subr.mxu0 0.0
    %2627 = vmatpush1.msra.mxu0 %v2578
    %2628 = vmatprep.subr.mxu0 0.0
    %2629 = vmatpush1.msra.mxu0 %v2583
    %2630 = vmatprep.subr.mxu0 0.0
    %2631 = vmatpush1.msra.mxu0 %v2588
    %2632 = vmatprep.subr.mxu0 0.0
    %2633 = vmatpush1.msra.mxu0 %v2593
    %2634 = vmatprep.subr.mxu0 0.0
    %2635 = vmatpush1.msra.mxu0 %v2598
    %2636 = vmatprep.subr.mxu0 0.0
    %2637 = vmatpush1.msra.mxu0 %v2603
    %2638 = vmatprep.subr.mxu0 0.0
    %2639 = vmatpush1.msra.mxu0 0.0
    %2640 = vmatprep.subr.mxu0 0.0
    %2641 = vmatpush1.msra.mxu0 0.0
    %2642 = vmatprep.subr.mxu0 0.0
    %2643 = vmatpush1.msra.mxu0 0.0
    %2644 = vmatprep.subr.mxu0 0.0
    %2645 = vmatpush1.msra.mxu0 0.0
    %2646 = vmatprep.subr.mxu0 0.0
    %2647 = vmatpush1.msra.mxu0 0.0
    %2648 = vmatprep.subr.mxu0 0.0
    %2649 = vmatpush1.msra.mxu0 0.0
    %2650 = vmatprep.subr.mxu0 0.0
    %2651 = vmatpush1.msra.mxu0 0.0
    %2652 = vmatprep.subr.mxu0 0.0
    %2653 = vmatpush1.msra.mxu0 0.0
    %2654 = vmatprep.subr.mxu0 0.0
    %2655 = vmatpush1.msra.mxu0 0.0
    %2656 = vmatprep.subr.mxu0 0.0
    %2657 = vmatpush1.msra.mxu0 0.0
    %2658 = vmatprep.subr.mxu0 0.0
    %2659 = vmatpush1.msra.mxu0 0.0
    %2660 = vmatprep.subr.mxu0 0.0
    %2661 = vmatpush1.msra.mxu0 0.0
    %2662 = vmatprep.subr.mxu0 0.0
    %2663 = vmatpush1.msra.mxu0 0.0
    %2664 = vmatprep.subr.mxu0 0.0
    %2665 = vmatpush1.msra.mxu0 0.0
    %2666 = vmatprep.subr.mxu0 0.0
    %2667 = vmatpush1.msra.mxu0 0.0
    %2668 = vmatprep.subr.mxu0 0.0
    %2669 = vmatpush1.msra.mxu0 0.0
    %2670 = vmatprep.mubr.f32.mxu0 0.0
    %2671 = vmatmul.mubr.f32.gmra.mrb[0].mxu0 %v161
    %v2672 = vpop.f32.mrb[0].mxu0
    %v2673 = vadd.f32 0.0, %v2672
    %v2674 = vpop.f32.mrb[0].mxu0
    %2675 = vdwg.mxu0
    %v2676 = vmul.f32 %v2528, %v2528
    %v2677 = vmul.f32 %v2533, %v2533
    %v2678 = vmul.f32 %v2538, %v2538
    %v2679 = vmul.f32 %v2543, %v2543
    %v2680 = vmul.f32 %v2548, %v2548
    %v2681 = vmul.f32 %v2553, %v2553
    %v2682 = vmul.f32 %v2558, %v2558
    %v2683 = vmul.f32 %v2563, %v2563
    %v2684 = vmul.f32 %v2568, %v2568
    %v2685 = vmul.f32 %v2573, %v2573
    %v2686 = vmul.f32 %v2578, %v2578
    %v2687 = vmul.f32 %v2583, %v2583
    %v2688 = vmul.f32 %v2588, %v2588
    %v2689 = vmul.f32 %v2593, %v2593
    %v2690 = vmul.f32 %v2598, %v2598
    %v2691 = vmul.f32 %v2603, %v2603
    %2692 = vmatprep.subr.mxu0 0.0
    %2693 = vmatpush1.msra.mxu0 %v2676
    %2694 = vmatprep.subr.mxu0 0.0
    %2695 = vmatpush1.msra.mxu0 %v2677
    %2696 = vmatprep.subr.mxu0 0.0
    %2697 = vmatpush1.msra.mxu0 %v2678
    %2698 = vmatprep.subr.mxu0 0.0
    %2699 = vmatpush1.msra.mxu0 %v2679
    %2700 = vmatprep.subr.mxu0 0.0
    %2701 = vmatpush1.msra.mxu0 %v2680
    %2702 = vmatprep.subr.mxu0 0.0
    %2703 = vmatpush1.msra.mxu0 %v2681
    %2704 = vmatprep.subr.mxu0 0.0
    %2705 = vmatpush1.msra.mxu0 %v2682
    %2706 = vmatprep.subr.mxu0 0.0
    %2707 = vmatpush1.msra.mxu0 %v2683
    %2708 = vmatprep.subr.mxu0 0.0
    %2709 = vmatpush1.msra.mxu0 %v2684
    %2710 = vmatprep.subr.mxu0 0.0
    %2711 = vmatpush1.msra.mxu0 %v2685
    %2712 = vmatprep.subr.mxu0 0.0
    %2713 = vmatpush1.msra.mxu0 %v2686
    %2714 = vmatprep.subr.mxu0 0.0
    %2715 = vmatpush1.msra.mxu0 %v2687
    %2716 = vmatprep.subr.mxu0 0.0
    %2717 = vmatpush1.msra.mxu0 %v2688
    %2718 = vmatprep.subr.mxu0 0.0
    %2719 = vmatpush1.msra.mxu0 %v2689
    %2720 = vmatprep.subr.mxu0 0.0
    %2721 = vmatpush1.msra.mxu0 %v2690
    %2722 = vmatprep.subr.mxu0 0.0
    %2723 = vmatpush1.msra.mxu0 %v2691
    %2724 = vmatprep.subr.mxu0 0.0
    %2725 = vmatpush1.msra.mxu0 0.0
    %2726 = vmatprep.subr.mxu0 0.0
    %2727 = vmatpush1.msra.mxu0 0.0
    %2728 = vmatprep.subr.mxu0 0.0
    %2729 = vmatpush1.msra.mxu0 0.0
    %2730 = vmatprep.subr.mxu0 0.0
    %2731 = vmatpush1.msra.mxu0 0.0
    %2732 = vmatprep.subr.mxu0 0.0
    %2733 = vmatpush1.msra.mxu0 0.0
    %2734 = vmatprep.subr.mxu0 0.0
    %2735 = vmatpush1.msra.mxu0 0.0
    %2736 = vmatprep.subr.mxu0 0.0
    %2737 = vmatpush1.msra.mxu0 0.0
    %2738 = vmatprep.subr.mxu0 0.0
    %2739 = vmatpush1.msra.mxu0 0.0
    %2740 = vmatprep.subr.mxu0 0.0
    %2741 = vmatpush1.msra.mxu0 0.0
    %2742 = vmatprep.subr.mxu0 0.0
    %2743 = vmatpush1.msra.mxu0 0.0
    %2744 = vmatprep.subr.mxu0 0.0
    %2745 = vmatpush1.msra.mxu0 0.0
    %2746 = vmatprep.subr.mxu0 0.0
    %2747 = vmatpush1.msra.mxu0 0.0
    %2748 = vmatprep.subr.mxu0 0.0
    %2749 = vmatpush1.msra.mxu0 0.0
    %2750 = vmatprep.subr.mxu0 0.0
    %2751 = vmatpush1.msra.mxu0 0.0
    %2752 = vmatprep.subr.mxu0 0.0
    %2753 = vmatpush1.msra.mxu0 0.0
    %2754 = vmatprep.subr.mxu0 0.0
    %2755 = vmatpush1.msra.mxu0 0.0
    %2756 = vmatprep.mubr.f32.mxu0 0.0
    %2757 = vmatmul.mubr.f32.gmra.mrb[0].mxu0 %v161
    %v2758 = vpop.f32.mrb[0].mxu0
    %v2759 = vadd.f32 0.0, %v2758
    %v2760 = vpop.f32.mrb[0].mxu0
    %2761 = vdwg.mxu0
    %v2762 = vmul.f32 %v2673, 0.125
    %v2763 = vmul.f32 %v2759, 0.125
    %v2764 = vmul.f32 %v2762, %v2762
    %v2765 = vsub.f32 %v2763, %v2764
    %s2766 = scalar_lea.vmem %s8, 2
    %v2767 = vld [vmem:[%s2766] sm:$0x1]
    %v2768 = vadd.f32 %v2765, 1e-05
    %v2769 = vrsqrt.pop %v2768
    %v2770 = vmul.f32 %v2767, %v2769
    %v2772 = vlaneseq
    %v2773 = vshrl.u32 %v2772, 7
    %v2774 = vsub.s32 0, %v2773
    %v2775 = vrot.slane %v2770, %v2774
    %v2777 = vmul.f32 %v2528, %v2775
    %v2778 = vmul.f32 %v2533, %v2775
    %v2779 = vmul.f32 %v2538, %v2775
    %v2780 = vmul.f32 %v2543, %v2775
    %v2781 = vmul.f32 %v2548, %v2775
    %v2782 = vmul.f32 %v2553, %v2775
    %v2783 = vmul.f32 %v2558, %v2775
    %v2784 = vmul.f32 %v2563, %v2775
    %v2785 = vmul.f32 %v2568, %v2775
    %v2786 = vmul.f32 %v2573, %v2775
    %v2787 = vmul.f32 %v2578, %v2775
    %v2788 = vmul.f32 %v2583, %v2775
    %v2789 = vmul.f32 %v2588, %v2775
    %v2790 = vmul.f32 %v2593, %v2775
    %v2791 = vmul.f32 %v2598, %v2775
    %v2792 = vmul.f32 %v2603, %v2775
    %s2793 = scalar_lea.vmem %s9, 2
    %v2794 = vld [vmem:[%s2793] sm:$0x1]
    %v2795 = vmul.f32 %v2762, %v2770
    %v2796 = vsub.f32 %v2794, %v2795
    %v2798 = vlaneseq
    %v2799 = vshrl.u32 %v2798, 7
    %v2800 = vsub.s32 0, %v2799
    %v2801 = vrot.slane %v2796, %v2800
    %v2803 = vadd.f32 %v2777, %v2801
    %v2804 = vadd.f32 %v2778, %v2801
    %v2805 = vadd.f32 %v2779, %v2801
    %v2806 = vadd.f32 %v2780, %v2801
    %v2807 = vadd.f32 %v2781, %v2801
    %v2808 = vadd.f32 %v2782, %v2801
    %v2809 = vadd.f32 %v2783, %v2801
    %v2810 = vadd.f32 %v2784, %v2801
    %v2811 = vadd.f32 %v2785, %v2801
    %v2812 = vadd.f32 %v2786, %v2801
    %v2813 = vadd.f32 %v2787, %v2801
    %v2814 = vadd.f32 %v2788, %v2801
    %v2815 = vadd.f32 %v2789, %v2801
    %v2816 = vadd.f32 %v2790, %v2801
    %v2817 = vadd.f32 %v2791, %v2801
    %v2818 = vadd.f32 %v2792, %v2801
    %v2819 = vld [vmem:[#allocation10] sm:$0xff]
    %v2820 = vld [vmem:[#allocation10 + $0x8] sm:$0xff]
    %v2821 = vld [vmem:[#allocation10 + $0x10] sm:$0xff]
    %v2822 = vld [vmem:[#allocation10 + $0x18] sm:$0xff]
    %v2823 = vld [vmem:[#allocation10 + $0x20] sm:$0xff]
    %v2824 = vld [vmem:[#allocation10 + $0x28] sm:$0xff]
    %v2825 = vld [vmem:[#allocation10 + $0x30] sm:$0xff]
    %v2826 = vld [vmem:[#allocation10 + $0x38] sm:$0xff]
    %v2827 = vld [vmem:[#allocation10 + $0x40] sm:$0xff]
    %v2828 = vld [vmem:[#allocation10 + $0x48] sm:$0xff]
    %v2829 = vld [vmem:[#allocation10 + $0x50] sm:$0xff]
    %v2830 = vld [vmem:[#allocation10 + $0x58] sm:$0xff]
    %v2831 = vld [vmem:[#allocation10 + $0x60] sm:$0xff]
    %v2832 = vld [vmem:[#allocation10 + $0x68] sm:$0xff]
    %v2833 = vld [vmem:[#allocation10 + $0x70] sm:$0xff]
    %v2834 = vld [vmem:[#allocation10 + $0x78] sm:$0xff]
    %v2835 = vld [vmem:[%s12] sm:$0x1]
    %v2837 = vlaneseq
    %v2838 = vshrl.u32 %v2837, 7
    %v2839 = vsub.s32 0, %v2838
    %v2840 = vrot.slane %v2835, %v2839
    %2842 = vmatprep.subr.mxu0 0.0
    %2843 = vmatpush1.msra.mxu0 %v2819
    %2844 = vmatprep.subr.mxu0 0.0
    %2845 = vmatpush1.msra.mxu0 %v2820
    %2846 = vmatprep.subr.mxu0 0.0
    %2847 = vmatpush1.msra.mxu0 %v2821
    %2848 = vmatprep.subr.mxu0 0.0
    %2849 = vmatpush1.msra.mxu0 %v2822
    %2850 = vmatprep.subr.mxu0 0.0
    %2851 = vmatpush1.msra.mxu0 %v2823
    %2852 = vmatprep.subr.mxu0 0.0
    %2853 = vmatpush1.msra.mxu0 %v2824
    %2854 = vmatprep.subr.mxu0 0.0
    %2855 = vmatpush1.msra.mxu0 %v2825
    %2856 = vmatprep.subr.mxu0 0.0
    %2857 = vmatpush1.msra.mxu0 %v2826
    %2858 = vmatprep.subr.mxu0 0.0
    %2859 = vmatpush1.msra.mxu0 %v2827
    %2860 = vmatprep.subr.mxu0 0.0
    %2861 = vmatpush1.msra.mxu0 %v2828
    %2862 = vmatprep.subr.mxu0 0.0
    %2863 = vmatpush1.msra.mxu0 %v2829
    %2864 = vmatprep.subr.mxu0 0.0
    %2865 = vmatpush1.msra.mxu0 %v2830
    %2866 = vmatprep.subr.mxu0 0.0
    %2867 = vmatpush1.msra.mxu0 %v2831
    %2868 = vmatprep.subr.mxu0 0.0
    %2869 = vmatpush1.msra.mxu0 %v2832
    %2870 = vmatprep.subr.mxu0 0.0
    %2871 = vmatpush1.msra.mxu0 %v2833
    %2872 = vmatprep.subr.mxu0 0.0
    %2873 = vmatpush1.msra.mxu0 %v2834
    %2874 = vmatprep.subr.mxu0 0.0
    %2875 = vmatpush1.msra.mxu0 0.0
    %2876 = vmatprep.subr.mxu0 0.0
    %2877 = vmatpush1.msra.mxu0 0.0
    %2878 = vmatprep.subr.mxu0 0.0
    %2879 = vmatpush1.msra.mxu0 0.0
    %2880 = vmatprep.subr.mxu0 0.0
    %2881 = vmatpush1.msra.mxu0 0.0
    %2882 = vmatprep.subr.mxu0 0.0
    %2883 = vmatpush1.msra.mxu0 0.0
    %2884 = vmatprep.subr.mxu0 0.0
    %2885 = vmatpush1.msra.mxu0 0.0
    %2886 = vmatprep.subr.mxu0 0.0
    %2887 = vmatpush1.msra.mxu0 0.0
    %2888 = vmatprep.subr.mxu0 0.0
    %2889 = vmatpush1.msra.mxu0 0.0
    %2890 = vmatprep.subr.mxu0 0.0
    %2891 = vmatpush1.msra.mxu0 0.0
    %2892 = vmatprep.subr.mxu0 0.0
    %2893 = vmatpush1.msra.mxu0 0.0
    %2894 = vmatprep.subr.mxu0 0.0
    %2895 = vmatpush1.msra.mxu0 0.0
    %2896 = vmatprep.subr.mxu0 0.0
    %2897 = vmatpush1.msra.mxu0 0.0
    %2898 = vmatprep.subr.mxu0 0.0
    %2899 = vmatpush1.msra.mxu0 0.0
    %2900 = vmatprep.subr.mxu0 0.0
    %2901 = vmatpush1.msra.mxu0 0.0
    %2902 = vmatprep.subr.mxu0 0.0
    %2903 = vmatpush1.msra.mxu0 0.0
    %2904 = vmatprep.subr.mxu0 0.0
    %2905 = vmatpush1.msra.mxu0 0.0
    %2906 = vmatprep.mubr.f32.mxu0 0.0
    %2907 = vmatmul.mubr.f32.gmra.mrb[0].mxu0 %v2803
    %v2908 = vpop.f32.mrb[0].mxu0
    %v2909 = vadd.f32 %v2840, %v2908
    %v2910 = vpop.f32.mrb[0].mxu0
    %2911 = vmatprep.mubr.f32.mxu0 0.0
    %2912 = vmatmul.mubr.f32.gmra.mrb[0].mxu0 %v2804
    %v2913 = vpop.f32.mrb[0].mxu0
    %v2914 = vadd.f32 %v2840, %v2913
    %v2915 = vpop.f32.mrb[0].mxu0
    %2916 = vmatprep.mubr.f32.mxu0 0.0
    %2917 = vmatmul.mubr.f32.gmra.mrb[0].mxu0 %v2805
    %v2918 = vpop.f32.mrb[0].mxu0
    %v2919 = vadd.f32 %v2840, %v2918
    %v2920 = vpop.f32.mrb[0].mxu0
    %2921 = vmatprep.mubr.f32.mxu0 0.0
    %2922 = vmatmul.mubr.f32.gmra.mrb[0].mxu0 %v2806
    %v2923 = vpop.f32.mrb[0].mxu0
    %v2924 = vadd.f32 %v2840, %v2923
    %v2925 = vpop.f32.mrb[0].mxu0
    %2926 = vmatprep.mubr.f32.mxu0 0.0
    %2927 = vmatmul.mubr.f32.gmra.mrb[0].mxu0 %v2807
    %v2928 = vpop.f32.mrb[0].mxu0
    %v2929 = vadd.f32 %v2840, %v2928
    %v2930 = vpop.f32.mrb[0].mxu0
    %2931 = vmatprep.mubr.f32.mxu0 0.0
    %2932 = vmatmul.mubr.f32.gmra.mrb[0].mxu0 %v2808
    %v2933 = vpop.f32.mrb[0].mxu0
    %v2934 = vadd.f32 %v2840, %v2933
    %v2935 = vpop.f32.mrb[0].mxu0
    %2936 = vmatprep.mubr.f32.mxu0 0.0
    %2937 = vmatmul.mubr.f32.gmra.mrb[0].mxu0 %v2809
    %v2938 = vpop.f32.mrb[0].mxu0
    %v2939 = vadd.f32 %v2840, %v2938
    %v2940 = vpop.f32.mrb[0].mxu0
    %2941 = vmatprep.mubr.f32.mxu0 0.0
    %2942 = vmatmul.mubr.f32.gmra.mrb[0].mxu0 %v2810
    %v2943 = vpop.f32.mrb[0].mxu0
    %v2944 = vadd.f32 %v2840, %v2943
    %v2945 = vpop.f32.mrb[0].mxu0
    %2946 = vmatprep.mubr.f32.mxu0 0.0
    %2947 = vmatmul.mubr.f32.gmra.mrb[0].mxu0 %v2811
    %v2948 = vpop.f32.mrb[0].mxu0
    %v2949 = vadd.f32 %v2840, %v2948
    %v2950 = vpop.f32.mrb[0].mxu0
    %2951 = vmatprep.mubr.f32.mxu0 0.0
    %2952 = vmatmul.mubr.f32.gmra.mrb[0].mxu0 %v2812
    %v2953 = vpop.f32.mrb[0].mxu0
    %v2954 = vadd.f32 %v2840, %v2953
    %v2955 = vpop.f32.mrb[0].mxu0
    %2956 = vmatprep.mubr.f32.mxu0 0.0
    %2957 = vmatmul.mubr.f32.gmra.mrb[0].mxu0 %v2813
    %v2958 = vpop.f32.mrb[0].mxu0
    %v2959 = vadd.f32 %v2840, %v2958
    %v2960 = vpop.f32.mrb[0].mxu0
    %2961 = vmatprep.mubr.f32.mxu0 0.0
    %2962 = vmatmul.mubr.f32.gmra.mrb[0].mxu0 %v2814
    %v2963 = vpop.f32.mrb[0].mxu0
    %v2964 = vadd.f32 %v2840, %v2963
    %v2965 = vpop.f32.mrb[0].mxu0
    %2966 = vmatprep.mubr.f32.mxu0 0.0
    %2967 = vmatmul.mubr.f32.gmra.mrb[0].mxu0 %v2815
    %v2968 = vpop.f32.mrb[0].mxu0
    %v2969 = vadd.f32 %v2840, %v2968
    %v2970 = vpop.f32.mrb[0].mxu0
    %2971 = vmatprep.mubr.f32.mxu0 0.0
    %2972 = vmatmul.mubr.f32.gmra.mrb[0].mxu0 %v2816
    %v2973 = vpop.f32.mrb[0].mxu0
    %v2974 = vadd.f32 %v2840, %v2973
    %v2975 = vpop.f32.mrb[0].mxu0
    %2976 = vmatprep.mubr.f32.mxu0 0.0
    %2977 = vmatmul.mubr.f32.gmra.mrb[0].mxu0 %v2817
    %v2978 = vpop.f32.mrb[0].mxu0
    %v2979 = vadd.f32 %v2840, %v2978
    %v2980 = vpop.f32.mrb[0].mxu0
    %2981 = vmatprep.mubr.f32.mxu0 0.0
    %2982 = vmatmul.mubr.f32.gmra.mrb[0].mxu0 %v2818
    %v2983 = vpop.f32.mrb[0].mxu0
    %v2984 = vadd.f32 %v2840, %v2983
    %v2985 = vpop.f32.mrb[0].mxu0
    %2986 = vdwg.mxu0
    %2987 = vst [vmem:[#allocation11] sm:$0xff] %v2909
    %2988 = vst [vmem:[#allocation11 + $0x8] sm:$0xff] %v2914
    %2989 = vst [vmem:[#allocation11 + $0x10] sm:$0xff] %v2919
    %2990 = vst [vmem:[#allocation11 + $0x18] sm:$0xff] %v2924
    %2991 = vst [vmem:[#allocation11 + $0x20] sm:$0xff] %v2929
    %2992 = vst [vmem:[#allocation11 + $0x28] sm:$0xff] %v2934
    %2993 = vst [vmem:[#allocation11 + $0x30] sm:$0xff] %v2939
    %2994 = vst [vmem:[#allocation11 + $0x38] sm:$0xff] %v2944
    %2995 = vst [vmem:[#allocation11 + $0x40] sm:$0xff] %v2949
    %2996 = vst [vmem:[#allocation11 + $0x48] sm:$0xff] %v2954
    %2997 = vst [vmem:[#allocation11 + $0x50] sm:$0xff] %v2959
    %2998 = vst [vmem:[#allocation11 + $0x58] sm:$0xff] %v2964
    %2999 = vst [vmem:[#allocation11 + $0x60] sm:$0xff] %v2969
    %3000 = vst [vmem:[#allocation11 + $0x68] sm:$0xff] %v2974
    %3001 = vst [vmem:[#allocation11 + $0x70] sm:$0xff] %v2979
    %3002 = vst [vmem:[#allocation11 + $0x78] sm:$0xff] %v2984
    // Predicated region
    $region74: #{tpu_custom_call.1} parent=1 // pred_check
      _
    $region75: #{tpu_custom_call.1} parent=1 // pred_check_branch
      %3004 = sbr.rel (0) target = $region77
    $region76: #{tpu_custom_call.1} parent=1 // pred_region
      %s3006 = ssub.s32 2048, 2048
      %3007 = vsyncadd [#allocation4], %s3006
      %s3008 = sshll.u32 [#allocation11], 4
      %s3009 = int_to_ptr.vmem [resolvable:$true] %s3008
      %3014 = dma.vmem_to_hbm [thread:$0]  %s3009, 2048, %s13, [#allocation4], 128, 128, 8
    $region77: #{tpu_custom_call.1} parent=1 // pred_fallthru
      _
    // Predicated region
    $region78: #{tpu_custom_call.1} parent=1 // pred_check
      _
    $region79: #{tpu_custom_call.1} parent=1 // pred_check_branch
      %3016 = sbr.rel (0) target = $region81
    $region80: #{tpu_custom_call.1} parent=1 // pred_region
      %3017 = dma.done [#allocation4], 2048
    $region81: #{tpu_custom_call.1} parent=1 // pred_fallthru
      _
    %3018 = vsyncpa [#allocation3], 1
    %3019 = vsyncpa [#allocation6], 1
    %3020 = vsyncpa [#allocation9], 1
    %3021 = vsyncpa [#allocation4], 1

</llo_original>
